<compile_context>
chip_gen: v7x
topology: tpu7x:2x2x1
jax: 0.10.0
libtpu: 0.0.40
codegen_flags: <defaults>
</compile_context>

<pallas_src>
import functools

import jax
import jax.numpy as jnp
from jax.experimental import pallas as pl
from jax.experimental.pallas import tpu as pltpu

IN_DIM = 512
HIDDEN = 128          # hidden_dim (lane-aligned)
OUT_DIM = 64          # out_dim
OUT_PAD = 128         # lane-dense padded output width
LN_EPS = 1e-5         # torch.nn.LayerNorm default

# Row layout of the packed (13, HIDDEN) vector slab.
_B1, _G1, _BE1 = 0, 1, 2
_B2, _G2, _BE2 = 3, 4, 5
_B4, _G4, _BE4 = 6, 7, 8
_B5, _G5, _BE5 = 9, 10, 11
_B3 = 12
_NUM_VEC_ROWS = 13


def layernormnet_kernel(x_ref, w1_ref, wh_ref, w3_ref, vec_ref, o_ref):
    """x_ref: (tm, 512) bf16; w1_ref: (512,128) bf16; wh_ref: (3,128,128) bf16;
    w3_ref: (128,128) bf16 (fc3 padded to 128 cols); vec_ref: (13,128) f32;
    o_ref: (tm, 128) f32."""
    vecs = vec_ref[...]  # (13, 128) f32, loaded once

    def row(r):
        return vecs[r:r + 1, :]  # (1, 128) broadcast row

    def ln_relu(h32, g_row, b_row):
        mean = jnp.mean(h32, axis=-1, keepdims=True)
        cent = h32 - mean
        var = jnp.mean(cent * cent, axis=-1, keepdims=True)
        inv = jax.lax.rsqrt(var + LN_EPS)
        return jnp.maximum(cent * inv * row(g_row) + row(b_row), 0.0)

    # TODO(synk): dropout is treated as identity (eval mode); training-time
    # stochastic dropout would use pltpu.prng_seed + pltpu.stateful_bernoulli.

    # fc1 -> ln1 -> relu  (bf16 MXU inputs, f32 accumulate, f32 LN)
    x = x_ref[...]  # already bf16
    h = jnp.dot(x, w1_ref[...], preferred_element_type=jnp.float32) + row(_B1)
    h = ln_relu(h, _G1, _BE1)

    # fc2/fc4/fc5 -> ln -> relu (unrolled static loop over the stacked weights)
    hidden_rows = ((_B2, _G2, _BE2), (_B4, _G4, _BE4), (_B5, _G5, _BE5))
    for layer in range(3):
        b_r, g_r, be_r = hidden_rows[layer]
        h = jnp.dot(h.astype(jnp.bfloat16), wh_ref[layer],
                    preferred_element_type=jnp.float32) + row(b_r)
        h = ln_relu(h, g_r, be_r)

    # fc3 (projection head, no norm / activation) — lane-dense 128-wide store.
    out = jnp.dot(h.astype(jnp.bfloat16), w3_ref[...],
                  preferred_element_type=jnp.float32) + row(_B3)
    o_ref[...] = out.astype(o_ref.dtype)


@functools.partial(jax.jit, static_argnames=("tm",))
def layernormnet_forward(x, params, tm=256):
    """x: (N, 512) f32; params: 18-tuple from init_params (f32, (in,out) weights)."""
    N, in_dim = x.shape
    assert in_dim == IN_DIM
    (w1, b1, g1, be1,
     w2, b2, g2, be2,
     w4, b4, g4, be4,
     w5, b5, g5, be5,
     w3, b3) = params

    # ---- pack / cast operands (cheap XLA ops fused into the same jit) ----
    w1_bf = w1.astype(jnp.bfloat16)                                   # (512,128)
    wh_bf = jnp.stack([w2, w4, w5], axis=0).astype(jnp.bfloat16)      # (3,128,128)
    w3_bf = jnp.pad(w3, ((0, 0), (0, OUT_PAD - OUT_DIM))).astype(jnp.bfloat16)
    b3_pad = jnp.pad(b3, ((0, 0), (0, OUT_PAD - OUT_DIM)))
    vecs = jnp.concatenate(
        [b1, g1, be1, b2, g2, be2, b4, g4, be4, b5, g5, be5, b3_pad],
        axis=0).astype(jnp.float32)                                   # (13,128)

    # ---- pad batch to a tile multiple, cast activations to bf16 ----
    n_tiles = pl.cdiv(N, tm)
    n_pad = n_tiles * tm
    x_p = jnp.pad(x, ((0, n_pad - N), (0, 0))).astype(jnp.bfloat16)

    def row_spec(cols):
        return pl.BlockSpec((tm, cols), lambda i: (i, 0))

    out_full = pl.pallas_call(
        layernormnet_kernel,
        out_shape=jax.ShapeDtypeStruct((n_pad, OUT_PAD), jnp.float32),
        grid_spec=pltpu.PrefetchScalarGridSpec(
            num_scalar_prefetch=0,
            grid=(n_tiles,),
            in_specs=[
                row_spec(IN_DIM),
                pl.BlockSpec((IN_DIM, HIDDEN), lambda i: (0, 0)),
                pl.BlockSpec((3, HIDDEN, HIDDEN), lambda i: (0, 0, 0)),
                pl.BlockSpec((HIDDEN, OUT_PAD), lambda i: (0, 0)),
                pl.BlockSpec((_NUM_VEC_ROWS, HIDDEN), lambda i: (0, 0)),
            ],
            out_specs=row_spec(OUT_PAD),
        ),
        compiler_params=pltpu.CompilerParams(
            dimension_semantics=("parallel",),
            # At tm<=512 the VMEM footprint is ~2 MiB; only very large tiles
            # (>=2048 rows) would need an explicit vmem_limit_bytes bump.
        ),
    )(x_p, w1_bf, wh_bf, w3_bf, vecs)

    return out_full[:N, :OUT_DIM].astype(x.dtype)


def init_params(key, hidden=HIDDEN, out_dim=OUT_DIM, dtype=jnp.float32):
    """Deterministic init mimicking torch.nn.Linear / LayerNorm defaults.

    Linear weights are stored pre-transposed as (in_features, out_features).
    LayerNorm: weight=1, bias=0. Biases kept 2D (1, dim) for TPU layout.
    """
    keys = jax.random.split(key, 12)
    k_iter = iter(keys)

    def linear(fan_in, fan_out):
        bound = 1.0 / jnp.sqrt(fan_in)
        w = jax.random.uniform(next(k_iter), (fan_in, fan_out), dtype,
                               minval=-bound, maxval=bound)
        b = jax.random.uniform(next(k_iter), (1, fan_out), dtype,
                               minval=-bound, maxval=bound)
        return w, b

    def ln(dim):
        return jnp.ones((1, dim), dtype), jnp.zeros((1, dim), dtype)

    w1, b1 = linear(IN_DIM, hidden)
    g1, be1 = ln(hidden)
    w2, b2 = linear(hidden, hidden)
    g2, be2 = ln(hidden)
    w4, b4 = linear(hidden, hidden)
    g4, be4 = ln(hidden)
    w5, b5 = linear(hidden, hidden)
    g5, be5 = ln(hidden)
    w3, b3 = linear(hidden, out_dim)

    return (w1, b1, g1, be1, w2, b2, g2, be2,
            w4, b4, g4, be4, w5, b5, g5, be5, w3, b3)


def _reference(x, params, bf16_matmul=False):
    """Pure-JAX reference. bf16_matmul=True mirrors the kernel's MXU dtype."""
    (w1, b1, g1, be1, w2, b2, g2, be2,
     w4, b4, g4, be4, w5, b5, g5, be5, w3, b3) = params

    def dot(h, w):
        if bf16_matmul:
            return jnp.dot(h.astype(jnp.bfloat16), w.astype(jnp.bfloat16),
                           preferred_element_type=jnp.float32)
        return h @ w

    def ln(h, g, b):
        m = jnp.mean(h, axis=-1, keepdims=True)
        v = jnp.mean((h - m) ** 2, axis=-1, keepdims=True)
        return (h - m) / jnp.sqrt(v + LN_EPS) * g + b

    h = jnp.maximum(ln(dot(x, w1) + b1, g1, be1), 0.0)
    h = jnp.maximum(ln(dot(h, w2) + b2, g2, be2), 0.0)
    h = jnp.maximum(ln(dot(h, w4) + b4, g4, be4), 0.0)
    h = jnp.maximum(ln(dot(h, w5) + b5, g5, be5), 0.0)
    return dot(h, w3) + b3


if __name__ == "__main__":
    key = jax.random.PRNGKey(0)
    kx, kp = jax.random.split(key)
    params = init_params(kp)

    # Small primary test (single grid step, batch padded up to the tile).
    N = 16
    x = jax.random.normal(kx, (N, IN_DIM), dtype=jnp.float32)
    out = jax.block_until_ready(layernormnet_forward(x, params, tm=256))
    assert out.shape == (N, OUT_DIM)

    ref_bf16 = _reference(x, params, bf16_matmul=True)   # same MXU dtype
    ref_f32 = _reference(x, params, bf16_matmul=False)   # full-precision semantics
    assert jnp.allclose(out, ref_bf16, atol=1e-2, rtol=1e-2), (
        float(jnp.max(jnp.abs(out - ref_bf16))))
    assert jnp.allclose(out, ref_f32, atol=1.5e-1, rtol=1.5e-1), (
        float(jnp.max(jnp.abs(out - ref_f32))))

    # Second test: ragged batch (N not a multiple of tm) over multiple grid steps.
    N2 = 300
    x2 = jax.random.normal(jax.random.PRNGKey(1), (N2, IN_DIM), dtype=jnp.float32)
    out2 = jax.block_until_ready(layernormnet_forward(x2, params, tm=128))
    ref2 = _reference(x2, params, bf16_matmul=True)
    assert out2.shape == (N2, OUT_DIM)
    assert jnp.allclose(out2, ref2, atol=1e-2, rtol=1e-2), (
        float(jnp.max(jnp.abs(out2 - ref2))))

    print("KERNEL_OK")
</pallas_src>

<mosaic_0001>
module attributes {stable_mosaic.version = 11 : i64} {
  func.func @layernormnet_kernel(%arg0: i32, %arg1: memref<256x512xbf16, #tpu.memory_space<vmem>>, %arg2: memref<512x128xbf16, #tpu.memory_space<vmem>>, %arg3: memref<3x128x128xbf16, #tpu.memory_space<vmem>>, %arg4: memref<128x128xbf16, #tpu.memory_space<vmem>>, %arg5: memref<13x128xf32, #tpu.memory_space<vmem>>, %arg6: memref<256x128xf32, #tpu.memory_space<vmem>>) attributes {dimension_semantics = [#tpu.dimension_semantics<parallel>], iteration_bounds = array<i64: 1>, scalar_prefetch = 0 : i64, scratch_operands = 0 : i64, tpu.core_type = #tpu.core_type<tc>, window_params = [{transform_indices = @transform_0, window_bounds = array<i64: 256, 512>}, {pipeline_mode = #tpu.pipeline_mode<synchronous>, transform_indices = @transform_1, window_bounds = array<i64: 512, 128>}, {pipeline_mode = #tpu.pipeline_mode<synchronous>, transform_indices = @transform_2, window_bounds = array<i64: 3, 128, 128>}, {pipeline_mode = #tpu.pipeline_mode<synchronous>, transform_indices = @transform_3, window_bounds = array<i64: 128, 128>}, {pipeline_mode = #tpu.pipeline_mode<synchronous>, transform_indices = @transform_4, window_bounds = array<i64: 13, 128>}, {transform_indices = @transform_5, window_bounds = array<i64: 256, 128>}]} {
    %c0 = arith.constant 0 : index
    %c0_0 = arith.constant 0 : index
    %0 = vector.load %arg5[%c0, %c0_0] : memref<13x128xf32, #tpu.memory_space<vmem>>, vector<13x128xf32>
    %c0_1 = arith.constant 0 : index
    %c0_2 = arith.constant 0 : index
    %1 = vector.load %arg1[%c0_1, %c0_2] : memref<256x512xbf16, #tpu.memory_space<vmem>>, vector<256x512xbf16>
    %c0_3 = arith.constant 0 : index
    %c0_4 = arith.constant 0 : index
    %2 = vector.load %arg2[%c0_3, %c0_4] : memref<512x128xbf16, #tpu.memory_space<vmem>>, vector<512x128xbf16>
    %cst = arith.constant dense<0.000000e+00> : vector<256x128xf32>
    %3 = tpu.matmul %1, %2, %cst {dimension_numbers = #tpu.dot_dimension_numbers<[1], [0], [0], [1], [0, 0, 1, 1], [], []>} : vector<256x512xbf16>, vector<512x128xbf16>, vector<256x128xf32> -> vector<256x128xf32>
    %4 = vector.extract_strided_slice %0 {offsets = [0, 0], sizes = [1, 128], strides = [1, 1]} : vector<13x128xf32> to vector<1x128xf32>
    %5 = vector.broadcast %4 : vector<1x128xf32> to vector<256x128xf32>
    %6 = arith.addf %3, %5 : vector<256x128xf32>
    %cst_5 = arith.constant dense<0.000000e+00> : vector<256xf32>
    %7 = vector.multi_reduction <add>, %6, %cst_5 [1] : vector<256x128xf32> to vector<256xf32>
    %8 = vector.shape_cast %7 : vector<256xf32> to vector<256x1xf32>
    %cst_6 = arith.constant 1.280000e+02 : f32
    %9 = vector.broadcast %cst_6 : f32 to vector<256x1xf32>
    %10 = arith.divf %8, %9 : vector<256x1xf32>
    %11 = vector.broadcast %10 : vector<256x1xf32> to vector<256x128xf32>
    %12 = arith.subf %6, %11 : vector<256x128xf32>
    %13 = arith.mulf %12, %12 : vector<256x128xf32>
    %cst_7 = arith.constant dense<0.000000e+00> : vector<256xf32>
    %14 = vector.multi_reduction <add>, %13, %cst_7 [1] : vector<256x128xf32> to vector<256xf32>
    %15 = vector.shape_cast %14 : vector<256xf32> to vector<256x1xf32>
    %cst_8 = arith.constant 1.280000e+02 : f32
    %16 = vector.broadcast %cst_8 : f32 to vector<256x1xf32>
    %17 = arith.divf %15, %16 : vector<256x1xf32>
    %cst_9 = arith.constant 9.99999974E-6 : f32
    %18 = vector.broadcast %cst_9 : f32 to vector<256x1xf32>
    %19 = arith.addf %17, %18 : vector<256x1xf32>
    %20 = math.rsqrt %19 : vector<256x1xf32>
    %21 = vector.broadcast %20 : vector<256x1xf32> to vector<256x128xf32>
    %22 = arith.mulf %12, %21 : vector<256x128xf32>
    %23 = vector.extract_strided_slice %0 {offsets = [1, 0], sizes = [1, 128], strides = [1, 1]} : vector<13x128xf32> to vector<1x128xf32>
    %24 = vector.broadcast %23 : vector<1x128xf32> to vector<256x128xf32>
    %25 = arith.mulf %22, %24 : vector<256x128xf32>
    %26 = vector.extract_strided_slice %0 {offsets = [2, 0], sizes = [1, 128], strides = [1, 1]} : vector<13x128xf32> to vector<1x128xf32>
    %27 = vector.broadcast %26 : vector<1x128xf32> to vector<256x128xf32>
    %28 = arith.addf %25, %27 : vector<256x128xf32>
    %cst_10 = arith.constant 0.000000e+00 : f32
    %29 = vector.broadcast %cst_10 : f32 to vector<256x128xf32>
    %30 = arith.maximumf %28, %29 : vector<256x128xf32>
    %31 = arith.truncf %30 : vector<256x128xf32> to vector<256x128xbf16>
    %c0_11 = arith.constant 0 : index
    %c0_12 = arith.constant 0 : index
    %c0_13 = arith.constant 0 : index
    %32 = vector.load %arg3[%c0_11, %c0_12, %c0_13] : memref<3x128x128xbf16, #tpu.memory_space<vmem>>, vector<1x128x128xbf16>
    %33 = vector.shape_cast %32 : vector<1x128x128xbf16> to vector<128x128xbf16>
    %cst_14 = arith.constant dense<0.000000e+00> : vector<256x128xf32>
    %34 = tpu.matmul %31, %33, %cst_14 {dimension_numbers = #tpu.dot_dimension_numbers<[1], [0], [0], [1], [0, 0, 1, 1], [], []>} : vector<256x128xbf16>, vector<128x128xbf16>, vector<256x128xf32> -> vector<256x128xf32>
    %35 = vector.extract_strided_slice %0 {offsets = [3, 0], sizes = [1, 128], strides = [1, 1]} : vector<13x128xf32> to vector<1x128xf32>
    %36 = vector.broadcast %35 : vector<1x128xf32> to vector<256x128xf32>
    %37 = arith.addf %34, %36 : vector<256x128xf32>
    %cst_15 = arith.constant dense<0.000000e+00> : vector<256xf32>
    %38 = vector.multi_reduction <add>, %37, %cst_15 [1] : vector<256x128xf32> to vector<256xf32>
    %39 = vector.shape_cast %38 : vector<256xf32> to vector<256x1xf32>
    %cst_16 = arith.constant 1.280000e+02 : f32
    %40 = vector.broadcast %cst_16 : f32 to vector<256x1xf32>
    %41 = arith.divf %39, %40 : vector<256x1xf32>
    %42 = vector.broadcast %41 : vector<256x1xf32> to vector<256x128xf32>
    %43 = arith.subf %37, %42 : vector<256x128xf32>
    %44 = arith.mulf %43, %43 : vector<256x128xf32>
    %cst_17 = arith.constant dense<0.000000e+00> : vector<256xf32>
    %45 = vector.multi_reduction <add>, %44, %cst_17 [1] : vector<256x128xf32> to vector<256xf32>
    %46 = vector.shape_cast %45 : vector<256xf32> to vector<256x1xf32>
    %cst_18 = arith.constant 1.280000e+02 : f32
    %47 = vector.broadcast %cst_18 : f32 to vector<256x1xf32>
    %48 = arith.divf %46, %47 : vector<256x1xf32>
    %cst_19 = arith.constant 9.99999974E-6 : f32
    %49 = vector.broadcast %cst_19 : f32 to vector<256x1xf32>
    %50 = arith.addf %48, %49 : vector<256x1xf32>
    %51 = math.rsqrt %50 : vector<256x1xf32>
    %52 = vector.broadcast %51 : vector<256x1xf32> to vector<256x128xf32>
    %53 = arith.mulf %43, %52 : vector<256x128xf32>
    %54 = vector.extract_strided_slice %0 {offsets = [4, 0], sizes = [1, 128], strides = [1, 1]} : vector<13x128xf32> to vector<1x128xf32>
    %55 = vector.broadcast %54 : vector<1x128xf32> to vector<256x128xf32>
    %56 = arith.mulf %53, %55 : vector<256x128xf32>
    %57 = vector.extract_strided_slice %0 {offsets = [5, 0], sizes = [1, 128], strides = [1, 1]} : vector<13x128xf32> to vector<1x128xf32>
    %58 = vector.broadcast %57 : vector<1x128xf32> to vector<256x128xf32>
    %59 = arith.addf %56, %58 : vector<256x128xf32>
    %cst_20 = arith.constant 0.000000e+00 : f32
    %60 = vector.broadcast %cst_20 : f32 to vector<256x128xf32>
    %61 = arith.maximumf %59, %60 : vector<256x128xf32>
    %62 = arith.truncf %61 : vector<256x128xf32> to vector<256x128xbf16>
    %c1 = arith.constant 1 : index
    %c0_21 = arith.constant 0 : index
    %c0_22 = arith.constant 0 : index
    %63 = vector.load %arg3[%c1, %c0_21, %c0_22] : memref<3x128x128xbf16, #tpu.memory_space<vmem>>, vector<1x128x128xbf16>
    %64 = vector.shape_cast %63 : vector<1x128x128xbf16> to vector<128x128xbf16>
    %cst_23 = arith.constant dense<0.000000e+00> : vector<256x128xf32>
    %65 = tpu.matmul %62, %64, %cst_23 {dimension_numbers = #tpu.dot_dimension_numbers<[1], [0], [0], [1], [0, 0, 1, 1], [], []>} : vector<256x128xbf16>, vector<128x128xbf16>, vector<256x128xf32> -> vector<256x128xf32>
    %66 = vector.extract_strided_slice %0 {offsets = [6, 0], sizes = [1, 128], strides = [1, 1]} : vector<13x128xf32> to vector<1x128xf32>
    %67 = vector.broadcast %66 : vector<1x128xf32> to vector<256x128xf32>
    %68 = arith.addf %65, %67 : vector<256x128xf32>
    %cst_24 = arith.constant dense<0.000000e+00> : vector<256xf32>
    %69 = vector.multi_reduction <add>, %68, %cst_24 [1] : vector<256x128xf32> to vector<256xf32>
    %70 = vector.shape_cast %69 : vector<256xf32> to vector<256x1xf32>
    %cst_25 = arith.constant 1.280000e+02 : f32
    %71 = vector.broadcast %cst_25 : f32 to vector<256x1xf32>
    %72 = arith.divf %70, %71 : vector<256x1xf32>
    %73 = vector.broadcast %72 : vector<256x1xf32> to vector<256x128xf32>
    %74 = arith.subf %68, %73 : vector<256x128xf32>
    %75 = arith.mulf %74, %74 : vector<256x128xf32>
    %cst_26 = arith.constant dense<0.000000e+00> : vector<256xf32>
    %76 = vector.multi_reduction <add>, %75, %cst_26 [1] : vector<256x128xf32> to vector<256xf32>
    %77 = vector.shape_cast %76 : vector<256xf32> to vector<256x1xf32>
    %cst_27 = arith.constant 1.280000e+02 : f32
    %78 = vector.broadcast %cst_27 : f32 to vector<256x1xf32>
    %79 = arith.divf %77, %78 : vector<256x1xf32>
    %cst_28 = arith.constant 9.99999974E-6 : f32
    %80 = vector.broadcast %cst_28 : f32 to vector<256x1xf32>
    %81 = arith.addf %79, %80 : vector<256x1xf32>
    %82 = math.rsqrt %81 : vector<256x1xf32>
    %83 = vector.broadcast %82 : vector<256x1xf32> to vector<256x128xf32>
    %84 = arith.mulf %74, %83 : vector<256x128xf32>
    %85 = vector.extract_strided_slice %0 {offsets = [7, 0], sizes = [1, 128], strides = [1, 1]} : vector<13x128xf32> to vector<1x128xf32>
    %86 = vector.broadcast %85 : vector<1x128xf32> to vector<256x128xf32>
    %87 = arith.mulf %84, %86 : vector<256x128xf32>
    %88 = vector.extract_strided_slice %0 {offsets = [8, 0], sizes = [1, 128], strides = [1, 1]} : vector<13x128xf32> to vector<1x128xf32>
    %89 = vector.broadcast %88 : vector<1x128xf32> to vector<256x128xf32>
    %90 = arith.addf %87, %89 : vector<256x128xf32>
    %cst_29 = arith.constant 0.000000e+00 : f32
    %91 = vector.broadcast %cst_29 : f32 to vector<256x128xf32>
    %92 = arith.maximumf %90, %91 : vector<256x128xf32>
    %93 = arith.truncf %92 : vector<256x128xf32> to vector<256x128xbf16>
    %c2 = arith.constant 2 : index
    %c0_30 = arith.constant 0 : index
    %c0_31 = arith.constant 0 : index
    %94 = vector.load %arg3[%c2, %c0_30, %c0_31] : memref<3x128x128xbf16, #tpu.memory_space<vmem>>, vector<1x128x128xbf16>
    %95 = vector.shape_cast %94 : vector<1x128x128xbf16> to vector<128x128xbf16>
    %cst_32 = arith.constant dense<0.000000e+00> : vector<256x128xf32>
    %96 = tpu.matmul %93, %95, %cst_32 {dimension_numbers = #tpu.dot_dimension_numbers<[1], [0], [0], [1], [0, 0, 1, 1], [], []>} : vector<256x128xbf16>, vector<128x128xbf16>, vector<256x128xf32> -> vector<256x128xf32>
    %97 = vector.extract_strided_slice %0 {offsets = [9, 0], sizes = [1, 128], strides = [1, 1]} : vector<13x128xf32> to vector<1x128xf32>
    %98 = vector.broadcast %97 : vector<1x128xf32> to vector<256x128xf32>
    %99 = arith.addf %96, %98 : vector<256x128xf32>
    %cst_33 = arith.constant dense<0.000000e+00> : vector<256xf32>
    %100 = vector.multi_reduction <add>, %99, %cst_33 [1] : vector<256x128xf32> to vector<256xf32>
    %101 = vector.shape_cast %100 : vector<256xf32> to vector<256x1xf32>
    %cst_34 = arith.constant 1.280000e+02 : f32
    %102 = vector.broadcast %cst_34 : f32 to vector<256x1xf32>
    %103 = arith.divf %101, %102 : vector<256x1xf32>
    %104 = vector.broadcast %103 : vector<256x1xf32> to vector<256x128xf32>
    %105 = arith.subf %99, %104 : vector<256x128xf32>
    %106 = arith.mulf %105, %105 : vector<256x128xf32>
    %cst_35 = arith.constant dense<0.000000e+00> : vector<256xf32>
    %107 = vector.multi_reduction <add>, %106, %cst_35 [1] : vector<256x128xf32> to vector<256xf32>
    %108 = vector.shape_cast %107 : vector<256xf32> to vector<256x1xf32>
    %cst_36 = arith.constant 1.280000e+02 : f32
    %109 = vector.broadcast %cst_36 : f32 to vector<256x1xf32>
    %110 = arith.divf %108, %109 : vector<256x1xf32>
    %cst_37 = arith.constant 9.99999974E-6 : f32
    %111 = vector.broadcast %cst_37 : f32 to vector<256x1xf32>
    %112 = arith.addf %110, %111 : vector<256x1xf32>
    %113 = math.rsqrt %112 : vector<256x1xf32>
    %114 = vector.broadcast %113 : vector<256x1xf32> to vector<256x128xf32>
    %115 = arith.mulf %105, %114 : vector<256x128xf32>
    %116 = vector.extract_strided_slice %0 {offsets = [10, 0], sizes = [1, 128], strides = [1, 1]} : vector<13x128xf32> to vector<1x128xf32>
    %117 = vector.broadcast %116 : vector<1x128xf32> to vector<256x128xf32>
    %118 = arith.mulf %115, %117 : vector<256x128xf32>
    %119 = vector.extract_strided_slice %0 {offsets = [11, 0], sizes = [1, 128], strides = [1, 1]} : vector<13x128xf32> to vector<1x128xf32>
    %120 = vector.broadcast %119 : vector<1x128xf32> to vector<256x128xf32>
    %121 = arith.addf %118, %120 : vector<256x128xf32>
    %cst_38 = arith.constant 0.000000e+00 : f32
    %122 = vector.broadcast %cst_38 : f32 to vector<256x128xf32>
    %123 = arith.maximumf %121, %122 : vector<256x128xf32>
    %124 = arith.truncf %123 : vector<256x128xf32> to vector<256x128xbf16>
    %c0_39 = arith.constant 0 : index
    %c0_40 = arith.constant 0 : index
    %125 = vector.load %arg4[%c0_39, %c0_40] : memref<128x128xbf16, #tpu.memory_space<vmem>>, vector<128x128xbf16>
    %cst_41 = arith.constant dense<0.000000e+00> : vector<256x128xf32>
    %126 = tpu.matmul %124, %125, %cst_41 {dimension_numbers = #tpu.dot_dimension_numbers<[1], [0], [0], [1], [0, 0, 1, 1], [], []>} : vector<256x128xbf16>, vector<128x128xbf16>, vector<256x128xf32> -> vector<256x128xf32>
    %127 = vector.extract_strided_slice %0 {offsets = [12, 0], sizes = [1, 128], strides = [1, 1]} : vector<13x128xf32> to vector<1x128xf32>
    %128 = vector.broadcast %127 : vector<1x128xf32> to vector<256x128xf32>
    %129 = arith.addf %126, %128 : vector<256x128xf32>
    %c0_42 = arith.constant 0 : index
    %c0_43 = arith.constant 0 : index
    %130 = vector.load %arg6[%c0_42, %c0_43] : memref<256x128xf32, #tpu.memory_space<vmem>>, vector<256x128xf32>
    tpu.vector_store %arg6[%c0_42, %c0_43], %129 {strides = array<i32>} : memref<256x128xf32, #tpu.memory_space<vmem>>, vector<256x128xf32>,
    return
  }
  func.func @transform_0(%arg0: i32) -> (i32, i32) {
    %c0_i32 = arith.constant 0 : i32
    %c0_i32_0 = arith.constant 0 : i32
    return %arg0, %c0_i32 : i32, i32
  }
  func.func @transform_1(%arg0: i32) -> (i32, i32) {
    %c0_i32 = arith.constant 0 : i32
    %c0_i32_0 = arith.constant 0 : i32
    %c0_i32_1 = arith.constant 0 : i32
    return %c0_i32, %c0_i32_0 : i32, i32
  }
  func.func @transform_2(%arg0: i32) -> (i32, i32, i32) {
    %c0_i32 = arith.constant 0 : i32
    %c0_i32_0 = arith.constant 0 : i32
    %c0_i32_1 = arith.constant 0 : i32
    %c0_i32_2 = arith.constant 0 : i32
    return %c0_i32, %c0_i32_0, %c0_i32_1 : i32, i32, i32
  }
  func.func @transform_3(%arg0: i32) -> (i32, i32) {
    %c0_i32 = arith.constant 0 : i32
    %c0_i32_0 = arith.constant 0 : i32
    %c0_i32_1 = arith.constant 0 : i32
    return %c0_i32, %c0_i32_0 : i32, i32
  }
  func.func @transform_4(%arg0: i32) -> (i32, i32) {
    %c0_i32 = arith.constant 0 : i32
    %c0_i32_0 = arith.constant 0 : i32
    %c0_i32_1 = arith.constant 0 : i32
    return %c0_i32, %c0_i32_0 : i32, i32
  }
  func.func @transform_5(%arg0: i32) -> (i32, i32) {
    %c0_i32 = arith.constant 0 : i32
    %c0_i32_0 = arith.constant 0 : i32
    return %arg0, %c0_i32 : i32, i32
  }
}

</mosaic_0001>

<llo_original>
// kernel: layernormnet_forward.1
$region0: #{layernormnet_forward.1}
  #allocation0 [shape = 'u32[]', space=smem, size = 0x4, offset = 0x4, fixed_abs, tag = 'smem constant byte address 0x4 - core index']
  #allocation1 [shape = 'u32[144,128]{1,0:T(1,128)}', space=vmem, size = 0x12000, scoped, tag = 'internal scratch']
  %s0 = inlined_call_operand.vmem [shape: bf16[256,512], index: 0, kind: input, shape index: {}]
  %s1 = inlined_call_operand.vmem [shape: bf16[512,128], index: 1, kind: input, shape index: {}]
  %s2 = inlined_call_operand.vmem [shape: bf16[3,128,128], index: 2, kind: input, shape index: {}]
  %s3 = inlined_call_operand.vmem [shape: bf16[128,128], index: 3, kind: input, shape index: {}]
  %s4 = inlined_call_operand.vmem [shape: f32[13,128], index: 4, kind: input, shape index: {}]
  %s5 = inlined_call_operand.vmem [shape: f32[256,128], index: 5, kind: output, shape index: {}]
  %s6 = sld [smem:[#allocation0]]
  $region30: #{layernormnet_forward.1} parent=0
    _
  %s8 = ssub.s32 1, %s6
  %s9 = scalar_select 0, %s8, %s6
  // Predicated region
  $region2: #{layernormnet_forward.1} parent=0 // pred_check
    _
  $region3: #{layernormnet_forward.1} parent=0 // pred_check_branch
    %11 = sbr.rel (0) target = $region5
  $region4: #{layernormnet_forward.1} parent=0 // pred_region
    _
  $region5: #{layernormnet_forward.1} parent=0 // pred_fallthru
    _
  // Predicated region
  $region6: #{layernormnet_forward.1} parent=0 // pred_check
    _
  $region7: #{layernormnet_forward.1} parent=0 // pred_check_branch
    %13 = sbr.rel (0) target = $region9
  $region8: #{layernormnet_forward.1} parent=0 // pred_region
    _
  $region9: #{layernormnet_forward.1} parent=0 // pred_fallthru
    _
  // Predicated region
  $region10: #{layernormnet_forward.1} parent=0 // pred_check
    _
  $region11: #{layernormnet_forward.1} parent=0 // pred_check_branch
    %15 = sbr.rel (0) target = $region13
  $region12: #{layernormnet_forward.1} parent=0 // pred_region
    _
  $region13: #{layernormnet_forward.1} parent=0 // pred_fallthru
    _
  // Predicated region
  $region14: #{layernormnet_forward.1} parent=0 // pred_check
    _
  $region15: #{layernormnet_forward.1} parent=0 // pred_check_branch
    %17 = sbr.rel (0) target = $region17
  $region16: #{layernormnet_forward.1} parent=0 // pred_region
    _
  $region17: #{layernormnet_forward.1} parent=0 // pred_fallthru
    _
  // Predicated region
  $region18: #{layernormnet_forward.1} parent=0 // pred_check
    _
  $region19: #{layernormnet_forward.1} parent=0 // pred_check_branch
    %19 = sbr.rel (0) target = $region21
  $region20: #{layernormnet_forward.1} parent=0 // pred_region
    _
  $region21: #{layernormnet_forward.1} parent=0 // pred_fallthru
    _
  %v21 = vld [vmem:[%s4] sm:$0xff]
  %v22 = vld [vmem:[%s4 + $0x8] sm:$0x1f]
  %v23 = vld [vmem:[%s0] sm:$0xff]
  %v24 = vld [vmem:[%s0 + $0x8] sm:$0xff]
  %v25 = vld [vmem:[%s0 + $0x10] sm:$0xff]
  %v26 = vld [vmem:[%s0 + $0x18] sm:$0xff]
  %v27 = vld [vmem:[%s0 + $0x20] sm:$0xff]
  %v28 = vld [vmem:[%s0 + $0x28] sm:$0xff]
  %v29 = vld [vmem:[%s0 + $0x30] sm:$0xff]
  %v30 = vld [vmem:[%s0 + $0x38] sm:$0xff]
  %v31 = vld [vmem:[%s0 + $0x40] sm:$0xff]
  %v32 = vld [vmem:[%s0 + $0x48] sm:$0xff]
  %v33 = vld [vmem:[%s0 + $0x50] sm:$0xff]
  %v34 = vld [vmem:[%s0 + $0x58] sm:$0xff]
  %v35 = vld [vmem:[%s0 + $0x60] sm:$0xff]
  %v36 = vld [vmem:[%s0 + $0x68] sm:$0xff]
  %v37 = vld [vmem:[%s0 + $0x70] sm:$0xff]
  %v38 = vld [vmem:[%s0 + $0x78] sm:$0xff]
  %v39 = vld [vmem:[%s0 + $0x80] sm:$0xff]
  %v40 = vld [vmem:[%s0 + $0x88] sm:$0xff]
  %v41 = vld [vmem:[%s0 + $0x90] sm:$0xff]
  %v42 = vld [vmem:[%s0 + $0x98] sm:$0xff]
  %v43 = vld [vmem:[%s0 + $0xa0] sm:$0xff]
  %v44 = vld [vmem:[%s0 + $0xa8] sm:$0xff]
  %v45 = vld [vmem:[%s0 + $0xb0] sm:$0xff]
  %v46 = vld [vmem:[%s0 + $0xb8] sm:$0xff]
  %v47 = vld [vmem:[%s0 + $0xc0] sm:$0xff]
  %v48 = vld [vmem:[%s0 + $0xc8] sm:$0xff]
  %v49 = vld [vmem:[%s0 + $0xd0] sm:$0xff]
  %v50 = vld [vmem:[%s0 + $0xd8] sm:$0xff]
  %v51 = vld [vmem:[%s0 + $0xe0] sm:$0xff]
  %v52 = vld [vmem:[%s0 + $0xe8] sm:$0xff]
  %v53 = vld [vmem:[%s0 + $0xf0] sm:$0xff]
  %v54 = vld [vmem:[%s0 + $0xf8] sm:$0xff]
  %v55 = vld [vmem:[%s0 + $0x100] sm:$0xff]
  %v56 = vld [vmem:[%s0 + $0x108] sm:$0xff]
  %v57 = vld [vmem:[%s0 + $0x110] sm:$0xff]
  %v58 = vld [vmem:[%s0 + $0x118] sm:$0xff]
  %v59 = vld [vmem:[%s0 + $0x120] sm:$0xff]
  %v60 = vld [vmem:[%s0 + $0x128] sm:$0xff]
  %v61 = vld [vmem:[%s0 + $0x130] sm:$0xff]
  %v62 = vld [vmem:[%s0 + $0x138] sm:$0xff]
  %v63 = vld [vmem:[%s0 + $0x140] sm:$0xff]
  %v64 = vld [vmem:[%s0 + $0x148] sm:$0xff]
  %v65 = vld [vmem:[%s0 + $0x150] sm:$0xff]
  %v66 = vld [vmem:[%s0 + $0x158] sm:$0xff]
  %v67 = vld [vmem:[%s0 + $0x160] sm:$0xff]
  %v68 = vld [vmem:[%s0 + $0x168] sm:$0xff]
  %v69 = vld [vmem:[%s0 + $0x170] sm:$0xff]
  %v70 = vld [vmem:[%s0 + $0x178] sm:$0xff]
  %v71 = vld [vmem:[%s0 + $0x180] sm:$0xff]
  %v72 = vld [vmem:[%s0 + $0x188] sm:$0xff]
  %v73 = vld [vmem:[%s0 + $0x190] sm:$0xff]
  %v74 = vld [vmem:[%s0 + $0x198] sm:$0xff]
  %v75 = vld [vmem:[%s0 + $0x1a0] sm:$0xff]
  %v76 = vld [vmem:[%s0 + $0x1a8] sm:$0xff]
  %v77 = vld [vmem:[%s0 + $0x1b0] sm:$0xff]
  %v78 = vld [vmem:[%s0 + $0x1b8] sm:$0xff]
  %v79 = vld [vmem:[%s0 + $0x1c0] sm:$0xff]
  %v80 = vld [vmem:[%s0 + $0x1c8] sm:$0xff]
  %v81 = vld [vmem:[%s0 + $0x1d0] sm:$0xff]
  %v82 = vld [vmem:[%s0 + $0x1d8] sm:$0xff]
  %v83 = vld [vmem:[%s0 + $0x1e0] sm:$0xff]
  %v84 = vld [vmem:[%s0 + $0x1e8] sm:$0xff]
  %v85 = vld [vmem:[%s0 + $0x1f0] sm:$0xff]
  %v86 = vld [vmem:[%s0 + $0x1f8] sm:$0xff]
  %v87 = vld [vmem:[%s1] sm:$0xf]
  %v88 = vld [vmem:[%s1 + $0x4] sm:$0xf]
  %v89 = vld [vmem:[%s1 + $0x8] sm:$0xf]
  %v90 = vld [vmem:[%s1 + $0xc] sm:$0xf]
  %v91 = vld [vmem:[%s1 + $0x10] sm:$0xf]
  %v92 = vld [vmem:[%s1 + $0x14] sm:$0xf]
  %v93 = vld [vmem:[%s1 + $0x18] sm:$0xf]
  %v94 = vld [vmem:[%s1 + $0x1c] sm:$0xf]
  %v95 = vld [vmem:[%s1 + $0x20] sm:$0xf]
  %v96 = vld [vmem:[%s1 + $0x24] sm:$0xf]
  %v97 = vld [vmem:[%s1 + $0x28] sm:$0xf]
  %v98 = vld [vmem:[%s1 + $0x2c] sm:$0xf]
  %v99 = vld [vmem:[%s1 + $0x30] sm:$0xf]
  %v100 = vld [vmem:[%s1 + $0x34] sm:$0xf]
  %v101 = vld [vmem:[%s1 + $0x38] sm:$0xf]
  %v102 = vld [vmem:[%s1 + $0x3c] sm:$0xf]
  %v103 = vld [vmem:[%s1 + $0x40] sm:$0xf]
  %v104 = vld [vmem:[%s1 + $0x44] sm:$0xf]
  %v105 = vld [vmem:[%s1 + $0x48] sm:$0xf]
  %v106 = vld [vmem:[%s1 + $0x4c] sm:$0xf]
  %v107 = vld [vmem:[%s1 + $0x50] sm:$0xf]
  %v108 = vld [vmem:[%s1 + $0x54] sm:$0xf]
  %v109 = vld [vmem:[%s1 + $0x58] sm:$0xf]
  %v110 = vld [vmem:[%s1 + $0x5c] sm:$0xf]
  %v111 = vld [vmem:[%s1 + $0x60] sm:$0xf]
  %v112 = vld [vmem:[%s1 + $0x64] sm:$0xf]
  %v113 = vld [vmem:[%s1 + $0x68] sm:$0xf]
  %v114 = vld [vmem:[%s1 + $0x6c] sm:$0xf]
  %v115 = vld [vmem:[%s1 + $0x70] sm:$0xf]
  %v116 = vld [vmem:[%s1 + $0x74] sm:$0xf]
  %v117 = vld [vmem:[%s1 + $0x78] sm:$0xf]
  %v118 = vld [vmem:[%s1 + $0x7c] sm:$0xf]
  %v119 = vld [vmem:[%s1 + $0x80] sm:$0xf]
  %v120 = vld [vmem:[%s1 + $0x84] sm:$0xf]
  %v121 = vld [vmem:[%s1 + $0x88] sm:$0xf]
  %v122 = vld [vmem:[%s1 + $0x8c] sm:$0xf]
  %v123 = vld [vmem:[%s1 + $0x90] sm:$0xf]
  %v124 = vld [vmem:[%s1 + $0x94] sm:$0xf]
  %v125 = vld [vmem:[%s1 + $0x98] sm:$0xf]
  %v126 = vld [vmem:[%s1 + $0x9c] sm:$0xf]
  %v127 = vld [vmem:[%s1 + $0xa0] sm:$0xf]
  %v128 = vld [vmem:[%s1 + $0xa4] sm:$0xf]
  %v129 = vld [vmem:[%s1 + $0xa8] sm:$0xf]
  %v130 = vld [vmem:[%s1 + $0xac] sm:$0xf]
  %v131 = vld [vmem:[%s1 + $0xb0] sm:$0xf]
  %v132 = vld [vmem:[%s1 + $0xb4] sm:$0xf]
  %v133 = vld [vmem:[%s1 + $0xb8] sm:$0xf]
  %v134 = vld [vmem:[%s1 + $0xbc] sm:$0xf]
  %v135 = vld [vmem:[%s1 + $0xc0] sm:$0xf]
  %v136 = vld [vmem:[%s1 + $0xc4] sm:$0xf]
  %v137 = vld [vmem:[%s1 + $0xc8] sm:$0xf]
  %v138 = vld [vmem:[%s1 + $0xcc] sm:$0xf]
  %v139 = vld [vmem:[%s1 + $0xd0] sm:$0xf]
  %v140 = vld [vmem:[%s1 + $0xd4] sm:$0xf]
  %v141 = vld [vmem:[%s1 + $0xd8] sm:$0xf]
  %v142 = vld [vmem:[%s1 + $0xdc] sm:$0xf]
  %v143 = vld [vmem:[%s1 + $0xe0] sm:$0xf]
  %v144 = vld [vmem:[%s1 + $0xe4] sm:$0xf]
  %v145 = vld [vmem:[%s1 + $0xe8] sm:$0xf]
  %v146 = vld [vmem:[%s1 + $0xec] sm:$0xf]
  %v147 = vld [vmem:[%s1 + $0xf0] sm:$0xf]
  %v148 = vld [vmem:[%s1 + $0xf4] sm:$0xf]
  %v149 = vld [vmem:[%s1 + $0xf8] sm:$0xf]
  %v150 = vld [vmem:[%s1 + $0xfc] sm:$0xf]
  %v151 = vlaneseq
  %v152 = vshrl.u32 %v151, 7
  %v153 = vsub.s32 0, %v152
  %v154 = vrot.slane %v21, %v153
  %v219 = vunpack.c.l.b16 %v23
  %v220 = vunpack.c.h.b16 %v23
  %v221 = vunpack.c.l.b16 %v24
  %v222 = vunpack.c.h.b16 %v24
  %v223 = vunpack.c.l.b16 %v25
  %v224 = vunpack.c.h.b16 %v25
  %v225 = vunpack.c.l.b16 %v26
  %v226 = vunpack.c.h.b16 %v26
  %v227 = vunpack.c.l.b16 %v27
  %v228 = vunpack.c.h.b16 %v27
  %v229 = vunpack.c.l.b16 %v28
  %v230 = vunpack.c.h.b16 %v28
  %v231 = vunpack.c.l.b16 %v29
  %v232 = vunpack.c.h.b16 %v29
  %v233 = vunpack.c.l.b16 %v30
  %v234 = vunpack.c.h.b16 %v30
  %v235 = vunpack.c.l.b16 %v31
  %v236 = vunpack.c.h.b16 %v31
  %v237 = vunpack.c.l.b16 %v32
  %v238 = vunpack.c.h.b16 %v32
  %v239 = vunpack.c.l.b16 %v33
  %v240 = vunpack.c.h.b16 %v33
  %v241 = vunpack.c.l.b16 %v34
  %v242 = vunpack.c.h.b16 %v34
  %v243 = vunpack.c.l.b16 %v35
  %v244 = vunpack.c.h.b16 %v35
  %v245 = vunpack.c.l.b16 %v36
  %v246 = vunpack.c.h.b16 %v36
  %v247 = vunpack.c.l.b16 %v37
  %v248 = vunpack.c.h.b16 %v37
  %v249 = vunpack.c.l.b16 %v38
  %v250 = vunpack.c.h.b16 %v38
  %v251 = vunpack.c.l.b16 %v39
  %v252 = vunpack.c.h.b16 %v39
  %v253 = vunpack.c.l.b16 %v40
  %v254 = vunpack.c.h.b16 %v40
  %v255 = vunpack.c.l.b16 %v41
  %v256 = vunpack.c.h.b16 %v41
  %v257 = vunpack.c.l.b16 %v42
  %v258 = vunpack.c.h.b16 %v42
  %v259 = vunpack.c.l.b16 %v43
  %v260 = vunpack.c.h.b16 %v43
  %v261 = vunpack.c.l.b16 %v44
  %v262 = vunpack.c.h.b16 %v44
  %v263 = vunpack.c.l.b16 %v45
  %v264 = vunpack.c.h.b16 %v45
  %v265 = vunpack.c.l.b16 %v46
  %v266 = vunpack.c.h.b16 %v46
  %v267 = vunpack.c.l.b16 %v47
  %v268 = vunpack.c.h.b16 %v47
  %v269 = vunpack.c.l.b16 %v48
  %v270 = vunpack.c.h.b16 %v48
  %v271 = vunpack.c.l.b16 %v49
  %v272 = vunpack.c.h.b16 %v49
  %v273 = vunpack.c.l.b16 %v50
  %v274 = vunpack.c.h.b16 %v50
  %v275 = vunpack.c.l.b16 %v51
  %v276 = vunpack.c.h.b16 %v51
  %v277 = vunpack.c.l.b16 %v52
  %v278 = vunpack.c.h.b16 %v52
  %v279 = vunpack.c.l.b16 %v53
  %v280 = vunpack.c.h.b16 %v53
  %v281 = vunpack.c.l.b16 %v54
  %v282 = vunpack.c.h.b16 %v54
  %v283 = vunpack.c.l.b16 %v55
  %v284 = vunpack.c.h.b16 %v55
  %v285 = vunpack.c.l.b16 %v56
  %v286 = vunpack.c.h.b16 %v56
  %v287 = vunpack.c.l.b16 %v57
  %v288 = vunpack.c.h.b16 %v57
  %v289 = vunpack.c.l.b16 %v58
  %v290 = vunpack.c.h.b16 %v58
  %v291 = vunpack.c.l.b16 %v59
  %v292 = vunpack.c.h.b16 %v59
  %v293 = vunpack.c.l.b16 %v60
  %v294 = vunpack.c.h.b16 %v60
  %v295 = vunpack.c.l.b16 %v61
  %v296 = vunpack.c.h.b16 %v61
  %v297 = vunpack.c.l.b16 %v62
  %v298 = vunpack.c.h.b16 %v62
  %v299 = vunpack.c.l.b16 %v63
  %v300 = vunpack.c.h.b16 %v63
  %v301 = vunpack.c.l.b16 %v64
  %v302 = vunpack.c.h.b16 %v64
  %v303 = vunpack.c.l.b16 %v65
  %v304 = vunpack.c.h.b16 %v65
  %v305 = vunpack.c.l.b16 %v66
  %v306 = vunpack.c.h.b16 %v66
  %v307 = vunpack.c.l.b16 %v67
  %v308 = vunpack.c.h.b16 %v67
  %v309 = vunpack.c.l.b16 %v68
  %v310 = vunpack.c.h.b16 %v68
  %v311 = vunpack.c.l.b16 %v69
  %v312 = vunpack.c.h.b16 %v69
  %v313 = vunpack.c.l.b16 %v70
  %v314 = vunpack.c.h.b16 %v70
  %v315 = vunpack.c.l.b16 %v71
  %v316 = vunpack.c.h.b16 %v71
  %v317 = vunpack.c.l.b16 %v72
  %v318 = vunpack.c.h.b16 %v72
  %v319 = vunpack.c.l.b16 %v73
  %v320 = vunpack.c.h.b16 %v73
  %v321 = vunpack.c.l.b16 %v74
  %v322 = vunpack.c.h.b16 %v74
  %v323 = vunpack.c.l.b16 %v75
  %v324 = vunpack.c.h.b16 %v75
  %v325 = vunpack.c.l.b16 %v76
  %v326 = vunpack.c.h.b16 %v76
  %v327 = vunpack.c.l.b16 %v77
  %v328 = vunpack.c.h.b16 %v77
  %v329 = vunpack.c.l.b16 %v78
  %v330 = vunpack.c.h.b16 %v78
  %v331 = vunpack.c.l.b16 %v79
  %v332 = vunpack.c.h.b16 %v79
  %v333 = vunpack.c.l.b16 %v80
  %v334 = vunpack.c.h.b16 %v80
  %v335 = vunpack.c.l.b16 %v81
  %v336 = vunpack.c.h.b16 %v81
  %v337 = vunpack.c.l.b16 %v82
  %v338 = vunpack.c.h.b16 %v82
  %v339 = vunpack.c.l.b16 %v83
  %v340 = vunpack.c.h.b16 %v83
  %v341 = vunpack.c.l.b16 %v84
  %v342 = vunpack.c.h.b16 %v84
  %v343 = vunpack.c.l.b16 %v85
  %v344 = vunpack.c.h.b16 %v85
  %v345 = vunpack.c.l.b16 %v86
  %v346 = vunpack.c.h.b16 %v86
  %v347 = vpack.c.b16 %v223, %v219
  %v348 = vpack.c.b16 %v224, %v220
  %v349 = vpack.c.b16 %v225, %v221
  %v350 = vpack.c.b16 %v226, %v222
  %v351 = vpack.c.b16 %v231, %v227
  %v352 = vpack.c.b16 %v232, %v228
  %v353 = vpack.c.b16 %v233, %v229
  %v354 = vpack.c.b16 %v234, %v230
  %v355 = vpack.c.b16 %v239, %v235
  %v356 = vpack.c.b16 %v240, %v236
  %v357 = vpack.c.b16 %v241, %v237
  %v358 = vpack.c.b16 %v242, %v238
  %v359 = vpack.c.b16 %v247, %v243
  %v360 = vpack.c.b16 %v248, %v244
  %v361 = vpack.c.b16 %v249, %v245
  %v362 = vpack.c.b16 %v250, %v246
  %v363 = vpack.c.b16 %v255, %v251
  %v364 = vpack.c.b16 %v256, %v252
  %v365 = vpack.c.b16 %v257, %v253
  %v366 = vpack.c.b16 %v258, %v254
  %v367 = vpack.c.b16 %v263, %v259
  %v368 = vpack.c.b16 %v264, %v260
  %v369 = vpack.c.b16 %v265, %v261
  %v370 = vpack.c.b16 %v266, %v262
  %v371 = vpack.c.b16 %v271, %v267
  %v372 = vpack.c.b16 %v272, %v268
  %v373 = vpack.c.b16 %v273, %v269
  %v374 = vpack.c.b16 %v274, %v270
  %v375 = vpack.c.b16 %v279, %v275
  %v376 = vpack.c.b16 %v280, %v276
  %v377 = vpack.c.b16 %v281, %v277
  %v378 = vpack.c.b16 %v282, %v278
  %v379 = vpack.c.b16 %v287, %v283
  %v380 = vpack.c.b16 %v288, %v284
  %v381 = vpack.c.b16 %v289, %v285
  %v382 = vpack.c.b16 %v290, %v286
  %v383 = vpack.c.b16 %v295, %v291
  %v384 = vpack.c.b16 %v296, %v292
  %v385 = vpack.c.b16 %v297, %v293
  %v386 = vpack.c.b16 %v298, %v294
  %v387 = vpack.c.b16 %v303, %v299
  %v388 = vpack.c.b16 %v304, %v300
  %v389 = vpack.c.b16 %v305, %v301
  %v390 = vpack.c.b16 %v306, %v302
  %v391 = vpack.c.b16 %v311, %v307
  %v392 = vpack.c.b16 %v312, %v308
  %v393 = vpack.c.b16 %v313, %v309
  %v394 = vpack.c.b16 %v314, %v310
  %v395 = vpack.c.b16 %v319, %v315
  %v396 = vpack.c.b16 %v320, %v316
  %v397 = vpack.c.b16 %v321, %v317
  %v398 = vpack.c.b16 %v322, %v318
  %v399 = vpack.c.b16 %v327, %v323
  %v400 = vpack.c.b16 %v328, %v324
  %v401 = vpack.c.b16 %v329, %v325
  %v402 = vpack.c.b16 %v330, %v326
  %v403 = vpack.c.b16 %v335, %v331
  %v404 = vpack.c.b16 %v336, %v332
  %v405 = vpack.c.b16 %v337, %v333
  %v406 = vpack.c.b16 %v338, %v334
  %v407 = vpack.c.b16 %v343, %v339
  %v408 = vpack.c.b16 %v344, %v340
  %v409 = vpack.c.b16 %v345, %v341
  %v410 = vpack.c.b16 %v346, %v342
  %v539 = vunpack.c.l.b16 %v87
  %v540 = vunpack.c.l.b16 %v88
  %v541 = vunpack.c.l.b16 %v89
  %v542 = vunpack.c.l.b16 %v90
  %v543 = vunpack.c.l.b16 %v91
  %v544 = vunpack.c.l.b16 %v92
  %v545 = vunpack.c.l.b16 %v93
  %v546 = vunpack.c.l.b16 %v94
  %v547 = vunpack.c.l.b16 %v95
  %v548 = vunpack.c.l.b16 %v96
  %v549 = vunpack.c.l.b16 %v97
  %v550 = vunpack.c.l.b16 %v98
  %v551 = vunpack.c.l.b16 %v99
  %v552 = vunpack.c.l.b16 %v100
  %v553 = vunpack.c.l.b16 %v101
  %v554 = vunpack.c.l.b16 %v102
  %v555 = vunpack.c.l.b16 %v103
  %v556 = vunpack.c.l.b16 %v104
  %v557 = vunpack.c.l.b16 %v105
  %v558 = vunpack.c.l.b16 %v106
  %v559 = vunpack.c.l.b16 %v107
  %v560 = vunpack.c.l.b16 %v108
  %v561 = vunpack.c.l.b16 %v109
  %v562 = vunpack.c.l.b16 %v110
  %v563 = vunpack.c.l.b16 %v111
  %v564 = vunpack.c.l.b16 %v112
  %v565 = vunpack.c.l.b16 %v113
  %v566 = vunpack.c.l.b16 %v114
  %v567 = vunpack.c.l.b16 %v115
  %v568 = vunpack.c.l.b16 %v116
  %v569 = vunpack.c.l.b16 %v117
  %v570 = vunpack.c.l.b16 %v118
  %v571 = vunpack.c.l.b16 %v119
  %v572 = vunpack.c.l.b16 %v120
  %v573 = vunpack.c.l.b16 %v121
  %v574 = vunpack.c.l.b16 %v122
  %v575 = vunpack.c.l.b16 %v123
  %v576 = vunpack.c.l.b16 %v124
  %v577 = vunpack.c.l.b16 %v125
  %v578 = vunpack.c.l.b16 %v126
  %v579 = vunpack.c.l.b16 %v127
  %v580 = vunpack.c.l.b16 %v128
  %v581 = vunpack.c.l.b16 %v129
  %v582 = vunpack.c.l.b16 %v130
  %v583 = vunpack.c.l.b16 %v131
  %v584 = vunpack.c.l.b16 %v132
  %v585 = vunpack.c.l.b16 %v133
  %v586 = vunpack.c.l.b16 %v134
  %v587 = vunpack.c.l.b16 %v135
  %v588 = vunpack.c.l.b16 %v136
  %v589 = vunpack.c.l.b16 %v137
  %v590 = vunpack.c.l.b16 %v138
  %v591 = vunpack.c.l.b16 %v139
  %v592 = vunpack.c.l.b16 %v140
  %v593 = vunpack.c.l.b16 %v141
  %v594 = vunpack.c.l.b16 %v142
  %v595 = vunpack.c.l.b16 %v143
  %v596 = vunpack.c.l.b16 %v144
  %v597 = vunpack.c.l.b16 %v145
  %v598 = vunpack.c.l.b16 %v146
  %v599 = vunpack.c.l.b16 %v147
  %v600 = vunpack.c.l.b16 %v148
  %v601 = vunpack.c.l.b16 %v149
  %v602 = vunpack.c.l.b16 %v150
  %v603 = vpack.c.b16 %v540, %v539
  %v604 = vpack.c.b16 %v542, %v541
  %v605 = vpack.c.b16 %v544, %v543
  %v606 = vpack.c.b16 %v546, %v545
  %v607 = vpack.c.b16 %v548, %v547
  %v608 = vpack.c.b16 %v550, %v549
  %v609 = vpack.c.b16 %v552, %v551
  %v610 = vpack.c.b16 %v554, %v553
  %v611 = vpack.c.b16 %v556, %v555
  %v612 = vpack.c.b16 %v558, %v557
  %v613 = vpack.c.b16 %v560, %v559
  %v614 = vpack.c.b16 %v562, %v561
  %v615 = vpack.c.b16 %v564, %v563
  %v616 = vpack.c.b16 %v566, %v565
  %v617 = vpack.c.b16 %v568, %v567
  %v618 = vpack.c.b16 %v570, %v569
  %v619 = vpack.c.b16 %v572, %v571
  %v620 = vpack.c.b16 %v574, %v573
  %v621 = vpack.c.b16 %v576, %v575
  %v622 = vpack.c.b16 %v578, %v577
  %v623 = vpack.c.b16 %v580, %v579
  %v624 = vpack.c.b16 %v582, %v581
  %v625 = vpack.c.b16 %v584, %v583
  %v626 = vpack.c.b16 %v586, %v585
  %v627 = vpack.c.b16 %v588, %v587
  %v628 = vpack.c.b16 %v590, %v589
  %v629 = vpack.c.b16 %v592, %v591
  %v630 = vpack.c.b16 %v594, %v593
  %v631 = vpack.c.b16 %v596, %v595
  %v632 = vpack.c.b16 %v598, %v597
  %v633 = vpack.c.b16 %v600, %v599
  %v634 = vpack.c.b16 %v602, %v601
  %667 = vmatprep.subr.bf16.mxu0 0
  %668 = vmatpush1.bf16.msra.mxu0 %v603
  %669 = vmatprep.subr.bf16.mxu0 0
  %670 = vmatpush1.bf16.msra.mxu0 %v604
  %671 = vmatprep.subr.bf16.mxu0 0
  %672 = vmatpush1.bf16.msra.mxu0 %v605
  %673 = vmatprep.subr.bf16.mxu0 0
  %674 = vmatpush1.bf16.msra.mxu0 %v606
  %675 = vmatprep.subr.bf16.mxu0 0
  %676 = vmatpush1.bf16.msra.mxu0 %v607
  %677 = vmatprep.subr.bf16.mxu0 0
  %678 = vmatpush1.bf16.msra.mxu0 %v608
  %679 = vmatprep.subr.bf16.mxu0 0
  %680 = vmatpush1.bf16.msra.mxu0 %v609
  %681 = vmatprep.subr.bf16.mxu0 0
  %682 = vmatpush1.bf16.msra.mxu0 %v610
  %683 = vmatprep.subr.bf16.mxu0 0
  %684 = vmatpush1.bf16.msra.mxu0 %v611
  %685 = vmatprep.subr.bf16.mxu0 0
  %686 = vmatpush1.bf16.msra.mxu0 %v612
  %687 = vmatprep.subr.bf16.mxu0 0
  %688 = vmatpush1.bf16.msra.mxu0 %v613
  %689 = vmatprep.subr.bf16.mxu0 0
  %690 = vmatpush1.bf16.msra.mxu0 %v614
  %691 = vmatprep.subr.bf16.mxu0 0
  %692 = vmatpush1.bf16.msra.mxu0 %v615
  %693 = vmatprep.subr.bf16.mxu0 0
  %694 = vmatpush1.bf16.msra.mxu0 %v616
  %695 = vmatprep.subr.bf16.mxu0 0
  %696 = vmatpush1.bf16.msra.mxu0 %v617
  %697 = vmatprep.subr.bf16.mxu0 0
  %698 = vmatpush1.bf16.msra.mxu0 %v618
  %699 = vmatprep.mubr.bf16.mxu0 %v348
  %700 = vmatmul.mubr.bf16.gmra.mrb[0].mxu0 %v347
  %v701 = vpop.f32.mrb[0].mxu0
  %v702 = vadd.f32 %v154, %v701
  %v703 = vpop.f32.mrb[0].mxu0
  %v704 = vpop.f32.mrb[0].mxu0
  %v705 = vadd.f32 %v154, %v704
  %v706 = vpop.f32.mrb[0].mxu0
  %707 = vmatprep.mubr.bf16.mxu0 %v352
  %708 = vmatmul.mubr.bf16.gmra.mrb[0].mxu0 %v351
  %v709 = vpop.f32.mrb[0].mxu0
  %v710 = vadd.f32 %v154, %v709
  %v711 = vpop.f32.mrb[0].mxu0
  %v712 = vpop.f32.mrb[0].mxu0
  %v713 = vadd.f32 %v154, %v712
  %v714 = vpop.f32.mrb[0].mxu0
  %715 = vmatprep.mubr.bf16.mxu0 %v356
  %716 = vmatmul.mubr.bf16.gmra.mrb[0].mxu0 %v355
  %v717 = vpop.f32.mrb[0].mxu0
  %v718 = vadd.f32 %v154, %v717
  %v719 = vpop.f32.mrb[0].mxu0
  %v720 = vpop.f32.mrb[0].mxu0
  %v721 = vadd.f32 %v154, %v720
  %v722 = vpop.f32.mrb[0].mxu0
  %723 = vmatprep.mubr.bf16.mxu0 %v360
  %724 = vmatmul.mubr.bf16.gmra.mrb[0].mxu0 %v359
  %v725 = vpop.f32.mrb[0].mxu0
  %v726 = vadd.f32 %v154, %v725
  %v727 = vpop.f32.mrb[0].mxu0
  %v728 = vpop.f32.mrb[0].mxu0
  %v729 = vadd.f32 %v154, %v728
  %v730 = vpop.f32.mrb[0].mxu0
  %731 = vmatprep.mubr.bf16.mxu0 %v364
  %732 = vmatmul.mubr.bf16.gmra.mrb[0].mxu0 %v363
  %v733 = vpop.f32.mrb[0].mxu0
  %v734 = vadd.f32 %v154, %v733
  %v735 = vpop.f32.mrb[0].mxu0
  %v736 = vpop.f32.mrb[0].mxu0
  %v737 = vadd.f32 %v154, %v736
  %v738 = vpop.f32.mrb[0].mxu0
  %739 = vmatprep.mubr.bf16.mxu0 %v368
  %740 = vmatmul.mubr.bf16.gmra.mrb[0].mxu0 %v367
  %v741 = vpop.f32.mrb[0].mxu0
  %v742 = vadd.f32 %v154, %v741
  %v743 = vpop.f32.mrb[0].mxu0
  %v744 = vpop.f32.mrb[0].mxu0
  %v745 = vadd.f32 %v154, %v744
  %v746 = vpop.f32.mrb[0].mxu0
  %747 = vmatprep.mubr.bf16.mxu0 %v372
  %748 = vmatmul.mubr.bf16.gmra.mrb[0].mxu0 %v371
  %v749 = vpop.f32.mrb[0].mxu0
  %v750 = vadd.f32 %v154, %v749
  %v751 = vpop.f32.mrb[0].mxu0
  %v752 = vpop.f32.mrb[0].mxu0
  %v753 = vadd.f32 %v154, %v752
  %v754 = vpop.f32.mrb[0].mxu0
  %755 = vmatprep.mubr.bf16.mxu0 %v376
  %756 = vmatmul.mubr.bf16.gmra.mrb[0].mxu0 %v375
  %v757 = vpop.f32.mrb[0].mxu0
  %v758 = vadd.f32 %v154, %v757
  %v759 = vpop.f32.mrb[0].mxu0
  %v760 = vpop.f32.mrb[0].mxu0
  %v761 = vadd.f32 %v154, %v760
  %v762 = vpop.f32.mrb[0].mxu0
  %763 = vmatprep.mubr.bf16.mxu0 %v380
  %764 = vmatmul.mubr.bf16.gmra.mrb[0].mxu0 %v379
  %v765 = vpop.f32.mrb[0].mxu0
  %v766 = vadd.f32 %v154, %v765
  %v767 = vpop.f32.mrb[0].mxu0
  %v768 = vpop.f32.mrb[0].mxu0
  %v769 = vadd.f32 %v154, %v768
  %v770 = vpop.f32.mrb[0].mxu0
  %771 = vmatprep.mubr.bf16.mxu0 %v384
  %772 = vmatmul.mubr.bf16.gmra.mrb[0].mxu0 %v383
  %v773 = vpop.f32.mrb[0].mxu0
  %v774 = vadd.f32 %v154, %v773
  %v775 = vpop.f32.mrb[0].mxu0
  %v776 = vpop.f32.mrb[0].mxu0
  %v777 = vadd.f32 %v154, %v776
  %v778 = vpop.f32.mrb[0].mxu0
  %779 = vmatprep.mubr.bf16.mxu0 %v388
  %780 = vmatmul.mubr.bf16.gmra.mrb[0].mxu0 %v387
  %v781 = vpop.f32.mrb[0].mxu0
  %v782 = vadd.f32 %v154, %v781
  %v783 = vpop.f32.mrb[0].mxu0
  %v784 = vpop.f32.mrb[0].mxu0
  %v785 = vadd.f32 %v154, %v784
  %v786 = vpop.f32.mrb[0].mxu0
  %787 = vmatprep.mubr.bf16.mxu0 %v392
  %788 = vmatmul.mubr.bf16.gmra.mrb[0].mxu0 %v391
  %v789 = vpop.f32.mrb[0].mxu0
  %v790 = vadd.f32 %v154, %v789
  %v791 = vpop.f32.mrb[0].mxu0
  %v792 = vpop.f32.mrb[0].mxu0
  %v793 = vadd.f32 %v154, %v792
  %v794 = vpop.f32.mrb[0].mxu0
  %795 = vmatprep.mubr.bf16.mxu0 %v396
  %796 = vmatmul.mubr.bf16.gmra.mrb[0].mxu0 %v395
  %v797 = vpop.f32.mrb[0].mxu0
  %v798 = vadd.f32 %v154, %v797
  %v799 = vpop.f32.mrb[0].mxu0
  %v800 = vpop.f32.mrb[0].mxu0
  %v801 = vadd.f32 %v154, %v800
  %v802 = vpop.f32.mrb[0].mxu0
  %803 = vmatprep.mubr.bf16.mxu0 %v400
  %804 = vmatmul.mubr.bf16.gmra.mrb[0].mxu0 %v399
  %v805 = vpop.f32.mrb[0].mxu0
  %v806 = vadd.f32 %v154, %v805
  %v807 = vpop.f32.mrb[0].mxu0
  %v808 = vpop.f32.mrb[0].mxu0
  %v809 = vadd.f32 %v154, %v808
  %v810 = vpop.f32.mrb[0].mxu0
  %811 = vmatprep.mubr.bf16.mxu0 %v404
  %812 = vmatmul.mubr.bf16.gmra.mrb[0].mxu0 %v403
  %v813 = vpop.f32.mrb[0].mxu0
  %v814 = vadd.f32 %v154, %v813
  %v815 = vpop.f32.mrb[0].mxu0
  %v816 = vpop.f32.mrb[0].mxu0
  %v817 = vadd.f32 %v154, %v816
  %v818 = vpop.f32.mrb[0].mxu0
  %819 = vmatprep.mubr.bf16.mxu0 %v408
  %820 = vmatmul.mubr.bf16.gmra.mrb[0].mxu0 %v407
  %v821 = vpop.f32.mrb[0].mxu0
  %v822 = vadd.f32 %v154, %v821
  %v823 = vpop.f32.mrb[0].mxu0
  %v824 = vpop.f32.mrb[0].mxu0
  %v825 = vadd.f32 %v154, %v824
  %v826 = vpop.f32.mrb[0].mxu0
  %827 = vdwg.mxu0
  %828 = vmatprep.subr.bf16.mxu0 0
  %829 = vmatpush1.bf16.msra.mxu0 %v619
  %830 = vmatprep.subr.bf16.mxu0 0
  %831 = vmatpush1.bf16.msra.mxu0 %v620
  %832 = vmatprep.subr.bf16.mxu0 0
  %833 = vmatpush1.bf16.msra.mxu0 %v621
  %834 = vmatprep.subr.bf16.mxu0 0
  %835 = vmatpush1.bf16.msra.mxu0 %v622
  %836 = vmatprep.subr.bf16.mxu0 0
  %837 = vmatpush1.bf16.msra.mxu0 %v623
  %838 = vmatprep.subr.bf16.mxu0 0
  %839 = vmatpush1.bf16.msra.mxu0 %v624
  %840 = vmatprep.subr.bf16.mxu0 0
  %841 = vmatpush1.bf16.msra.mxu0 %v625
  %842 = vmatprep.subr.bf16.mxu0 0
  %843 = vmatpush1.bf16.msra.mxu0 %v626
  %844 = vmatprep.subr.bf16.mxu0 0
  %845 = vmatpush1.bf16.msra.mxu0 %v627
  %846 = vmatprep.subr.bf16.mxu0 0
  %847 = vmatpush1.bf16.msra.mxu0 %v628
  %848 = vmatprep.subr.bf16.mxu0 0
  %849 = vmatpush1.bf16.msra.mxu0 %v629
  %850 = vmatprep.subr.bf16.mxu0 0
  %851 = vmatpush1.bf16.msra.mxu0 %v630
  %852 = vmatprep.subr.bf16.mxu0 0
  %853 = vmatpush1.bf16.msra.mxu0 %v631
  %854 = vmatprep.subr.bf16.mxu0 0
  %855 = vmatpush1.bf16.msra.mxu0 %v632
  %856 = vmatprep.subr.bf16.mxu0 0
  %857 = vmatpush1.bf16.msra.mxu0 %v633
  %858 = vmatprep.subr.bf16.mxu0 0
  %859 = vmatpush1.bf16.msra.mxu0 %v634
  %860 = vmatprep.mubr.bf16.mxu0 %v350
  %861 = vmatmul.mubr.bf16.gmra.mrb[0].mxu0 %v349
  %v862 = vpop.f32.mrb[0].mxu0
  %v863 = vadd.f32 %v702, %v862
  %v864 = vpop.f32.mrb[0].mxu0
  %v865 = vpop.f32.mrb[0].mxu0
  %v866 = vadd.f32 %v705, %v865
  %v867 = vpop.f32.mrb[0].mxu0
  %868 = vmatprep.mubr.bf16.mxu0 %v354
  %869 = vmatmul.mubr.bf16.gmra.mrb[0].mxu0 %v353
  %v870 = vpop.f32.mrb[0].mxu0
  %v871 = vadd.f32 %v710, %v870
  %v872 = vpop.f32.mrb[0].mxu0
  %v873 = vpop.f32.mrb[0].mxu0
  %v874 = vadd.f32 %v713, %v873
  %v875 = vpop.f32.mrb[0].mxu0
  %876 = vmatprep.mubr.bf16.mxu0 %v358
  %877 = vmatmul.mubr.bf16.gmra.mrb[0].mxu0 %v357
  %v878 = vpop.f32.mrb[0].mxu0
  %v879 = vadd.f32 %v718, %v878
  %v880 = vpop.f32.mrb[0].mxu0
  %v881 = vpop.f32.mrb[0].mxu0
  %v882 = vadd.f32 %v721, %v881
  %v883 = vpop.f32.mrb[0].mxu0
  %884 = vmatprep.mubr.bf16.mxu0 %v362
  %885 = vmatmul.mubr.bf16.gmra.mrb[0].mxu0 %v361
  %v886 = vpop.f32.mrb[0].mxu0
  %v887 = vadd.f32 %v726, %v886
  %v888 = vpop.f32.mrb[0].mxu0
  %v889 = vpop.f32.mrb[0].mxu0
  %v890 = vadd.f32 %v729, %v889
  %v891 = vpop.f32.mrb[0].mxu0
  %892 = vmatprep.mubr.bf16.mxu0 %v366
  %893 = vmatmul.mubr.bf16.gmra.mrb[0].mxu0 %v365
  %v894 = vpop.f32.mrb[0].mxu0
  %v895 = vadd.f32 %v734, %v894
  %v896 = vpop.f32.mrb[0].mxu0
  %v897 = vpop.f32.mrb[0].mxu0
  %v898 = vadd.f32 %v737, %v897
  %v899 = vpop.f32.mrb[0].mxu0
  %900 = vmatprep.mubr.bf16.mxu0 %v370
  %901 = vmatmul.mubr.bf16.gmra.mrb[0].mxu0 %v369
  %v902 = vpop.f32.mrb[0].mxu0
  %v903 = vadd.f32 %v742, %v902
  %v904 = vpop.f32.mrb[0].mxu0
  %v905 = vpop.f32.mrb[0].mxu0
  %v906 = vadd.f32 %v745, %v905
  %v907 = vpop.f32.mrb[0].mxu0
  %908 = vmatprep.mubr.bf16.mxu0 %v374
  %909 = vmatmul.mubr.bf16.gmra.mrb[0].mxu0 %v373
  %v910 = vpop.f32.mrb[0].mxu0
  %v911 = vadd.f32 %v750, %v910
  %v912 = vpop.f32.mrb[0].mxu0
  %v913 = vpop.f32.mrb[0].mxu0
  %v914 = vadd.f32 %v753, %v913
  %v915 = vpop.f32.mrb[0].mxu0
  %916 = vmatprep.mubr.bf16.mxu0 %v378
  %917 = vmatmul.mubr.bf16.gmra.mrb[0].mxu0 %v377
  %v918 = vpop.f32.mrb[0].mxu0
  %v919 = vadd.f32 %v758, %v918
  %v920 = vpop.f32.mrb[0].mxu0
  %v921 = vpop.f32.mrb[0].mxu0
  %v922 = vadd.f32 %v761, %v921
  %v923 = vpop.f32.mrb[0].mxu0
  %924 = vmatprep.mubr.bf16.mxu0 %v382
  %925 = vmatmul.mubr.bf16.gmra.mrb[0].mxu0 %v381
  %v926 = vpop.f32.mrb[0].mxu0
  %v927 = vadd.f32 %v766, %v926
  %v928 = vpop.f32.mrb[0].mxu0
  %v929 = vpop.f32.mrb[0].mxu0
  %v930 = vadd.f32 %v769, %v929
  %v931 = vpop.f32.mrb[0].mxu0
  %932 = vmatprep.mubr.bf16.mxu0 %v386
  %933 = vmatmul.mubr.bf16.gmra.mrb[0].mxu0 %v385
  %v934 = vpop.f32.mrb[0].mxu0
  %v935 = vadd.f32 %v774, %v934
  %v936 = vpop.f32.mrb[0].mxu0
  %v937 = vpop.f32.mrb[0].mxu0
  %v938 = vadd.f32 %v777, %v937
  %v939 = vpop.f32.mrb[0].mxu0
  %940 = vmatprep.mubr.bf16.mxu0 %v390
  %941 = vmatmul.mubr.bf16.gmra.mrb[0].mxu0 %v389
  %v942 = vpop.f32.mrb[0].mxu0
  %v943 = vadd.f32 %v782, %v942
  %v944 = vpop.f32.mrb[0].mxu0
  %v945 = vpop.f32.mrb[0].mxu0
  %v946 = vadd.f32 %v785, %v945
  %v947 = vpop.f32.mrb[0].mxu0
  %948 = vmatprep.mubr.bf16.mxu0 %v394
  %949 = vmatmul.mubr.bf16.gmra.mrb[0].mxu0 %v393
  %v950 = vpop.f32.mrb[0].mxu0
  %v951 = vadd.f32 %v790, %v950
  %v952 = vpop.f32.mrb[0].mxu0
  %v953 = vpop.f32.mrb[0].mxu0
  %v954 = vadd.f32 %v793, %v953
  %v955 = vpop.f32.mrb[0].mxu0
  %956 = vmatprep.mubr.bf16.mxu0 %v398
  %957 = vmatmul.mubr.bf16.gmra.mrb[0].mxu0 %v397
  %v958 = vpop.f32.mrb[0].mxu0
  %v959 = vadd.f32 %v798, %v958
  %v960 = vpop.f32.mrb[0].mxu0
  %v961 = vpop.f32.mrb[0].mxu0
  %v962 = vadd.f32 %v801, %v961
  %v963 = vpop.f32.mrb[0].mxu0
  %964 = vmatprep.mubr.bf16.mxu0 %v402
  %965 = vmatmul.mubr.bf16.gmra.mrb[0].mxu0 %v401
  %v966 = vpop.f32.mrb[0].mxu0
  %v967 = vadd.f32 %v806, %v966
  %v968 = vpop.f32.mrb[0].mxu0
  %v969 = vpop.f32.mrb[0].mxu0
  %v970 = vadd.f32 %v809, %v969
  %v971 = vpop.f32.mrb[0].mxu0
  %972 = vmatprep.mubr.bf16.mxu0 %v406
  %973 = vmatmul.mubr.bf16.gmra.mrb[0].mxu0 %v405
  %v974 = vpop.f32.mrb[0].mxu0
  %v975 = vadd.f32 %v814, %v974
  %v976 = vpop.f32.mrb[0].mxu0
  %v977 = vpop.f32.mrb[0].mxu0
  %v978 = vadd.f32 %v817, %v977
  %v979 = vpop.f32.mrb[0].mxu0
  %980 = vmatprep.mubr.bf16.mxu0 %v410
  %981 = vmatmul.mubr.bf16.gmra.mrb[0].mxu0 %v409
  %v982 = vpop.f32.mrb[0].mxu0
  %v983 = vadd.f32 %v822, %v982
  %v984 = vpop.f32.mrb[0].mxu0
  %v985 = vpop.f32.mrb[0].mxu0
  %v986 = vadd.f32 %v825, %v985
  %v987 = vpop.f32.mrb[0].mxu0
  %988 = vdwg.mxu0
  %989 = vadd.xlane.f32.xlu0 %v863
  %v990 = vpop.xlane.xlu0 %989
  %991 = vadd.xlane.f32.xlu0 %v866
  %v992 = vpop.xlane.xlu0 %991
  %993 = vadd.xlane.f32.xlu0 %v871
  %v994 = vpop.xlane.xlu0 %993
  %995 = vadd.xlane.f32.xlu0 %v874
  %v996 = vpop.xlane.xlu0 %995
  %997 = vadd.xlane.f32.xlu0 %v879
  %v998 = vpop.xlane.xlu0 %997
  %999 = vadd.xlane.f32.xlu0 %v882
  %v1000 = vpop.xlane.xlu0 %999
  %1001 = vadd.xlane.f32.xlu0 %v887
  %v1002 = vpop.xlane.xlu0 %1001
  %1003 = vadd.xlane.f32.xlu0 %v890
  %v1004 = vpop.xlane.xlu0 %1003
  %1005 = vadd.xlane.f32.xlu0 %v895
  %v1006 = vpop.xlane.xlu0 %1005
  %1007 = vadd.xlane.f32.xlu0 %v898
  %v1008 = vpop.xlane.xlu0 %1007
  %1009 = vadd.xlane.f32.xlu0 %v903
  %v1010 = vpop.xlane.xlu0 %1009
  %1011 = vadd.xlane.f32.xlu0 %v906
  %v1012 = vpop.xlane.xlu0 %1011
  %1013 = vadd.xlane.f32.xlu0 %v911
  %v1014 = vpop.xlane.xlu0 %1013
  %1015 = vadd.xlane.f32.xlu0 %v914
  %v1016 = vpop.xlane.xlu0 %1015
  %1017 = vadd.xlane.f32.xlu0 %v919
  %v1018 = vpop.xlane.xlu0 %1017
  %1019 = vadd.xlane.f32.xlu0 %v922
  %v1020 = vpop.xlane.xlu0 %1019
  %1021 = vadd.xlane.f32.xlu0 %v927
  %v1022 = vpop.xlane.xlu0 %1021
  %1023 = vadd.xlane.f32.xlu0 %v930
  %v1024 = vpop.xlane.xlu0 %1023
  %1025 = vadd.xlane.f32.xlu0 %v935
  %v1026 = vpop.xlane.xlu0 %1025
  %1027 = vadd.xlane.f32.xlu0 %v938
  %v1028 = vpop.xlane.xlu0 %1027
  %1029 = vadd.xlane.f32.xlu0 %v943
  %v1030 = vpop.xlane.xlu0 %1029
  %1031 = vadd.xlane.f32.xlu0 %v946
  %v1032 = vpop.xlane.xlu0 %1031
  %1033 = vadd.xlane.f32.xlu0 %v951
  %v1034 = vpop.xlane.xlu0 %1033
  %1035 = vadd.xlane.f32.xlu0 %v954
  %v1036 = vpop.xlane.xlu0 %1035
  %1037 = vadd.xlane.f32.xlu0 %v959
  %v1038 = vpop.xlane.xlu0 %1037
  %1039 = vadd.xlane.f32.xlu0 %v962
  %v1040 = vpop.xlane.xlu0 %1039
  %1041 = vadd.xlane.f32.xlu0 %v967
  %v1042 = vpop.xlane.xlu0 %1041
  %1043 = vadd.xlane.f32.xlu0 %v970
  %v1044 = vpop.xlane.xlu0 %1043
  %1045 = vadd.xlane.f32.xlu0 %v975
  %v1046 = vpop.xlane.xlu0 %1045
  %1047 = vadd.xlane.f32.xlu0 %v978
  %v1048 = vpop.xlane.xlu0 %1047
  %1049 = vadd.xlane.f32.xlu0 %v983
  %v1050 = vpop.xlane.xlu0 %1049
  %1051 = vadd.xlane.f32.xlu0 %v986
  %v1052 = vpop.xlane.xlu0 %1051
  %v1053 = vrcp.pop 128.0
  %v1054 = vmul.f32 %v990, %v1053
  %v1055 = vmul.f32 %v992, %v1053
  %v1056 = vmul.f32 %v994, %v1053
  %v1057 = vmul.f32 %v996, %v1053
  %v1058 = vmul.f32 %v998, %v1053
  %v1059 = vmul.f32 %v1000, %v1053
  %v1060 = vmul.f32 %v1002, %v1053
  %v1061 = vmul.f32 %v1004, %v1053
  %v1062 = vmul.f32 %v1006, %v1053
  %v1063 = vmul.f32 %v1008, %v1053
  %v1064 = vmul.f32 %v1010, %v1053
  %v1065 = vmul.f32 %v1012, %v1053
  %v1066 = vmul.f32 %v1014, %v1053
  %v1067 = vmul.f32 %v1016, %v1053
  %v1068 = vmul.f32 %v1018, %v1053
  %v1069 = vmul.f32 %v1020, %v1053
  %v1070 = vmul.f32 %v1022, %v1053
  %v1071 = vmul.f32 %v1024, %v1053
  %v1072 = vmul.f32 %v1026, %v1053
  %v1073 = vmul.f32 %v1028, %v1053
  %v1074 = vmul.f32 %v1030, %v1053
  %v1075 = vmul.f32 %v1032, %v1053
  %v1076 = vmul.f32 %v1034, %v1053
  %v1077 = vmul.f32 %v1036, %v1053
  %v1078 = vmul.f32 %v1038, %v1053
  %v1079 = vmul.f32 %v1040, %v1053
  %v1080 = vmul.f32 %v1042, %v1053
  %v1081 = vmul.f32 %v1044, %v1053
  %v1082 = vmul.f32 %v1046, %v1053
  %v1083 = vmul.f32 %v1048, %v1053
  %v1084 = vmul.f32 %v1050, %v1053
  %v1085 = vmul.f32 %v1052, %v1053
  %v1086 = vsub.f32 %v863, %v1054
  %v1087 = vsub.f32 %v866, %v1055
  %v1088 = vsub.f32 %v871, %v1056
  %v1089 = vsub.f32 %v874, %v1057
  %v1090 = vsub.f32 %v879, %v1058
  %v1091 = vsub.f32 %v882, %v1059
  %v1092 = vsub.f32 %v887, %v1060
  %v1093 = vsub.f32 %v890, %v1061
  %v1094 = vsub.f32 %v895, %v1062
  %v1095 = vsub.f32 %v898, %v1063
  %v1096 = vsub.f32 %v903, %v1064
  %v1097 = vsub.f32 %v906, %v1065
  %v1098 = vsub.f32 %v911, %v1066
  %v1099 = vsub.f32 %v914, %v1067
  %v1100 = vsub.f32 %v919, %v1068
  %v1101 = vsub.f32 %v922, %v1069
  %v1102 = vsub.f32 %v927, %v1070
  %v1103 = vsub.f32 %v930, %v1071
  %v1104 = vsub.f32 %v935, %v1072
  %v1105 = vsub.f32 %v938, %v1073
  %v1106 = vsub.f32 %v943, %v1074
  %v1107 = vsub.f32 %v946, %v1075
  %v1108 = vsub.f32 %v951, %v1076
  %v1109 = vsub.f32 %v954, %v1077
  %v1110 = vsub.f32 %v959, %v1078
  %v1111 = vsub.f32 %v962, %v1079
  %v1112 = vsub.f32 %v967, %v1080
  %v1113 = vsub.f32 %v970, %v1081
  %v1114 = vsub.f32 %v975, %v1082
  %v1115 = vsub.f32 %v978, %v1083
  %v1116 = vsub.f32 %v983, %v1084
  %v1117 = vsub.f32 %v986, %v1085
  %v1118 = vmul.f32 %v1086, %v1086
  %v1119 = vmul.f32 %v1087, %v1087
  %v1120 = vmul.f32 %v1088, %v1088
  %v1121 = vmul.f32 %v1089, %v1089
  %v1122 = vmul.f32 %v1090, %v1090
  %v1123 = vmul.f32 %v1091, %v1091
  %v1124 = vmul.f32 %v1092, %v1092
  %v1125 = vmul.f32 %v1093, %v1093
  %v1126 = vmul.f32 %v1094, %v1094
  %v1127 = vmul.f32 %v1095, %v1095
  %v1128 = vmul.f32 %v1096, %v1096
  %v1129 = vmul.f32 %v1097, %v1097
  %v1130 = vmul.f32 %v1098, %v1098
  %v1131 = vmul.f32 %v1099, %v1099
  %v1132 = vmul.f32 %v1100, %v1100
  %v1133 = vmul.f32 %v1101, %v1101
  %v1134 = vmul.f32 %v1102, %v1102
  %v1135 = vmul.f32 %v1103, %v1103
  %v1136 = vmul.f32 %v1104, %v1104
  %v1137 = vmul.f32 %v1105, %v1105
  %v1138 = vmul.f32 %v1106, %v1106
  %v1139 = vmul.f32 %v1107, %v1107
  %v1140 = vmul.f32 %v1108, %v1108
  %v1141 = vmul.f32 %v1109, %v1109
  %v1142 = vmul.f32 %v1110, %v1110
  %v1143 = vmul.f32 %v1111, %v1111
  %v1144 = vmul.f32 %v1112, %v1112
  %v1145 = vmul.f32 %v1113, %v1113
  %v1146 = vmul.f32 %v1114, %v1114
  %v1147 = vmul.f32 %v1115, %v1115
  %v1148 = vmul.f32 %v1116, %v1116
  %v1149 = vmul.f32 %v1117, %v1117
  %1150 = vadd.xlane.f32.xlu0 %v1118
  %v1151 = vpop.xlane.xlu0 %1150
  %1152 = vadd.xlane.f32.xlu0 %v1119
  %v1153 = vpop.xlane.xlu0 %1152
  %1154 = vadd.xlane.f32.xlu0 %v1120
  %v1155 = vpop.xlane.xlu0 %1154
  %1156 = vadd.xlane.f32.xlu0 %v1121
  %v1157 = vpop.xlane.xlu0 %1156
  %1158 = vadd.xlane.f32.xlu0 %v1122
  %v1159 = vpop.xlane.xlu0 %1158
  %1160 = vadd.xlane.f32.xlu0 %v1123
  %v1161 = vpop.xlane.xlu0 %1160
  %1162 = vadd.xlane.f32.xlu0 %v1124
  %v1163 = vpop.xlane.xlu0 %1162
  %1164 = vadd.xlane.f32.xlu0 %v1125
  %v1165 = vpop.xlane.xlu0 %1164
  %1166 = vadd.xlane.f32.xlu0 %v1126
  %v1167 = vpop.xlane.xlu0 %1166
  %1168 = vadd.xlane.f32.xlu0 %v1127
  %v1169 = vpop.xlane.xlu0 %1168
  %1170 = vadd.xlane.f32.xlu0 %v1128
  %v1171 = vpop.xlane.xlu0 %1170
  %1172 = vadd.xlane.f32.xlu0 %v1129
  %v1173 = vpop.xlane.xlu0 %1172
  %1174 = vadd.xlane.f32.xlu0 %v1130
  %v1175 = vpop.xlane.xlu0 %1174
  %1176 = vadd.xlane.f32.xlu0 %v1131
  %v1177 = vpop.xlane.xlu0 %1176
  %1178 = vadd.xlane.f32.xlu0 %v1132
  %v1179 = vpop.xlane.xlu0 %1178
  %1180 = vadd.xlane.f32.xlu0 %v1133
  %v1181 = vpop.xlane.xlu0 %1180
  %1182 = vadd.xlane.f32.xlu0 %v1134
  %v1183 = vpop.xlane.xlu0 %1182
  %1184 = vadd.xlane.f32.xlu0 %v1135
  %v1185 = vpop.xlane.xlu0 %1184
  %1186 = vadd.xlane.f32.xlu0 %v1136
  %v1187 = vpop.xlane.xlu0 %1186
  %1188 = vadd.xlane.f32.xlu0 %v1137
  %v1189 = vpop.xlane.xlu0 %1188
  %1190 = vadd.xlane.f32.xlu0 %v1138
  %v1191 = vpop.xlane.xlu0 %1190
  %1192 = vadd.xlane.f32.xlu0 %v1139
  %v1193 = vpop.xlane.xlu0 %1192
  %1194 = vadd.xlane.f32.xlu0 %v1140
  %v1195 = vpop.xlane.xlu0 %1194
  %1196 = vadd.xlane.f32.xlu0 %v1141
  %v1197 = vpop.xlane.xlu0 %1196
  %1198 = vadd.xlane.f32.xlu0 %v1142
  %v1199 = vpop.xlane.xlu0 %1198
  %1200 = vadd.xlane.f32.xlu0 %v1143
  %v1201 = vpop.xlane.xlu0 %1200
  %1202 = vadd.xlane.f32.xlu0 %v1144
  %v1203 = vpop.xlane.xlu0 %1202
  %1204 = vadd.xlane.f32.xlu0 %v1145
  %v1205 = vpop.xlane.xlu0 %1204
  %1206 = vadd.xlane.f32.xlu0 %v1146
  %v1207 = vpop.xlane.xlu0 %1206
  %1208 = vadd.xlane.f32.xlu0 %v1147
  %v1209 = vpop.xlane.xlu0 %1208
  %1210 = vadd.xlane.f32.xlu0 %v1148
  %v1211 = vpop.xlane.xlu0 %1210
  %1212 = vadd.xlane.f32.xlu0 %v1149
  %v1213 = vpop.xlane.xlu0 %1212
  %v1214 = vmul.f32 %v1151, %v1053
  %v1215 = vmul.f32 %v1153, %v1053
  %v1216 = vmul.f32 %v1155, %v1053
  %v1217 = vmul.f32 %v1157, %v1053
  %v1218 = vmul.f32 %v1159, %v1053
  %v1219 = vmul.f32 %v1161, %v1053
  %v1220 = vmul.f32 %v1163, %v1053
  %v1221 = vmul.f32 %v1165, %v1053
  %v1222 = vmul.f32 %v1167, %v1053
  %v1223 = vmul.f32 %v1169, %v1053
  %v1224 = vmul.f32 %v1171, %v1053
  %v1225 = vmul.f32 %v1173, %v1053
  %v1226 = vmul.f32 %v1175, %v1053
  %v1227 = vmul.f32 %v1177, %v1053
  %v1228 = vmul.f32 %v1179, %v1053
  %v1229 = vmul.f32 %v1181, %v1053
  %v1230 = vmul.f32 %v1183, %v1053
  %v1231 = vmul.f32 %v1185, %v1053
  %v1232 = vmul.f32 %v1187, %v1053
  %v1233 = vmul.f32 %v1189, %v1053
  %v1234 = vmul.f32 %v1191, %v1053
  %v1235 = vmul.f32 %v1193, %v1053
  %v1236 = vmul.f32 %v1195, %v1053
  %v1237 = vmul.f32 %v1197, %v1053
  %v1238 = vmul.f32 %v1199, %v1053
  %v1239 = vmul.f32 %v1201, %v1053
  %v1240 = vmul.f32 %v1203, %v1053
  %v1241 = vmul.f32 %v1205, %v1053
  %v1242 = vmul.f32 %v1207, %v1053
  %v1243 = vmul.f32 %v1209, %v1053
  %v1244 = vmul.f32 %v1211, %v1053
  %v1245 = vmul.f32 %v1213, %v1053
  %v1246 = vadd.f32 %v1214, 1e-05
  %v1247 = vadd.f32 %v1215, 1e-05
  %v1248 = vadd.f32 %v1216, 1e-05
  %v1249 = vadd.f32 %v1217, 1e-05
  %v1250 = vadd.f32 %v1218, 1e-05
  %v1251 = vadd.f32 %v1219, 1e-05
  %v1252 = vadd.f32 %v1220, 1e-05
  %v1253 = vadd.f32 %v1221, 1e-05
  %v1254 = vadd.f32 %v1222, 1e-05
  %v1255 = vadd.f32 %v1223, 1e-05
  %v1256 = vadd.f32 %v1224, 1e-05
  %v1257 = vadd.f32 %v1225, 1e-05
  %v1258 = vadd.f32 %v1226, 1e-05
  %v1259 = vadd.f32 %v1227, 1e-05
  %v1260 = vadd.f32 %v1228, 1e-05
  %v1261 = vadd.f32 %v1229, 1e-05
  %v1262 = vadd.f32 %v1230, 1e-05
  %v1263 = vadd.f32 %v1231, 1e-05
  %v1264 = vadd.f32 %v1232, 1e-05
  %v1265 = vadd.f32 %v1233, 1e-05
  %v1266 = vadd.f32 %v1234, 1e-05
  %v1267 = vadd.f32 %v1235, 1e-05
  %v1268 = vadd.f32 %v1236, 1e-05
  %v1269 = vadd.f32 %v1237, 1e-05
  %v1270 = vadd.f32 %v1238, 1e-05
  %v1271 = vadd.f32 %v1239, 1e-05
  %v1272 = vadd.f32 %v1240, 1e-05
  %v1273 = vadd.f32 %v1241, 1e-05
  %v1274 = vadd.f32 %v1242, 1e-05
  %v1275 = vadd.f32 %v1243, 1e-05
  %v1276 = vadd.f32 %v1244, 1e-05
  %v1277 = vadd.f32 %v1245, 1e-05
  %v1278 = vrsqrt.pop %v1246
  %v1279 = vrsqrt.pop %v1247
  %v1280 = vrsqrt.pop %v1248
  %v1281 = vrsqrt.pop %v1249
  %v1282 = vrsqrt.pop %v1250
  %v1283 = vrsqrt.pop %v1251
  %v1284 = vrsqrt.pop %v1252
  %v1285 = vrsqrt.pop %v1253
  %v1286 = vrsqrt.pop %v1254
  %v1287 = vrsqrt.pop %v1255
  %v1288 = vrsqrt.pop %v1256
  %v1289 = vrsqrt.pop %v1257
  %v1290 = vrsqrt.pop %v1258
  %v1291 = vrsqrt.pop %v1259
  %v1292 = vrsqrt.pop %v1260
  %v1293 = vrsqrt.pop %v1261
  %v1294 = vrsqrt.pop %v1262
  %v1295 = vrsqrt.pop %v1263
  %v1296 = vrsqrt.pop %v1264
  %v1297 = vrsqrt.pop %v1265
  %v1298 = vrsqrt.pop %v1266
  %v1299 = vrsqrt.pop %v1267
  %v1300 = vrsqrt.pop %v1268
  %v1301 = vrsqrt.pop %v1269
  %v1302 = vrsqrt.pop %v1270
  %v1303 = vrsqrt.pop %v1271
  %v1304 = vrsqrt.pop %v1272
  %v1305 = vrsqrt.pop %v1273
  %v1306 = vrsqrt.pop %v1274
  %v1307 = vrsqrt.pop %v1275
  %v1308 = vrsqrt.pop %v1276
  %v1309 = vrsqrt.pop %v1277
  %v1310 = vmul.f32 %v1086, %v1278
  %v1311 = vmul.f32 %v1087, %v1279
  %v1312 = vmul.f32 %v1088, %v1280
  %v1313 = vmul.f32 %v1089, %v1281
  %v1314 = vmul.f32 %v1090, %v1282
  %v1315 = vmul.f32 %v1091, %v1283
  %v1316 = vmul.f32 %v1092, %v1284
  %v1317 = vmul.f32 %v1093, %v1285
  %v1318 = vmul.f32 %v1094, %v1286
  %v1319 = vmul.f32 %v1095, %v1287
  %v1320 = vmul.f32 %v1096, %v1288
  %v1321 = vmul.f32 %v1097, %v1289
  %v1322 = vmul.f32 %v1098, %v1290
  %v1323 = vmul.f32 %v1099, %v1291
  %v1324 = vmul.f32 %v1100, %v1292
  %v1325 = vmul.f32 %v1101, %v1293
  %v1326 = vmul.f32 %v1102, %v1294
  %v1327 = vmul.f32 %v1103, %v1295
  %v1328 = vmul.f32 %v1104, %v1296
  %v1329 = vmul.f32 %v1105, %v1297
  %v1330 = vmul.f32 %v1106, %v1298
  %v1331 = vmul.f32 %v1107, %v1299
  %v1332 = vmul.f32 %v1108, %v1300
  %v1333 = vmul.f32 %v1109, %v1301
  %v1334 = vmul.f32 %v1110, %v1302
  %v1335 = vmul.f32 %v1111, %v1303
  %v1336 = vmul.f32 %v1112, %v1304
  %v1337 = vmul.f32 %v1113, %v1305
  %v1338 = vmul.f32 %v1114, %v1306
  %v1339 = vmul.f32 %v1115, %v1307
  %v1340 = vmul.f32 %v1116, %v1308
  %v1341 = vmul.f32 %v1117, %v1309
  %v1342 = vlaneseq
  %v1343 = vshrl.u32 %v1342, 7
  %v1344 = vsub.s32 1, %v1343
  %v1345 = vrot.slane %v21, %v1344
  %v1346 = vmul.f32 %v1310, %v1345
  %v1347 = vmul.f32 %v1311, %v1345
  %v1348 = vmul.f32 %v1312, %v1345
  %v1349 = vmul.f32 %v1313, %v1345
  %v1350 = vmul.f32 %v1314, %v1345
  %v1351 = vmul.f32 %v1315, %v1345
  %v1352 = vmul.f32 %v1316, %v1345
  %v1353 = vmul.f32 %v1317, %v1345
  %v1354 = vmul.f32 %v1318, %v1345
  %v1355 = vmul.f32 %v1319, %v1345
  %v1356 = vmul.f32 %v1320, %v1345
  %v1357 = vmul.f32 %v1321, %v1345
  %v1358 = vmul.f32 %v1322, %v1345
  %v1359 = vmul.f32 %v1323, %v1345
  %v1360 = vmul.f32 %v1324, %v1345
  %v1361 = vmul.f32 %v1325, %v1345
  %v1362 = vmul.f32 %v1326, %v1345
  %v1363 = vmul.f32 %v1327, %v1345
  %v1364 = vmul.f32 %v1328, %v1345
  %v1365 = vmul.f32 %v1329, %v1345
  %v1366 = vmul.f32 %v1330, %v1345
  %v1367 = vmul.f32 %v1331, %v1345
  %v1368 = vmul.f32 %v1332, %v1345
  %v1369 = vmul.f32 %v1333, %v1345
  %v1370 = vmul.f32 %v1334, %v1345
  %v1371 = vmul.f32 %v1335, %v1345
  %v1372 = vmul.f32 %v1336, %v1345
  %v1373 = vmul.f32 %v1337, %v1345
  %v1374 = vmul.f32 %v1338, %v1345
  %v1375 = vmul.f32 %v1339, %v1345
  %v1376 = vmul.f32 %v1340, %v1345
  %v1377 = vmul.f32 %v1341, %v1345
  %v1378 = vlaneseq
  %v1379 = vshrl.u32 %v1378, 7
  %v1380 = vsub.s32 2, %v1379
  %v1381 = vrot.slane %v21, %v1380
  %v1382 = vadd.f32 %v1346, %v1381
  %v1383 = vadd.f32 %v1347, %v1381
  %v1384 = vadd.f32 %v1348, %v1381
  %v1385 = vadd.f32 %v1349, %v1381
  %v1386 = vadd.f32 %v1350, %v1381
  %v1387 = vadd.f32 %v1351, %v1381
  %v1388 = vadd.f32 %v1352, %v1381
  %v1389 = vadd.f32 %v1353, %v1381
  %v1390 = vadd.f32 %v1354, %v1381
  %v1391 = vadd.f32 %v1355, %v1381
  %v1392 = vadd.f32 %v1356, %v1381
  %v1393 = vadd.f32 %v1357, %v1381
  %v1394 = vadd.f32 %v1358, %v1381
  %v1395 = vadd.f32 %v1359, %v1381
  %v1396 = vadd.f32 %v1360, %v1381
  %v1397 = vadd.f32 %v1361, %v1381
  %v1398 = vadd.f32 %v1362, %v1381
  %v1399 = vadd.f32 %v1363, %v1381
  %v1400 = vadd.f32 %v1364, %v1381
  %v1401 = vadd.f32 %v1365, %v1381
  %v1402 = vadd.f32 %v1366, %v1381
  %v1403 = vadd.f32 %v1367, %v1381
  %v1404 = vadd.f32 %v1368, %v1381
  %v1405 = vadd.f32 %v1369, %v1381
  %v1406 = vadd.f32 %v1370, %v1381
  %v1407 = vadd.f32 %v1371, %v1381
  %v1408 = vadd.f32 %v1372, %v1381
  %v1409 = vadd.f32 %v1373, %v1381
  %v1410 = vadd.f32 %v1374, %v1381
  %v1411 = vadd.f32 %v1375, %v1381
  %v1412 = vadd.f32 %v1376, %v1381
  %v1413 = vadd.f32 %v1377, %v1381
  %v1414 = vmax.f32 %v1382, 0.0
  %v1415 = vmax.f32 %v1383, 0.0
  %v1416 = vmax.f32 %v1384, 0.0
  %v1417 = vmax.f32 %v1385, 0.0
  %v1418 = vmax.f32 %v1386, 0.0
  %v1419 = vmax.f32 %v1387, 0.0
  %v1420 = vmax.f32 %v1388, 0.0
  %v1421 = vmax.f32 %v1389, 0.0
  %v1422 = vmax.f32 %v1390, 0.0
  %v1423 = vmax.f32 %v1391, 0.0
  %v1424 = vmax.f32 %v1392, 0.0
  %v1425 = vmax.f32 %v1393, 0.0
  %v1426 = vmax.f32 %v1394, 0.0
  %v1427 = vmax.f32 %v1395, 0.0
  %v1428 = vmax.f32 %v1396, 0.0
  %v1429 = vmax.f32 %v1397, 0.0
  %v1430 = vmax.f32 %v1398, 0.0
  %v1431 = vmax.f32 %v1399, 0.0
  %v1432 = vmax.f32 %v1400, 0.0
  %v1433 = vmax.f32 %v1401, 0.0
  %v1434 = vmax.f32 %v1402, 0.0
  %v1435 = vmax.f32 %v1403, 0.0
  %v1436 = vmax.f32 %v1404, 0.0
  %v1437 = vmax.f32 %v1405, 0.0
  %v1438 = vmax.f32 %v1406, 0.0
  %v1439 = vmax.f32 %v1407, 0.0
  %v1440 = vmax.f32 %v1408, 0.0
  %v1441 = vmax.f32 %v1409, 0.0
  %v1442 = vmax.f32 %v1410, 0.0
  %v1443 = vmax.f32 %v1411, 0.0
  %v1444 = vmax.f32 %v1412, 0.0
  %v1445 = vmax.f32 %v1413, 0.0
  %v1446 = vpack.c.bf16 %v1415, %v1414
  %v1447 = vpack.c.bf16 %v1417, %v1416
  %v1448 = vpack.c.bf16 %v1419, %v1418
  %v1449 = vpack.c.bf16 %v1421, %v1420
  %v1450 = vpack.c.bf16 %v1423, %v1422
  %v1451 = vpack.c.bf16 %v1425, %v1424
  %v1452 = vpack.c.bf16 %v1427, %v1426
  %v1453 = vpack.c.bf16 %v1429, %v1428
  %v1454 = vpack.c.bf16 %v1431, %v1430
  %v1455 = vpack.c.bf16 %v1433, %v1432
  %v1456 = vpack.c.bf16 %v1435, %v1434
  %v1457 = vpack.c.bf16 %v1437, %v1436
  %v1458 = vpack.c.bf16 %v1439, %v1438
  %v1459 = vpack.c.bf16 %v1441, %v1440
  %v1460 = vpack.c.bf16 %v1443, %v1442
  %v1461 = vpack.c.bf16 %v1445, %v1444
  %v1462 = vld [vmem:[%s2] sm:$0xf]
  %v1463 = vld [vmem:[%s2 + $0x4] sm:$0xf]
  %v1464 = vld [vmem:[%s2 + $0x8] sm:$0xf]
  %v1465 = vld [vmem:[%s2 + $0xc] sm:$0xf]
  %v1466 = vld [vmem:[%s2 + $0x10] sm:$0xf]
  %v1467 = vld [vmem:[%s2 + $0x14] sm:$0xf]
  %v1468 = vld [vmem:[%s2 + $0x18] sm:$0xf]
  %v1469 = vld [vmem:[%s2 + $0x1c] sm:$0xf]
  %v1470 = vld [vmem:[%s2 + $0x20] sm:$0xf]
  %v1471 = vld [vmem:[%s2 + $0x24] sm:$0xf]
  %v1472 = vld [vmem:[%s2 + $0x28] sm:$0xf]
  %v1473 = vld [vmem:[%s2 + $0x2c] sm:$0xf]
  %v1474 = vld [vmem:[%s2 + $0x30] sm:$0xf]
  %v1475 = vld [vmem:[%s2 + $0x34] sm:$0xf]
  %v1476 = vld [vmem:[%s2 + $0x38] sm:$0xf]
  %v1477 = vld [vmem:[%s2 + $0x3c] sm:$0xf]
  %v1478 = vlaneseq
  %v1479 = vshrl.u32 %v1478, 7
  %v1480 = vsub.s32 3, %v1479
  %v1481 = vrot.slane %v21, %v1480
  %v1498 = vunpack.c.l.b16 %v1462
  %v1499 = vunpack.c.l.b16 %v1463
  %v1500 = vunpack.c.l.b16 %v1464
  %v1501 = vunpack.c.l.b16 %v1465
  %v1502 = vunpack.c.l.b16 %v1466
  %v1503 = vunpack.c.l.b16 %v1467
  %v1504 = vunpack.c.l.b16 %v1468
  %v1505 = vunpack.c.l.b16 %v1469
  %v1506 = vunpack.c.l.b16 %v1470
  %v1507 = vunpack.c.l.b16 %v1471
  %v1508 = vunpack.c.l.b16 %v1472
  %v1509 = vunpack.c.l.b16 %v1473
  %v1510 = vunpack.c.l.b16 %v1474
  %v1511 = vunpack.c.l.b16 %v1475
  %v1512 = vunpack.c.l.b16 %v1476
  %v1513 = vunpack.c.l.b16 %v1477
  %v1514 = vpack.c.b16 %v1499, %v1498
  %v1515 = vpack.c.b16 %v1501, %v1500
  %v1516 = vpack.c.b16 %v1503, %v1502
  %v1517 = vpack.c.b16 %v1505, %v1504
  %v1518 = vpack.c.b16 %v1507, %v1506
  %v1519 = vpack.c.b16 %v1509, %v1508
  %v1520 = vpack.c.b16 %v1511, %v1510
  %v1521 = vpack.c.b16 %v1513, %v1512
  %1530 = vmatprep.subr.bf16.mxu0 0
  %1531 = vmatpush1.bf16.msra.mxu0 %v1514
  %1532 = vmatprep.subr.bf16.mxu0 0
  %1533 = vmatpush1.bf16.msra.mxu0 %v1515
  %1534 = vmatprep.subr.bf16.mxu0 0
  %1535 = vmatpush1.bf16.msra.mxu0 %v1516
  %1536 = vmatprep.subr.bf16.mxu0 0
  %1537 = vmatpush1.bf16.msra.mxu0 %v1517
  %1538 = vmatprep.subr.bf16.mxu0 0
  %1539 = vmatpush1.bf16.msra.mxu0 %v1518
  %1540 = vmatprep.subr.bf16.mxu0 0
  %1541 = vmatpush1.bf16.msra.mxu0 %v1519
  %1542 = vmatprep.subr.bf16.mxu0 0
  %1543 = vmatpush1.bf16.msra.mxu0 %v1520
  %1544 = vmatprep.subr.bf16.mxu0 0
  %1545 = vmatpush1.bf16.msra.mxu0 %v1521
  %1546 = vmatprep.subr.bf16.mxu0 0
  %1547 = vmatpush1.bf16.msra.mxu0 0
  %1548 = vmatprep.subr.bf16.mxu0 0
  %1549 = vmatpush1.bf16.msra.mxu0 0
  %1550 = vmatprep.subr.bf16.mxu0 0
  %1551 = vmatpush1.bf16.msra.mxu0 0
  %1552 = vmatprep.subr.bf16.mxu0 0
  %1553 = vmatpush1.bf16.msra.mxu0 0
  %1554 = vmatprep.subr.bf16.mxu0 0
  %1555 = vmatpush1.bf16.msra.mxu0 0
  %1556 = vmatprep.subr.bf16.mxu0 0
  %1557 = vmatpush1.bf16.msra.mxu0 0
  %1558 = vmatprep.subr.bf16.mxu0 0
  %1559 = vmatpush1.bf16.msra.mxu0 0
  %1560 = vmatprep.subr.bf16.mxu0 0
  %1561 = vmatpush1.bf16.msra.mxu0 0
  %1562 = vmatprep.mubr.bf16.mxu0 0
  %1563 = vmatmul.mubr.bf16.gmra.mrb[0].mxu0 %v1446
  %v1564 = vpop.f32.mrb[0].mxu0
  %v1565 = vadd.f32 %v1481, %v1564
  %v1566 = vpop.f32.mrb[0].mxu0
  %v1567 = vpop.f32.mrb[0].mxu0
  %v1568 = vadd.f32 %v1481, %v1567
  %v1569 = vpop.f32.mrb[0].mxu0
  %1570 = vmatprep.mubr.bf16.mxu0 0
  %1571 = vmatmul.mubr.bf16.gmra.mrb[0].mxu0 %v1447
  %v1572 = vpop.f32.mrb[0].mxu0
  %v1573 = vadd.f32 %v1481, %v1572
  %v1574 = vpop.f32.mrb[0].mxu0
  %v1575 = vpop.f32.mrb[0].mxu0
  %v1576 = vadd.f32 %v1481, %v1575
  %v1577 = vpop.f32.mrb[0].mxu0
  %1578 = vmatprep.mubr.bf16.mxu0 0
  %1579 = vmatmul.mubr.bf16.gmra.mrb[0].mxu0 %v1448
  %v1580 = vpop.f32.mrb[0].mxu0
  %v1581 = vadd.f32 %v1481, %v1580
  %v1582 = vpop.f32.mrb[0].mxu0
  %v1583 = vpop.f32.mrb[0].mxu0
  %v1584 = vadd.f32 %v1481, %v1583
  %v1585 = vpop.f32.mrb[0].mxu0
  %1586 = vmatprep.mubr.bf16.mxu0 0
  %1587 = vmatmul.mubr.bf16.gmra.mrb[0].mxu0 %v1449
  %v1588 = vpop.f32.mrb[0].mxu0
  %v1589 = vadd.f32 %v1481, %v1588
  %v1590 = vpop.f32.mrb[0].mxu0
  %v1591 = vpop.f32.mrb[0].mxu0
  %v1592 = vadd.f32 %v1481, %v1591
  %v1593 = vpop.f32.mrb[0].mxu0
  %1594 = vmatprep.mubr.bf16.mxu0 0
  %1595 = vmatmul.mubr.bf16.gmra.mrb[0].mxu0 %v1450
  %v1596 = vpop.f32.mrb[0].mxu0
  %v1597 = vadd.f32 %v1481, %v1596
  %v1598 = vpop.f32.mrb[0].mxu0
  %v1599 = vpop.f32.mrb[0].mxu0
  %v1600 = vadd.f32 %v1481, %v1599
  %v1601 = vpop.f32.mrb[0].mxu0
  %1602 = vmatprep.mubr.bf16.mxu0 0
  %1603 = vmatmul.mubr.bf16.gmra.mrb[0].mxu0 %v1451
  %v1604 = vpop.f32.mrb[0].mxu0
  %v1605 = vadd.f32 %v1481, %v1604
  %v1606 = vpop.f32.mrb[0].mxu0
  %v1607 = vpop.f32.mrb[0].mxu0
  %v1608 = vadd.f32 %v1481, %v1607
  %v1609 = vpop.f32.mrb[0].mxu0
  %1610 = vmatprep.mubr.bf16.mxu0 0
  %1611 = vmatmul.mubr.bf16.gmra.mrb[0].mxu0 %v1452
  %v1612 = vpop.f32.mrb[0].mxu0
  %v1613 = vadd.f32 %v1481, %v1612
  %v1614 = vpop.f32.mrb[0].mxu0
  %v1615 = vpop.f32.mrb[0].mxu0
  %v1616 = vadd.f32 %v1481, %v1615
  %v1617 = vpop.f32.mrb[0].mxu0
  %1618 = vmatprep.mubr.bf16.mxu0 0
  %1619 = vmatmul.mubr.bf16.gmra.mrb[0].mxu0 %v1453
  %v1620 = vpop.f32.mrb[0].mxu0
  %v1621 = vadd.f32 %v1481, %v1620
  %v1622 = vpop.f32.mrb[0].mxu0
  %v1623 = vpop.f32.mrb[0].mxu0
  %v1624 = vadd.f32 %v1481, %v1623
  %v1625 = vpop.f32.mrb[0].mxu0
  %1626 = vmatprep.mubr.bf16.mxu0 0
  %1627 = vmatmul.mubr.bf16.gmra.mrb[0].mxu0 %v1454
  %v1628 = vpop.f32.mrb[0].mxu0
  %v1629 = vadd.f32 %v1481, %v1628
  %v1630 = vpop.f32.mrb[0].mxu0
  %v1631 = vpop.f32.mrb[0].mxu0
  %v1632 = vadd.f32 %v1481, %v1631
  %v1633 = vpop.f32.mrb[0].mxu0
  %1634 = vmatprep.mubr.bf16.mxu0 0
  %1635 = vmatmul.mubr.bf16.gmra.mrb[0].mxu0 %v1455
  %v1636 = vpop.f32.mrb[0].mxu0
  %v1637 = vadd.f32 %v1481, %v1636
  %v1638 = vpop.f32.mrb[0].mxu0
  %v1639 = vpop.f32.mrb[0].mxu0
  %v1640 = vadd.f32 %v1481, %v1639
  %v1641 = vpop.f32.mrb[0].mxu0
  %1642 = vmatprep.mubr.bf16.mxu0 0
  %1643 = vmatmul.mubr.bf16.gmra.mrb[0].mxu0 %v1456
  %v1644 = vpop.f32.mrb[0].mxu0
  %v1645 = vadd.f32 %v1481, %v1644
  %v1646 = vpop.f32.mrb[0].mxu0
  %v1647 = vpop.f32.mrb[0].mxu0
  %v1648 = vadd.f32 %v1481, %v1647
  %v1649 = vpop.f32.mrb[0].mxu0
  %1650 = vmatprep.mubr.bf16.mxu0 0
  %1651 = vmatmul.mubr.bf16.gmra.mrb[0].mxu0 %v1457
  %v1652 = vpop.f32.mrb[0].mxu0
  %v1653 = vadd.f32 %v1481, %v1652
  %v1654 = vpop.f32.mrb[0].mxu0
  %v1655 = vpop.f32.mrb[0].mxu0
  %v1656 = vadd.f32 %v1481, %v1655
  %v1657 = vpop.f32.mrb[0].mxu0
  %1658 = vmatprep.mubr.bf16.mxu0 0
  %1659 = vmatmul.mubr.bf16.gmra.mrb[0].mxu0 %v1458
  %v1660 = vpop.f32.mrb[0].mxu0
  %v1661 = vadd.f32 %v1481, %v1660
  %v1662 = vpop.f32.mrb[0].mxu0
  %v1663 = vpop.f32.mrb[0].mxu0
  %v1664 = vadd.f32 %v1481, %v1663
  %v1665 = vpop.f32.mrb[0].mxu0
  %1666 = vmatprep.mubr.bf16.mxu0 0
  %1667 = vmatmul.mubr.bf16.gmra.mrb[0].mxu0 %v1459
  %v1668 = vpop.f32.mrb[0].mxu0
  %v1669 = vadd.f32 %v1481, %v1668
  %v1670 = vpop.f32.mrb[0].mxu0
  %v1671 = vpop.f32.mrb[0].mxu0
  %v1672 = vadd.f32 %v1481, %v1671
  %v1673 = vpop.f32.mrb[0].mxu0
  %1674 = vmatprep.mubr.bf16.mxu0 0
  %1675 = vmatmul.mubr.bf16.gmra.mrb[0].mxu0 %v1460
  %v1676 = vpop.f32.mrb[0].mxu0
  %v1677 = vadd.f32 %v1481, %v1676
  %v1678 = vpop.f32.mrb[0].mxu0
  %v1679 = vpop.f32.mrb[0].mxu0
  %v1680 = vadd.f32 %v1481, %v1679
  %v1681 = vpop.f32.mrb[0].mxu0
  %1682 = vmatprep.mubr.bf16.mxu0 0
  %1683 = vmatmul.mubr.bf16.gmra.mrb[0].mxu0 %v1461
  %v1684 = vpop.f32.mrb[0].mxu0
  %v1685 = vadd.f32 %v1481, %v1684
  %v1686 = vpop.f32.mrb[0].mxu0
  %v1687 = vpop.f32.mrb[0].mxu0
  %v1688 = vadd.f32 %v1481, %v1687
  %v1689 = vpop.f32.mrb[0].mxu0
  %1690 = vdwg.mxu0
  %1691 = vadd.xlane.f32.xlu0 %v1565
  %v1692 = vpop.xlane.xlu0 %1691
  %1693 = vadd.xlane.f32.xlu0 %v1568
  %v1694 = vpop.xlane.xlu0 %1693
  %1695 = vadd.xlane.f32.xlu0 %v1573
  %v1696 = vpop.xlane.xlu0 %1695
  %1697 = vadd.xlane.f32.xlu0 %v1576
  %v1698 = vpop.xlane.xlu0 %1697
  %1699 = vadd.xlane.f32.xlu0 %v1581
  %v1700 = vpop.xlane.xlu0 %1699
  %1701 = vadd.xlane.f32.xlu0 %v1584
  %v1702 = vpop.xlane.xlu0 %1701
  %1703 = vadd.xlane.f32.xlu0 %v1589
  %v1704 = vpop.xlane.xlu0 %1703
  %1705 = vadd.xlane.f32.xlu0 %v1592
  %v1706 = vpop.xlane.xlu0 %1705
  %1707 = vadd.xlane.f32.xlu0 %v1597
  %v1708 = vpop.xlane.xlu0 %1707
  %1709 = vadd.xlane.f32.xlu0 %v1600
  %v1710 = vpop.xlane.xlu0 %1709
  %1711 = vadd.xlane.f32.xlu0 %v1605
  %v1712 = vpop.xlane.xlu0 %1711
  %1713 = vadd.xlane.f32.xlu0 %v1608
  %v1714 = vpop.xlane.xlu0 %1713
  %1715 = vadd.xlane.f32.xlu0 %v1613
  %v1716 = vpop.xlane.xlu0 %1715
  %1717 = vadd.xlane.f32.xlu0 %v1616
  %v1718 = vpop.xlane.xlu0 %1717
  %1719 = vadd.xlane.f32.xlu0 %v1621
  %v1720 = vpop.xlane.xlu0 %1719
  %1721 = vadd.xlane.f32.xlu0 %v1624
  %v1722 = vpop.xlane.xlu0 %1721
  %1723 = vadd.xlane.f32.xlu0 %v1629
  %v1724 = vpop.xlane.xlu0 %1723
  %1725 = vadd.xlane.f32.xlu0 %v1632
  %v1726 = vpop.xlane.xlu0 %1725
  %1727 = vadd.xlane.f32.xlu0 %v1637
  %v1728 = vpop.xlane.xlu0 %1727
  %1729 = vadd.xlane.f32.xlu0 %v1640
  %v1730 = vpop.xlane.xlu0 %1729
  %1731 = vadd.xlane.f32.xlu0 %v1645
  %v1732 = vpop.xlane.xlu0 %1731
  %1733 = vadd.xlane.f32.xlu0 %v1648
  %v1734 = vpop.xlane.xlu0 %1733
  %1735 = vadd.xlane.f32.xlu0 %v1653
  %v1736 = vpop.xlane.xlu0 %1735
  %1737 = vadd.xlane.f32.xlu0 %v1656
  %v1738 = vpop.xlane.xlu0 %1737
  %1739 = vadd.xlane.f32.xlu0 %v1661
  %v1740 = vpop.xlane.xlu0 %1739
  %1741 = vadd.xlane.f32.xlu0 %v1664
  %v1742 = vpop.xlane.xlu0 %1741
  %1743 = vadd.xlane.f32.xlu0 %v1669
  %v1744 = vpop.xlane.xlu0 %1743
  %1745 = vadd.xlane.f32.xlu0 %v1672
  %v1746 = vpop.xlane.xlu0 %1745
  %1747 = vadd.xlane.f32.xlu0 %v1677
  %v1748 = vpop.xlane.xlu0 %1747
  %1749 = vadd.xlane.f32.xlu0 %v1680
  %v1750 = vpop.xlane.xlu0 %1749
  %1751 = vadd.xlane.f32.xlu0 %v1685
  %v1752 = vpop.xlane.xlu0 %1751
  %1753 = vadd.xlane.f32.xlu0 %v1688
  %v1754 = vpop.xlane.xlu0 %1753
  %v1755 = vmul.f32 %v1692, %v1053
  %v1756 = vmul.f32 %v1694, %v1053
  %v1757 = vmul.f32 %v1696, %v1053
  %v1758 = vmul.f32 %v1698, %v1053
  %v1759 = vmul.f32 %v1700, %v1053
  %v1760 = vmul.f32 %v1702, %v1053
  %v1761 = vmul.f32 %v1704, %v1053
  %v1762 = vmul.f32 %v1706, %v1053
  %v1763 = vmul.f32 %v1708, %v1053
  %v1764 = vmul.f32 %v1710, %v1053
  %v1765 = vmul.f32 %v1712, %v1053
  %v1766 = vmul.f32 %v1714, %v1053
  %v1767 = vmul.f32 %v1716, %v1053
  %v1768 = vmul.f32 %v1718, %v1053
  %v1769 = vmul.f32 %v1720, %v1053
  %v1770 = vmul.f32 %v1722, %v1053
  %v1771 = vmul.f32 %v1724, %v1053
  %v1772 = vmul.f32 %v1726, %v1053
  %v1773 = vmul.f32 %v1728, %v1053
  %v1774 = vmul.f32 %v1730, %v1053
  %v1775 = vmul.f32 %v1732, %v1053
  %v1776 = vmul.f32 %v1734, %v1053
  %v1777 = vmul.f32 %v1736, %v1053
  %v1778 = vmul.f32 %v1738, %v1053
  %v1779 = vmul.f32 %v1740, %v1053
  %v1780 = vmul.f32 %v1742, %v1053
  %v1781 = vmul.f32 %v1744, %v1053
  %v1782 = vmul.f32 %v1746, %v1053
  %v1783 = vmul.f32 %v1748, %v1053
  %v1784 = vmul.f32 %v1750, %v1053
  %v1785 = vmul.f32 %v1752, %v1053
  %v1786 = vmul.f32 %v1754, %v1053
  %v1787 = vsub.f32 %v1565, %v1755
  %v1788 = vsub.f32 %v1568, %v1756
  %v1789 = vsub.f32 %v1573, %v1757
  %v1790 = vsub.f32 %v1576, %v1758
  %v1791 = vsub.f32 %v1581, %v1759
  %v1792 = vsub.f32 %v1584, %v1760
  %v1793 = vsub.f32 %v1589, %v1761
  %v1794 = vsub.f32 %v1592, %v1762
  %v1795 = vsub.f32 %v1597, %v1763
  %v1796 = vsub.f32 %v1600, %v1764
  %v1797 = vsub.f32 %v1605, %v1765
  %v1798 = vsub.f32 %v1608, %v1766
  %v1799 = vsub.f32 %v1613, %v1767
  %v1800 = vsub.f32 %v1616, %v1768
  %v1801 = vsub.f32 %v1621, %v1769
  %v1802 = vsub.f32 %v1624, %v1770
  %v1803 = vsub.f32 %v1629, %v1771
  %v1804 = vsub.f32 %v1632, %v1772
  %v1805 = vsub.f32 %v1637, %v1773
  %v1806 = vsub.f32 %v1640, %v1774
  %v1807 = vsub.f32 %v1645, %v1775
  %v1808 = vsub.f32 %v1648, %v1776
  %v1809 = vsub.f32 %v1653, %v1777
  %v1810 = vsub.f32 %v1656, %v1778
  %v1811 = vsub.f32 %v1661, %v1779
  %v1812 = vsub.f32 %v1664, %v1780
  %v1813 = vsub.f32 %v1669, %v1781
  %v1814 = vsub.f32 %v1672, %v1782
  %v1815 = vsub.f32 %v1677, %v1783
  %v1816 = vsub.f32 %v1680, %v1784
  %v1817 = vsub.f32 %v1685, %v1785
  %v1818 = vsub.f32 %v1688, %v1786
  %v1819 = vmul.f32 %v1787, %v1787
  %v1820 = vmul.f32 %v1788, %v1788
  %v1821 = vmul.f32 %v1789, %v1789
  %v1822 = vmul.f32 %v1790, %v1790
  %v1823 = vmul.f32 %v1791, %v1791
  %v1824 = vmul.f32 %v1792, %v1792
  %v1825 = vmul.f32 %v1793, %v1793
  %v1826 = vmul.f32 %v1794, %v1794
  %v1827 = vmul.f32 %v1795, %v1795
  %v1828 = vmul.f32 %v1796, %v1796
  %v1829 = vmul.f32 %v1797, %v1797
  %v1830 = vmul.f32 %v1798, %v1798
  %v1831 = vmul.f32 %v1799, %v1799
  %v1832 = vmul.f32 %v1800, %v1800
  %v1833 = vmul.f32 %v1801, %v1801
  %v1834 = vmul.f32 %v1802, %v1802
  %v1835 = vmul.f32 %v1803, %v1803
  %v1836 = vmul.f32 %v1804, %v1804
  %v1837 = vmul.f32 %v1805, %v1805
  %v1838 = vmul.f32 %v1806, %v1806
  %v1839 = vmul.f32 %v1807, %v1807
  %v1840 = vmul.f32 %v1808, %v1808
  %v1841 = vmul.f32 %v1809, %v1809
  %v1842 = vmul.f32 %v1810, %v1810
  %v1843 = vmul.f32 %v1811, %v1811
  %v1844 = vmul.f32 %v1812, %v1812
  %v1845 = vmul.f32 %v1813, %v1813
  %v1846 = vmul.f32 %v1814, %v1814
  %v1847 = vmul.f32 %v1815, %v1815
  %v1848 = vmul.f32 %v1816, %v1816
  %v1849 = vmul.f32 %v1817, %v1817
  %v1850 = vmul.f32 %v1818, %v1818
  %1851 = vadd.xlane.f32.xlu0 %v1819
  %v1852 = vpop.xlane.xlu0 %1851
  %1853 = vadd.xlane.f32.xlu0 %v1820
  %v1854 = vpop.xlane.xlu0 %1853
  %1855 = vadd.xlane.f32.xlu0 %v1821
  %v1856 = vpop.xlane.xlu0 %1855
  %1857 = vadd.xlane.f32.xlu0 %v1822
  %v1858 = vpop.xlane.xlu0 %1857
  %1859 = vadd.xlane.f32.xlu0 %v1823
  %v1860 = vpop.xlane.xlu0 %1859
  %1861 = vadd.xlane.f32.xlu0 %v1824
  %v1862 = vpop.xlane.xlu0 %1861
  %1863 = vadd.xlane.f32.xlu0 %v1825
  %v1864 = vpop.xlane.xlu0 %1863
  %1865 = vadd.xlane.f32.xlu0 %v1826
  %v1866 = vpop.xlane.xlu0 %1865
  %1867 = vadd.xlane.f32.xlu0 %v1827
  %v1868 = vpop.xlane.xlu0 %1867
  %1869 = vadd.xlane.f32.xlu0 %v1828
  %v1870 = vpop.xlane.xlu0 %1869
  %1871 = vadd.xlane.f32.xlu0 %v1829
  %v1872 = vpop.xlane.xlu0 %1871
  %1873 = vadd.xlane.f32.xlu0 %v1830
  %v1874 = vpop.xlane.xlu0 %1873
  %1875 = vadd.xlane.f32.xlu0 %v1831
  %v1876 = vpop.xlane.xlu0 %1875
  %1877 = vadd.xlane.f32.xlu0 %v1832
  %v1878 = vpop.xlane.xlu0 %1877
  %1879 = vadd.xlane.f32.xlu0 %v1833
  %v1880 = vpop.xlane.xlu0 %1879
  %1881 = vadd.xlane.f32.xlu0 %v1834
  %v1882 = vpop.xlane.xlu0 %1881
  %1883 = vadd.xlane.f32.xlu0 %v1835
  %v1884 = vpop.xlane.xlu0 %1883
  %1885 = vadd.xlane.f32.xlu0 %v1836
  %v1886 = vpop.xlane.xlu0 %1885
  %1887 = vadd.xlane.f32.xlu0 %v1837
  %v1888 = vpop.xlane.xlu0 %1887
  %1889 = vadd.xlane.f32.xlu0 %v1838
  %v1890 = vpop.xlane.xlu0 %1889
  %1891 = vadd.xlane.f32.xlu0 %v1839
  %v1892 = vpop.xlane.xlu0 %1891
  %1893 = vadd.xlane.f32.xlu0 %v1840
  %v1894 = vpop.xlane.xlu0 %1893
  %1895 = vadd.xlane.f32.xlu0 %v1841
  %v1896 = vpop.xlane.xlu0 %1895
  %1897 = vadd.xlane.f32.xlu0 %v1842
  %v1898 = vpop.xlane.xlu0 %1897
  %1899 = vadd.xlane.f32.xlu0 %v1843
  %v1900 = vpop.xlane.xlu0 %1899
  %1901 = vadd.xlane.f32.xlu0 %v1844
  %v1902 = vpop.xlane.xlu0 %1901
  %1903 = vadd.xlane.f32.xlu0 %v1845
  %v1904 = vpop.xlane.xlu0 %1903
  %1905 = vadd.xlane.f32.xlu0 %v1846
  %v1906 = vpop.xlane.xlu0 %1905
  %1907 = vadd.xlane.f32.xlu0 %v1847
  %v1908 = vpop.xlane.xlu0 %1907
  %1909 = vadd.xlane.f32.xlu0 %v1848
  %v1910 = vpop.xlane.xlu0 %1909
  %1911 = vadd.xlane.f32.xlu0 %v1849
  %v1912 = vpop.xlane.xlu0 %1911
  %1913 = vadd.xlane.f32.xlu0 %v1850
  %v1914 = vpop.xlane.xlu0 %1913
  %v1915 = vmul.f32 %v1852, %v1053
  %v1916 = vmul.f32 %v1854, %v1053
  %v1917 = vmul.f32 %v1856, %v1053
  %v1918 = vmul.f32 %v1858, %v1053
  %v1919 = vmul.f32 %v1860, %v1053
  %v1920 = vmul.f32 %v1862, %v1053
  %v1921 = vmul.f32 %v1864, %v1053
  %v1922 = vmul.f32 %v1866, %v1053
  %v1923 = vmul.f32 %v1868, %v1053
  %v1924 = vmul.f32 %v1870, %v1053
  %v1925 = vmul.f32 %v1872, %v1053
  %v1926 = vmul.f32 %v1874, %v1053
  %v1927 = vmul.f32 %v1876, %v1053
  %v1928 = vmul.f32 %v1878, %v1053
  %v1929 = vmul.f32 %v1880, %v1053
  %v1930 = vmul.f32 %v1882, %v1053
  %v1931 = vmul.f32 %v1884, %v1053
  %v1932 = vmul.f32 %v1886, %v1053
  %v1933 = vmul.f32 %v1888, %v1053
  %v1934 = vmul.f32 %v1890, %v1053
  %v1935 = vmul.f32 %v1892, %v1053
  %v1936 = vmul.f32 %v1894, %v1053
  %v1937 = vmul.f32 %v1896, %v1053
  %v1938 = vmul.f32 %v1898, %v1053
  %v1939 = vmul.f32 %v1900, %v1053
  %v1940 = vmul.f32 %v1902, %v1053
  %v1941 = vmul.f32 %v1904, %v1053
  %v1942 = vmul.f32 %v1906, %v1053
  %v1943 = vmul.f32 %v1908, %v1053
  %v1944 = vmul.f32 %v1910, %v1053
  %v1945 = vmul.f32 %v1912, %v1053
  %v1946 = vmul.f32 %v1914, %v1053
  %v1947 = vadd.f32 %v1915, 1e-05
  %v1948 = vadd.f32 %v1916, 1e-05
  %v1949 = vadd.f32 %v1917, 1e-05
  %v1950 = vadd.f32 %v1918, 1e-05
  %v1951 = vadd.f32 %v1919, 1e-05
  %v1952 = vadd.f32 %v1920, 1e-05
  %v1953 = vadd.f32 %v1921, 1e-05
  %v1954 = vadd.f32 %v1922, 1e-05
  %v1955 = vadd.f32 %v1923, 1e-05
  %v1956 = vadd.f32 %v1924, 1e-05
  %v1957 = vadd.f32 %v1925, 1e-05
  %v1958 = vadd.f32 %v1926, 1e-05
  %v1959 = vadd.f32 %v1927, 1e-05
  %v1960 = vadd.f32 %v1928, 1e-05
  %v1961 = vadd.f32 %v1929, 1e-05
  %v1962 = vadd.f32 %v1930, 1e-05
  %v1963 = vadd.f32 %v1931, 1e-05
  %v1964 = vadd.f32 %v1932, 1e-05
  %v1965 = vadd.f32 %v1933, 1e-05
  %v1966 = vadd.f32 %v1934, 1e-05
  %v1967 = vadd.f32 %v1935, 1e-05
  %v1968 = vadd.f32 %v1936, 1e-05
  %v1969 = vadd.f32 %v1937, 1e-05
  %v1970 = vadd.f32 %v1938, 1e-05
  %v1971 = vadd.f32 %v1939, 1e-05
  %v1972 = vadd.f32 %v1940, 1e-05
  %v1973 = vadd.f32 %v1941, 1e-05
  %v1974 = vadd.f32 %v1942, 1e-05
  %v1975 = vadd.f32 %v1943, 1e-05
  %v1976 = vadd.f32 %v1944, 1e-05
  %v1977 = vadd.f32 %v1945, 1e-05
  %v1978 = vadd.f32 %v1946, 1e-05
  %v1979 = vrsqrt.pop %v1947
  %v1980 = vrsqrt.pop %v1948
  %v1981 = vrsqrt.pop %v1949
  %v1982 = vrsqrt.pop %v1950
  %v1983 = vrsqrt.pop %v1951
  %v1984 = vrsqrt.pop %v1952
  %v1985 = vrsqrt.pop %v1953
  %v1986 = vrsqrt.pop %v1954
  %v1987 = vrsqrt.pop %v1955
  %v1988 = vrsqrt.pop %v1956
  %v1989 = vrsqrt.pop %v1957
  %v1990 = vrsqrt.pop %v1958
  %v1991 = vrsqrt.pop %v1959
  %v1992 = vrsqrt.pop %v1960
  %v1993 = vrsqrt.pop %v1961
  %v1994 = vrsqrt.pop %v1962
  %v1995 = vrsqrt.pop %v1963
  %v1996 = vrsqrt.pop %v1964
  %v1997 = vrsqrt.pop %v1965
  %v1998 = vrsqrt.pop %v1966
  %v1999 = vrsqrt.pop %v1967
  %v2000 = vrsqrt.pop %v1968
  %v2001 = vrsqrt.pop %v1969
  %v2002 = vrsqrt.pop %v1970
  %v2003 = vrsqrt.pop %v1971
  %v2004 = vrsqrt.pop %v1972
  %v2005 = vrsqrt.pop %v1973
  %v2006 = vrsqrt.pop %v1974
  %v2007 = vrsqrt.pop %v1975
  %v2008 = vrsqrt.pop %v1976
  %v2009 = vrsqrt.pop %v1977
  %v2010 = vrsqrt.pop %v1978
  %v2011 = vmul.f32 %v1787, %v1979
  %v2012 = vmul.f32 %v1788, %v1980
  %v2013 = vmul.f32 %v1789, %v1981
  %v2014 = vmul.f32 %v1790, %v1982
  %v2015 = vmul.f32 %v1791, %v1983
  %v2016 = vmul.f32 %v1792, %v1984
  %v2017 = vmul.f32 %v1793, %v1985
  %v2018 = vmul.f32 %v1794, %v1986
  %v2019 = vmul.f32 %v1795, %v1987
  %v2020 = vmul.f32 %v1796, %v1988
  %v2021 = vmul.f32 %v1797, %v1989
  %v2022 = vmul.f32 %v1798, %v1990
  %v2023 = vmul.f32 %v1799, %v1991
  %v2024 = vmul.f32 %v1800, %v1992
  %v2025 = vmul.f32 %v1801, %v1993
  %v2026 = vmul.f32 %v1802, %v1994
  %v2027 = vmul.f32 %v1803, %v1995
  %v2028 = vmul.f32 %v1804, %v1996
  %v2029 = vmul.f32 %v1805, %v1997
  %v2030 = vmul.f32 %v1806, %v1998
  %v2031 = vmul.f32 %v1807, %v1999
  %v2032 = vmul.f32 %v1808, %v2000
  %v2033 = vmul.f32 %v1809, %v2001
  %v2034 = vmul.f32 %v1810, %v2002
  %v2035 = vmul.f32 %v1811, %v2003
  %v2036 = vmul.f32 %v1812, %v2004
  %v2037 = vmul.f32 %v1813, %v2005
  %v2038 = vmul.f32 %v1814, %v2006
  %v2039 = vmul.f32 %v1815, %v2007
  %v2040 = vmul.f32 %v1816, %v2008
  %v2041 = vmul.f32 %v1817, %v2009
  %v2042 = vmul.f32 %v1818, %v2010
  %v2043 = vlaneseq
  %v2044 = vshrl.u32 %v2043, 7
  %v2045 = vsub.s32 4, %v2044
  %v2046 = vrot.slane %v21, %v2045
  %v2047 = vmul.f32 %v2011, %v2046
  %v2048 = vmul.f32 %v2012, %v2046
  %v2049 = vmul.f32 %v2013, %v2046
  %v2050 = vmul.f32 %v2014, %v2046
  %v2051 = vmul.f32 %v2015, %v2046
  %v2052 = vmul.f32 %v2016, %v2046
  %v2053 = vmul.f32 %v2017, %v2046
  %v2054 = vmul.f32 %v2018, %v2046
  %v2055 = vmul.f32 %v2019, %v2046
  %v2056 = vmul.f32 %v2020, %v2046
  %v2057 = vmul.f32 %v2021, %v2046
  %v2058 = vmul.f32 %v2022, %v2046
  %v2059 = vmul.f32 %v2023, %v2046
  %v2060 = vmul.f32 %v2024, %v2046
  %v2061 = vmul.f32 %v2025, %v2046
  %v2062 = vmul.f32 %v2026, %v2046
  %v2063 = vmul.f32 %v2027, %v2046
  %v2064 = vmul.f32 %v2028, %v2046
  %v2065 = vmul.f32 %v2029, %v2046
  %v2066 = vmul.f32 %v2030, %v2046
  %v2067 = vmul.f32 %v2031, %v2046
  %v2068 = vmul.f32 %v2032, %v2046
  %v2069 = vmul.f32 %v2033, %v2046
  %v2070 = vmul.f32 %v2034, %v2046
  %v2071 = vmul.f32 %v2035, %v2046
  %v2072 = vmul.f32 %v2036, %v2046
  %v2073 = vmul.f32 %v2037, %v2046
  %v2074 = vmul.f32 %v2038, %v2046
  %v2075 = vmul.f32 %v2039, %v2046
  %v2076 = vmul.f32 %v2040, %v2046
  %v2077 = vmul.f32 %v2041, %v2046
  %v2078 = vmul.f32 %v2042, %v2046
  %v2079 = vlaneseq
  %v2080 = vshrl.u32 %v2079, 7
  %v2081 = vsub.s32 5, %v2080
  %v2082 = vrot.slane %v21, %v2081
  %v2083 = vadd.f32 %v2047, %v2082
  %v2084 = vadd.f32 %v2048, %v2082
  %v2085 = vadd.f32 %v2049, %v2082
  %v2086 = vadd.f32 %v2050, %v2082
  %v2087 = vadd.f32 %v2051, %v2082
  %v2088 = vadd.f32 %v2052, %v2082
  %v2089 = vadd.f32 %v2053, %v2082
  %v2090 = vadd.f32 %v2054, %v2082
  %v2091 = vadd.f32 %v2055, %v2082
  %v2092 = vadd.f32 %v2056, %v2082
  %v2093 = vadd.f32 %v2057, %v2082
  %v2094 = vadd.f32 %v2058, %v2082
  %v2095 = vadd.f32 %v2059, %v2082
  %v2096 = vadd.f32 %v2060, %v2082
  %v2097 = vadd.f32 %v2061, %v2082
  %v2098 = vadd.f32 %v2062, %v2082
  %v2099 = vadd.f32 %v2063, %v2082
  %v2100 = vadd.f32 %v2064, %v2082
  %v2101 = vadd.f32 %v2065, %v2082
  %v2102 = vadd.f32 %v2066, %v2082
  %v2103 = vadd.f32 %v2067, %v2082
  %v2104 = vadd.f32 %v2068, %v2082
  %v2105 = vadd.f32 %v2069, %v2082
  %v2106 = vadd.f32 %v2070, %v2082
  %v2107 = vadd.f32 %v2071, %v2082
  %v2108 = vadd.f32 %v2072, %v2082
  %v2109 = vadd.f32 %v2073, %v2082
  %v2110 = vadd.f32 %v2074, %v2082
  %v2111 = vadd.f32 %v2075, %v2082
  %v2112 = vadd.f32 %v2076, %v2082
  %v2113 = vadd.f32 %v2077, %v2082
  %v2114 = vadd.f32 %v2078, %v2082
  %v2115 = vmax.f32 %v2083, 0.0
  %v2116 = vmax.f32 %v2084, 0.0
  %v2117 = vmax.f32 %v2085, 0.0
  %v2118 = vmax.f32 %v2086, 0.0
  %v2119 = vmax.f32 %v2087, 0.0
  %v2120 = vmax.f32 %v2088, 0.0
  %v2121 = vmax.f32 %v2089, 0.0
  %v2122 = vmax.f32 %v2090, 0.0
  %v2123 = vmax.f32 %v2091, 0.0
  %v2124 = vmax.f32 %v2092, 0.0
  %v2125 = vmax.f32 %v2093, 0.0
  %v2126 = vmax.f32 %v2094, 0.0
  %v2127 = vmax.f32 %v2095, 0.0
  %v2128 = vmax.f32 %v2096, 0.0
  %v2129 = vmax.f32 %v2097, 0.0
  %v2130 = vmax.f32 %v2098, 0.0
  %v2131 = vmax.f32 %v2099, 0.0
  %v2132 = vmax.f32 %v2100, 0.0
  %v2133 = vmax.f32 %v2101, 0.0
  %v2134 = vmax.f32 %v2102, 0.0
  %v2135 = vmax.f32 %v2103, 0.0
  %v2136 = vmax.f32 %v2104, 0.0
  %v2137 = vmax.f32 %v2105, 0.0
  %v2138 = vmax.f32 %v2106, 0.0
  %v2139 = vmax.f32 %v2107, 0.0
  %v2140 = vmax.f32 %v2108, 0.0
  %v2141 = vmax.f32 %v2109, 0.0
  %v2142 = vmax.f32 %v2110, 0.0
  %v2143 = vmax.f32 %v2111, 0.0
  %v2144 = vmax.f32 %v2112, 0.0
  %v2145 = vmax.f32 %v2113, 0.0
  %v2146 = vmax.f32 %v2114, 0.0
  %v2147 = vpack.c.bf16 %v2116, %v2115
  %v2148 = vpack.c.bf16 %v2118, %v2117
  %v2149 = vpack.c.bf16 %v2120, %v2119
  %v2150 = vpack.c.bf16 %v2122, %v2121
  %v2151 = vpack.c.bf16 %v2124, %v2123
  %v2152 = vpack.c.bf16 %v2126, %v2125
  %v2153 = vpack.c.bf16 %v2128, %v2127
  %v2154 = vpack.c.bf16 %v2130, %v2129
  %v2155 = vpack.c.bf16 %v2132, %v2131
  %v2156 = vpack.c.bf16 %v2134, %v2133
  %v2157 = vpack.c.bf16 %v2136, %v2135
  %v2158 = vpack.c.bf16 %v2138, %v2137
  %v2159 = vpack.c.bf16 %v2140, %v2139
  %v2160 = vpack.c.bf16 %v2142, %v2141
  %v2161 = vpack.c.bf16 %v2144, %v2143
  %v2162 = vpack.c.bf16 %v2146, %v2145
  %s2163 = scalar_lea.vmem %s2, 64
  %v2164 = vld [vmem:[%s2163] sm:$0xf]
  %v2165 = vld [vmem:[%s2163 + $0x4] sm:$0xf]
  %v2166 = vld [vmem:[%s2163 + $0x8] sm:$0xf]
  %v2167 = vld [vmem:[%s2163 + $0xc] sm:$0xf]
  %v2168 = vld [vmem:[%s2163 + $0x10] sm:$0xf]
  %v2169 = vld [vmem:[%s2163 + $0x14] sm:$0xf]
  %v2170 = vld [vmem:[%s2163 + $0x18] sm:$0xf]
  %v2171 = vld [vmem:[%s2163 + $0x1c] sm:$0xf]
  %v2172 = vld [vmem:[%s2163 + $0x20] sm:$0xf]
  %v2173 = vld [vmem:[%s2163 + $0x24] sm:$0xf]
  %v2174 = vld [vmem:[%s2163 + $0x28] sm:$0xf]
  %v2175 = vld [vmem:[%s2163 + $0x2c] sm:$0xf]
  %v2176 = vld [vmem:[%s2163 + $0x30] sm:$0xf]
  %v2177 = vld [vmem:[%s2163 + $0x34] sm:$0xf]
  %v2178 = vld [vmem:[%s2163 + $0x38] sm:$0xf]
  %v2179 = vld [vmem:[%s2163 + $0x3c] sm:$0xf]
  %v2180 = vlaneseq
  %v2181 = vshrl.u32 %v2180, 7
  %v2182 = vsub.s32 6, %v2181
  %v2183 = vrot.slane %v21, %v2182
  %v2200 = vunpack.c.l.b16 %v2164
  %v2201 = vunpack.c.l.b16 %v2165
  %v2202 = vunpack.c.l.b16 %v2166
  %v2203 = vunpack.c.l.b16 %v2167
  %v2204 = vunpack.c.l.b16 %v2168
  %v2205 = vunpack.c.l.b16 %v2169
  %v2206 = vunpack.c.l.b16 %v2170
  %v2207 = vunpack.c.l.b16 %v2171
  %v2208 = vunpack.c.l.b16 %v2172
  %v2209 = vunpack.c.l.b16 %v2173
  %v2210 = vunpack.c.l.b16 %v2174
  %v2211 = vunpack.c.l.b16 %v2175
  %v2212 = vunpack.c.l.b16 %v2176
  %v2213 = vunpack.c.l.b16 %v2177
  %v2214 = vunpack.c.l.b16 %v2178
  %v2215 = vunpack.c.l.b16 %v2179
  %v2216 = vpack.c.b16 %v2201, %v2200
  %v2217 = vpack.c.b16 %v2203, %v2202
  %v2218 = vpack.c.b16 %v2205, %v2204
  %v2219 = vpack.c.b16 %v2207, %v2206
  %v2220 = vpack.c.b16 %v2209, %v2208
  %v2221 = vpack.c.b16 %v2211, %v2210
  %v2222 = vpack.c.b16 %v2213, %v2212
  %v2223 = vpack.c.b16 %v2215, %v2214
  %2232 = vmatprep.subr.bf16.mxu0 0
  %2233 = vmatpush1.bf16.msra.mxu0 %v2216
  %2234 = vmatprep.subr.bf16.mxu0 0
  %2235 = vmatpush1.bf16.msra.mxu0 %v2217
  %2236 = vmatprep.subr.bf16.mxu0 0
  %2237 = vmatpush1.bf16.msra.mxu0 %v2218
  %2238 = vmatprep.subr.bf16.mxu0 0
  %2239 = vmatpush1.bf16.msra.mxu0 %v2219
  %2240 = vmatprep.subr.bf16.mxu0 0
  %2241 = vmatpush1.bf16.msra.mxu0 %v2220
  %2242 = vmatprep.subr.bf16.mxu0 0
  %2243 = vmatpush1.bf16.msra.mxu0 %v2221
  %2244 = vmatprep.subr.bf16.mxu0 0
  %2245 = vmatpush1.bf16.msra.mxu0 %v2222
  %2246 = vmatprep.subr.bf16.mxu0 0
  %2247 = vmatpush1.bf16.msra.mxu0 %v2223
  %2248 = vmatprep.subr.bf16.mxu0 0
  %2249 = vmatpush1.bf16.msra.mxu0 0
  %2250 = vmatprep.subr.bf16.mxu0 0
  %2251 = vmatpush1.bf16.msra.mxu0 0
  %2252 = vmatprep.subr.bf16.mxu0 0
  %2253 = vmatpush1.bf16.msra.mxu0 0
  %2254 = vmatprep.subr.bf16.mxu0 0
  %2255 = vmatpush1.bf16.msra.mxu0 0
  %2256 = vmatprep.subr.bf16.mxu0 0
  %2257 = vmatpush1.bf16.msra.mxu0 0
  %2258 = vmatprep.subr.bf16.mxu0 0
  %2259 = vmatpush1.bf16.msra.mxu0 0
  %2260 = vmatprep.subr.bf16.mxu0 0
  %2261 = vmatpush1.bf16.msra.mxu0 0
  %2262 = vmatprep.subr.bf16.mxu0 0
  %2263 = vmatpush1.bf16.msra.mxu0 0
  %2264 = vmatprep.mubr.bf16.mxu0 0
  %2265 = vmatmul.mubr.bf16.gmra.mrb[0].mxu0 %v2147
  %v2266 = vpop.f32.mrb[0].mxu0
  %v2267 = vadd.f32 %v2183, %v2266
  %v2268 = vpop.f32.mrb[0].mxu0
  %v2269 = vpop.f32.mrb[0].mxu0
  %v2270 = vadd.f32 %v2183, %v2269
  %v2271 = vpop.f32.mrb[0].mxu0
  %2272 = vmatprep.mubr.bf16.mxu0 0
  %2273 = vmatmul.mubr.bf16.gmra.mrb[0].mxu0 %v2148
  %v2274 = vpop.f32.mrb[0].mxu0
  %v2275 = vadd.f32 %v2183, %v2274
  %v2276 = vpop.f32.mrb[0].mxu0
  %v2277 = vpop.f32.mrb[0].mxu0
  %v2278 = vadd.f32 %v2183, %v2277
  %v2279 = vpop.f32.mrb[0].mxu0
  %2280 = vmatprep.mubr.bf16.mxu0 0
  %2281 = vmatmul.mubr.bf16.gmra.mrb[0].mxu0 %v2149
  %v2282 = vpop.f32.mrb[0].mxu0
  %v2283 = vadd.f32 %v2183, %v2282
  %v2284 = vpop.f32.mrb[0].mxu0
  %v2285 = vpop.f32.mrb[0].mxu0
  %v2286 = vadd.f32 %v2183, %v2285
  %v2287 = vpop.f32.mrb[0].mxu0
  %2288 = vmatprep.mubr.bf16.mxu0 0
  %2289 = vmatmul.mubr.bf16.gmra.mrb[0].mxu0 %v2150
  %v2290 = vpop.f32.mrb[0].mxu0
  %v2291 = vadd.f32 %v2183, %v2290
  %v2292 = vpop.f32.mrb[0].mxu0
  %v2293 = vpop.f32.mrb[0].mxu0
  %v2294 = vadd.f32 %v2183, %v2293
  %v2295 = vpop.f32.mrb[0].mxu0
  %2296 = vmatprep.mubr.bf16.mxu0 0
  %2297 = vmatmul.mubr.bf16.gmra.mrb[0].mxu0 %v2151
  %v2298 = vpop.f32.mrb[0].mxu0
  %v2299 = vadd.f32 %v2183, %v2298
  %v2300 = vpop.f32.mrb[0].mxu0
  %v2301 = vpop.f32.mrb[0].mxu0
  %v2302 = vadd.f32 %v2183, %v2301
  %v2303 = vpop.f32.mrb[0].mxu0
  %2304 = vmatprep.mubr.bf16.mxu0 0
  %2305 = vmatmul.mubr.bf16.gmra.mrb[0].mxu0 %v2152
  %v2306 = vpop.f32.mrb[0].mxu0
  %v2307 = vadd.f32 %v2183, %v2306
  %v2308 = vpop.f32.mrb[0].mxu0
  %v2309 = vpop.f32.mrb[0].mxu0
  %v2310 = vadd.f32 %v2183, %v2309
  %v2311 = vpop.f32.mrb[0].mxu0
  %2312 = vmatprep.mubr.bf16.mxu0 0
  %2313 = vmatmul.mubr.bf16.gmra.mrb[0].mxu0 %v2153
  %v2314 = vpop.f32.mrb[0].mxu0
  %v2315 = vadd.f32 %v2183, %v2314
  %v2316 = vpop.f32.mrb[0].mxu0
  %v2317 = vpop.f32.mrb[0].mxu0
  %v2318 = vadd.f32 %v2183, %v2317
  %v2319 = vpop.f32.mrb[0].mxu0
  %2320 = vmatprep.mubr.bf16.mxu0 0
  %2321 = vmatmul.mubr.bf16.gmra.mrb[0].mxu0 %v2154
  %v2322 = vpop.f32.mrb[0].mxu0
  %v2323 = vadd.f32 %v2183, %v2322
  %v2324 = vpop.f32.mrb[0].mxu0
  %v2325 = vpop.f32.mrb[0].mxu0
  %v2326 = vadd.f32 %v2183, %v2325
  %v2327 = vpop.f32.mrb[0].mxu0
  %2328 = vmatprep.mubr.bf16.mxu0 0
  %2329 = vmatmul.mubr.bf16.gmra.mrb[0].mxu0 %v2155
  %v2330 = vpop.f32.mrb[0].mxu0
  %v2331 = vadd.f32 %v2183, %v2330
  %v2332 = vpop.f32.mrb[0].mxu0
  %v2333 = vpop.f32.mrb[0].mxu0
  %v2334 = vadd.f32 %v2183, %v2333
  %v2335 = vpop.f32.mrb[0].mxu0
  %2336 = vmatprep.mubr.bf16.mxu0 0
  %2337 = vmatmul.mubr.bf16.gmra.mrb[0].mxu0 %v2156
  %v2338 = vpop.f32.mrb[0].mxu0
  %v2339 = vadd.f32 %v2183, %v2338
  %v2340 = vpop.f32.mrb[0].mxu0
  %v2341 = vpop.f32.mrb[0].mxu0
  %v2342 = vadd.f32 %v2183, %v2341
  %v2343 = vpop.f32.mrb[0].mxu0
  %2344 = vmatprep.mubr.bf16.mxu0 0
  %2345 = vmatmul.mubr.bf16.gmra.mrb[0].mxu0 %v2157
  %v2346 = vpop.f32.mrb[0].mxu0
  %v2347 = vadd.f32 %v2183, %v2346
  %v2348 = vpop.f32.mrb[0].mxu0
  %v2349 = vpop.f32.mrb[0].mxu0
  %v2350 = vadd.f32 %v2183, %v2349
  %v2351 = vpop.f32.mrb[0].mxu0
  %2352 = vmatprep.mubr.bf16.mxu0 0
  %2353 = vmatmul.mubr.bf16.gmra.mrb[0].mxu0 %v2158
  %v2354 = vpop.f32.mrb[0].mxu0
  %v2355 = vadd.f32 %v2183, %v2354
  %v2356 = vpop.f32.mrb[0].mxu0
  %v2357 = vpop.f32.mrb[0].mxu0
  %v2358 = vadd.f32 %v2183, %v2357
  %v2359 = vpop.f32.mrb[0].mxu0
  %2360 = vmatprep.mubr.bf16.mxu0 0
  %2361 = vmatmul.mubr.bf16.gmra.mrb[0].mxu0 %v2159
  %v2362 = vpop.f32.mrb[0].mxu0
  %v2363 = vadd.f32 %v2183, %v2362
  %v2364 = vpop.f32.mrb[0].mxu0
  %v2365 = vpop.f32.mrb[0].mxu0
  %v2366 = vadd.f32 %v2183, %v2365
  %v2367 = vpop.f32.mrb[0].mxu0
  %2368 = vmatprep.mubr.bf16.mxu0 0
  %2369 = vmatmul.mubr.bf16.gmra.mrb[0].mxu0 %v2160
  %v2370 = vpop.f32.mrb[0].mxu0
  %v2371 = vadd.f32 %v2183, %v2370
  %v2372 = vpop.f32.mrb[0].mxu0
  %v2373 = vpop.f32.mrb[0].mxu0
  %v2374 = vadd.f32 %v2183, %v2373
  %v2375 = vpop.f32.mrb[0].mxu0
  %2376 = vmatprep.mubr.bf16.mxu0 0
  %2377 = vmatmul.mubr.bf16.gmra.mrb[0].mxu0 %v2161
  %v2378 = vpop.f32.mrb[0].mxu0
  %v2379 = vadd.f32 %v2183, %v2378
  %v2380 = vpop.f32.mrb[0].mxu0
  %v2381 = vpop.f32.mrb[0].mxu0
  %v2382 = vadd.f32 %v2183, %v2381
  %v2383 = vpop.f32.mrb[0].mxu0
  %2384 = vmatprep.mubr.bf16.mxu0 0
  %2385 = vmatmul.mubr.bf16.gmra.mrb[0].mxu0 %v2162
  %v2386 = vpop.f32.mrb[0].mxu0
  %v2387 = vadd.f32 %v2183, %v2386
  %v2388 = vpop.f32.mrb[0].mxu0
  %v2389 = vpop.f32.mrb[0].mxu0
  %v2390 = vadd.f32 %v2183, %v2389
  %v2391 = vpop.f32.mrb[0].mxu0
  %2392 = vdwg.mxu0
  %2393 = vadd.xlane.f32.xlu0 %v2267
  %v2394 = vpop.xlane.xlu0 %2393
  %2395 = vadd.xlane.f32.xlu0 %v2270
  %v2396 = vpop.xlane.xlu0 %2395
  %2397 = vadd.xlane.f32.xlu0 %v2275
  %v2398 = vpop.xlane.xlu0 %2397
  %2399 = vadd.xlane.f32.xlu0 %v2278
  %v2400 = vpop.xlane.xlu0 %2399
  %2401 = vadd.xlane.f32.xlu0 %v2283
  %v2402 = vpop.xlane.xlu0 %2401
  %2403 = vadd.xlane.f32.xlu0 %v2286
  %v2404 = vpop.xlane.xlu0 %2403
  %2405 = vadd.xlane.f32.xlu0 %v2291
  %v2406 = vpop.xlane.xlu0 %2405
  %2407 = vadd.xlane.f32.xlu0 %v2294
  %v2408 = vpop.xlane.xlu0 %2407
  %2409 = vadd.xlane.f32.xlu0 %v2299
  %v2410 = vpop.xlane.xlu0 %2409
  %2411 = vadd.xlane.f32.xlu0 %v2302
  %v2412 = vpop.xlane.xlu0 %2411
  %2413 = vadd.xlane.f32.xlu0 %v2307
  %v2414 = vpop.xlane.xlu0 %2413
  %2415 = vadd.xlane.f32.xlu0 %v2310
  %v2416 = vpop.xlane.xlu0 %2415
  %2417 = vadd.xlane.f32.xlu0 %v2315
  %v2418 = vpop.xlane.xlu0 %2417
  %2419 = vadd.xlane.f32.xlu0 %v2318
  %v2420 = vpop.xlane.xlu0 %2419
  %2421 = vadd.xlane.f32.xlu0 %v2323
  %v2422 = vpop.xlane.xlu0 %2421
  %2423 = vadd.xlane.f32.xlu0 %v2326
  %v2424 = vpop.xlane.xlu0 %2423
  %2425 = vadd.xlane.f32.xlu0 %v2331
  %v2426 = vpop.xlane.xlu0 %2425
  %2427 = vadd.xlane.f32.xlu0 %v2334
  %v2428 = vpop.xlane.xlu0 %2427
  %2429 = vadd.xlane.f32.xlu0 %v2339
  %v2430 = vpop.xlane.xlu0 %2429
  %2431 = vadd.xlane.f32.xlu0 %v2342
  %v2432 = vpop.xlane.xlu0 %2431
  %2433 = vadd.xlane.f32.xlu0 %v2347
  %v2434 = vpop.xlane.xlu0 %2433
  %2435 = vadd.xlane.f32.xlu0 %v2350
  %v2436 = vpop.xlane.xlu0 %2435
  %2437 = vadd.xlane.f32.xlu0 %v2355
  %v2438 = vpop.xlane.xlu0 %2437
  %2439 = vadd.xlane.f32.xlu0 %v2358
  %v2440 = vpop.xlane.xlu0 %2439
  %2441 = vadd.xlane.f32.xlu0 %v2363
  %v2442 = vpop.xlane.xlu0 %2441
  %2443 = vadd.xlane.f32.xlu0 %v2366
  %v2444 = vpop.xlane.xlu0 %2443
  %2445 = vadd.xlane.f32.xlu0 %v2371
  %v2446 = vpop.xlane.xlu0 %2445
  %2447 = vadd.xlane.f32.xlu0 %v2374
  %v2448 = vpop.xlane.xlu0 %2447
  %2449 = vadd.xlane.f32.xlu0 %v2379
  %v2450 = vpop.xlane.xlu0 %2449
  %2451 = vadd.xlane.f32.xlu0 %v2382
  %v2452 = vpop.xlane.xlu0 %2451
  %2453 = vadd.xlane.f32.xlu0 %v2387
  %v2454 = vpop.xlane.xlu0 %2453
  %2455 = vadd.xlane.f32.xlu0 %v2390
  %v2456 = vpop.xlane.xlu0 %2455
  %v2457 = vmul.f32 %v2394, %v1053
  %v2458 = vmul.f32 %v2396, %v1053
  %v2459 = vmul.f32 %v2398, %v1053
  %v2460 = vmul.f32 %v2400, %v1053
  %v2461 = vmul.f32 %v2402, %v1053
  %v2462 = vmul.f32 %v2404, %v1053
  %v2463 = vmul.f32 %v2406, %v1053
  %v2464 = vmul.f32 %v2408, %v1053
  %v2465 = vmul.f32 %v2410, %v1053
  %v2466 = vmul.f32 %v2412, %v1053
  %v2467 = vmul.f32 %v2414, %v1053
  %v2468 = vmul.f32 %v2416, %v1053
  %v2469 = vmul.f32 %v2418, %v1053
  %v2470 = vmul.f32 %v2420, %v1053
  %v2471 = vmul.f32 %v2422, %v1053
  %v2472 = vmul.f32 %v2424, %v1053
  %v2473 = vmul.f32 %v2426, %v1053
  %v2474 = vmul.f32 %v2428, %v1053
  %v2475 = vmul.f32 %v2430, %v1053
  %v2476 = vmul.f32 %v2432, %v1053
  %v2477 = vmul.f32 %v2434, %v1053
  %v2478 = vmul.f32 %v2436, %v1053
  %v2479 = vmul.f32 %v2438, %v1053
  %v2480 = vmul.f32 %v2440, %v1053
  %v2481 = vmul.f32 %v2442, %v1053
  %v2482 = vmul.f32 %v2444, %v1053
  %v2483 = vmul.f32 %v2446, %v1053
  %v2484 = vmul.f32 %v2448, %v1053
  %v2485 = vmul.f32 %v2450, %v1053
  %v2486 = vmul.f32 %v2452, %v1053
  %v2487 = vmul.f32 %v2454, %v1053
  %v2488 = vmul.f32 %v2456, %v1053
  %v2489 = vsub.f32 %v2267, %v2457
  %v2490 = vsub.f32 %v2270, %v2458
  %v2491 = vsub.f32 %v2275, %v2459
  %v2492 = vsub.f32 %v2278, %v2460
  %v2493 = vsub.f32 %v2283, %v2461
  %v2494 = vsub.f32 %v2286, %v2462
  %v2495 = vsub.f32 %v2291, %v2463
  %v2496 = vsub.f32 %v2294, %v2464
  %v2497 = vsub.f32 %v2299, %v2465
  %v2498 = vsub.f32 %v2302, %v2466
  %v2499 = vsub.f32 %v2307, %v2467
  %v2500 = vsub.f32 %v2310, %v2468
  %v2501 = vsub.f32 %v2315, %v2469
  %v2502 = vsub.f32 %v2318, %v2470
  %v2503 = vsub.f32 %v2323, %v2471
  %v2504 = vsub.f32 %v2326, %v2472
  %v2505 = vsub.f32 %v2331, %v2473
  %v2506 = vsub.f32 %v2334, %v2474
  %v2507 = vsub.f32 %v2339, %v2475
  %v2508 = vsub.f32 %v2342, %v2476
  %v2509 = vsub.f32 %v2347, %v2477
  %v2510 = vsub.f32 %v2350, %v2478
  %v2511 = vsub.f32 %v2355, %v2479
  %v2512 = vsub.f32 %v2358, %v2480
  %v2513 = vsub.f32 %v2363, %v2481
  %v2514 = vsub.f32 %v2366, %v2482
  %v2515 = vsub.f32 %v2371, %v2483
  %v2516 = vsub.f32 %v2374, %v2484
  %v2517 = vsub.f32 %v2379, %v2485
  %v2518 = vsub.f32 %v2382, %v2486
  %v2519 = vsub.f32 %v2387, %v2487
  %v2520 = vsub.f32 %v2390, %v2488
  %v2521 = vmul.f32 %v2489, %v2489
  %v2522 = vmul.f32 %v2490, %v2490
  %v2523 = vmul.f32 %v2491, %v2491
  %v2524 = vmul.f32 %v2492, %v2492
  %v2525 = vmul.f32 %v2493, %v2493
  %v2526 = vmul.f32 %v2494, %v2494
  %v2527 = vmul.f32 %v2495, %v2495
  %v2528 = vmul.f32 %v2496, %v2496
  %v2529 = vmul.f32 %v2497, %v2497
  %v2530 = vmul.f32 %v2498, %v2498
  %v2531 = vmul.f32 %v2499, %v2499
  %v2532 = vmul.f32 %v2500, %v2500
  %v2533 = vmul.f32 %v2501, %v2501
  %v2534 = vmul.f32 %v2502, %v2502
  %v2535 = vmul.f32 %v2503, %v2503
  %v2536 = vmul.f32 %v2504, %v2504
  %v2537 = vmul.f32 %v2505, %v2505
  %v2538 = vmul.f32 %v2506, %v2506
  %v2539 = vmul.f32 %v2507, %v2507
  %v2540 = vmul.f32 %v2508, %v2508
  %v2541 = vmul.f32 %v2509, %v2509
  %v2542 = vmul.f32 %v2510, %v2510
  %v2543 = vmul.f32 %v2511, %v2511
  %v2544 = vmul.f32 %v2512, %v2512
  %v2545 = vmul.f32 %v2513, %v2513
  %v2546 = vmul.f32 %v2514, %v2514
  %v2547 = vmul.f32 %v2515, %v2515
  %v2548 = vmul.f32 %v2516, %v2516
  %v2549 = vmul.f32 %v2517, %v2517
  %v2550 = vmul.f32 %v2518, %v2518
  %v2551 = vmul.f32 %v2519, %v2519
  %v2552 = vmul.f32 %v2520, %v2520
  %2553 = vadd.xlane.f32.xlu0 %v2521
  %v2554 = vpop.xlane.xlu0 %2553
  %2555 = vadd.xlane.f32.xlu0 %v2522
  %v2556 = vpop.xlane.xlu0 %2555
  %2557 = vadd.xlane.f32.xlu0 %v2523
  %v2558 = vpop.xlane.xlu0 %2557
  %2559 = vadd.xlane.f32.xlu0 %v2524
  %v2560 = vpop.xlane.xlu0 %2559
  %2561 = vadd.xlane.f32.xlu0 %v2525
  %v2562 = vpop.xlane.xlu0 %2561
  %2563 = vadd.xlane.f32.xlu0 %v2526
  %v2564 = vpop.xlane.xlu0 %2563
  %2565 = vadd.xlane.f32.xlu0 %v2527
  %v2566 = vpop.xlane.xlu0 %2565
  %2567 = vadd.xlane.f32.xlu0 %v2528
  %v2568 = vpop.xlane.xlu0 %2567
  %2569 = vadd.xlane.f32.xlu0 %v2529
  %v2570 = vpop.xlane.xlu0 %2569
  %2571 = vadd.xlane.f32.xlu0 %v2530
  %v2572 = vpop.xlane.xlu0 %2571
  %2573 = vadd.xlane.f32.xlu0 %v2531
  %v2574 = vpop.xlane.xlu0 %2573
  %2575 = vadd.xlane.f32.xlu0 %v2532
  %v2576 = vpop.xlane.xlu0 %2575
  %2577 = vadd.xlane.f32.xlu0 %v2533
  %v2578 = vpop.xlane.xlu0 %2577
  %2579 = vadd.xlane.f32.xlu0 %v2534
  %v2580 = vpop.xlane.xlu0 %2579
  %2581 = vadd.xlane.f32.xlu0 %v2535
  %v2582 = vpop.xlane.xlu0 %2581
  %2583 = vadd.xlane.f32.xlu0 %v2536
  %v2584 = vpop.xlane.xlu0 %2583
  %2585 = vadd.xlane.f32.xlu0 %v2537
  %v2586 = vpop.xlane.xlu0 %2585
  %2587 = vadd.xlane.f32.xlu0 %v2538
  %v2588 = vpop.xlane.xlu0 %2587
  %2589 = vadd.xlane.f32.xlu0 %v2539
  %v2590 = vpop.xlane.xlu0 %2589
  %2591 = vadd.xlane.f32.xlu0 %v2540
  %v2592 = vpop.xlane.xlu0 %2591
  %2593 = vadd.xlane.f32.xlu0 %v2541
  %v2594 = vpop.xlane.xlu0 %2593
  %2595 = vadd.xlane.f32.xlu0 %v2542
  %v2596 = vpop.xlane.xlu0 %2595
  %2597 = vadd.xlane.f32.xlu0 %v2543
  %v2598 = vpop.xlane.xlu0 %2597
  %2599 = vadd.xlane.f32.xlu0 %v2544
  %v2600 = vpop.xlane.xlu0 %2599
  %2601 = vadd.xlane.f32.xlu0 %v2545
  %v2602 = vpop.xlane.xlu0 %2601
  %2603 = vadd.xlane.f32.xlu0 %v2546
  %v2604 = vpop.xlane.xlu0 %2603
  %2605 = vadd.xlane.f32.xlu0 %v2547
  %v2606 = vpop.xlane.xlu0 %2605
  %2607 = vadd.xlane.f32.xlu0 %v2548
  %v2608 = vpop.xlane.xlu0 %2607
  %2609 = vadd.xlane.f32.xlu0 %v2549
  %v2610 = vpop.xlane.xlu0 %2609
  %2611 = vadd.xlane.f32.xlu0 %v2550
  %v2612 = vpop.xlane.xlu0 %2611
  %2613 = vadd.xlane.f32.xlu0 %v2551
  %v2614 = vpop.xlane.xlu0 %2613
  %2615 = vadd.xlane.f32.xlu0 %v2552
  %v2616 = vpop.xlane.xlu0 %2615
  %v2617 = vmul.f32 %v2554, %v1053
  %v2618 = vmul.f32 %v2556, %v1053
  %v2619 = vmul.f32 %v2558, %v1053
  %v2620 = vmul.f32 %v2560, %v1053
  %v2621 = vmul.f32 %v2562, %v1053
  %v2622 = vmul.f32 %v2564, %v1053
  %v2623 = vmul.f32 %v2566, %v1053
  %v2624 = vmul.f32 %v2568, %v1053
  %v2625 = vmul.f32 %v2570, %v1053
  %v2626 = vmul.f32 %v2572, %v1053
  %v2627 = vmul.f32 %v2574, %v1053
  %v2628 = vmul.f32 %v2576, %v1053
  %v2629 = vmul.f32 %v2578, %v1053
  %v2630 = vmul.f32 %v2580, %v1053
  %v2631 = vmul.f32 %v2582, %v1053
  %v2632 = vmul.f32 %v2584, %v1053
  %v2633 = vmul.f32 %v2586, %v1053
  %v2634 = vmul.f32 %v2588, %v1053
  %v2635 = vmul.f32 %v2590, %v1053
  %v2636 = vmul.f32 %v2592, %v1053
  %v2637 = vmul.f32 %v2594, %v1053
  %v2638 = vmul.f32 %v2596, %v1053
  %v2639 = vmul.f32 %v2598, %v1053
  %v2640 = vmul.f32 %v2600, %v1053
  %v2641 = vmul.f32 %v2602, %v1053
  %v2642 = vmul.f32 %v2604, %v1053
  %v2643 = vmul.f32 %v2606, %v1053
  %v2644 = vmul.f32 %v2608, %v1053
  %v2645 = vmul.f32 %v2610, %v1053
  %v2646 = vmul.f32 %v2612, %v1053
  %v2647 = vmul.f32 %v2614, %v1053
  %v2648 = vmul.f32 %v2616, %v1053
  %v2649 = vadd.f32 %v2617, 1e-05
  %v2650 = vadd.f32 %v2618, 1e-05
  %v2651 = vadd.f32 %v2619, 1e-05
  %v2652 = vadd.f32 %v2620, 1e-05
  %v2653 = vadd.f32 %v2621, 1e-05
  %v2654 = vadd.f32 %v2622, 1e-05
  %v2655 = vadd.f32 %v2623, 1e-05
  %v2656 = vadd.f32 %v2624, 1e-05
  %v2657 = vadd.f32 %v2625, 1e-05
  %v2658 = vadd.f32 %v2626, 1e-05
  %v2659 = vadd.f32 %v2627, 1e-05
  %v2660 = vadd.f32 %v2628, 1e-05
  %v2661 = vadd.f32 %v2629, 1e-05
  %v2662 = vadd.f32 %v2630, 1e-05
  %v2663 = vadd.f32 %v2631, 1e-05
  %v2664 = vadd.f32 %v2632, 1e-05
  %v2665 = vadd.f32 %v2633, 1e-05
  %v2666 = vadd.f32 %v2634, 1e-05
  %v2667 = vadd.f32 %v2635, 1e-05
  %v2668 = vadd.f32 %v2636, 1e-05
  %v2669 = vadd.f32 %v2637, 1e-05
  %v2670 = vadd.f32 %v2638, 1e-05
  %v2671 = vadd.f32 %v2639, 1e-05
  %v2672 = vadd.f32 %v2640, 1e-05
  %v2673 = vadd.f32 %v2641, 1e-05
  %v2674 = vadd.f32 %v2642, 1e-05
  %v2675 = vadd.f32 %v2643, 1e-05
  %v2676 = vadd.f32 %v2644, 1e-05
  %v2677 = vadd.f32 %v2645, 1e-05
  %v2678 = vadd.f32 %v2646, 1e-05
  %v2679 = vadd.f32 %v2647, 1e-05
  %v2680 = vadd.f32 %v2648, 1e-05
  %v2681 = vrsqrt.pop %v2649
  %v2682 = vrsqrt.pop %v2650
  %v2683 = vrsqrt.pop %v2651
  %v2684 = vrsqrt.pop %v2652
  %v2685 = vrsqrt.pop %v2653
  %v2686 = vrsqrt.pop %v2654
  %v2687 = vrsqrt.pop %v2655
  %v2688 = vrsqrt.pop %v2656
  %v2689 = vrsqrt.pop %v2657
  %v2690 = vrsqrt.pop %v2658
  %v2691 = vrsqrt.pop %v2659
  %v2692 = vrsqrt.pop %v2660
  %v2693 = vrsqrt.pop %v2661
  %v2694 = vrsqrt.pop %v2662
  %v2695 = vrsqrt.pop %v2663
  %v2696 = vrsqrt.pop %v2664
  %v2697 = vrsqrt.pop %v2665
  %v2698 = vrsqrt.pop %v2666
  %v2699 = vrsqrt.pop %v2667
  %v2700 = vrsqrt.pop %v2668
  %v2701 = vrsqrt.pop %v2669
  %v2702 = vrsqrt.pop %v2670
  %v2703 = vrsqrt.pop %v2671
  %v2704 = vrsqrt.pop %v2672
  %v2705 = vrsqrt.pop %v2673
  %v2706 = vrsqrt.pop %v2674
  %v2707 = vrsqrt.pop %v2675
  %v2708 = vrsqrt.pop %v2676
  %v2709 = vrsqrt.pop %v2677
  %v2710 = vrsqrt.pop %v2678
  %v2711 = vrsqrt.pop %v2679
  %v2712 = vrsqrt.pop %v2680
  %v2713 = vmul.f32 %v2489, %v2681
  %v2714 = vmul.f32 %v2490, %v2682
  %v2715 = vmul.f32 %v2491, %v2683
  %v2716 = vmul.f32 %v2492, %v2684
  %v2717 = vmul.f32 %v2493, %v2685
  %v2718 = vmul.f32 %v2494, %v2686
  %v2719 = vmul.f32 %v2495, %v2687
  %v2720 = vmul.f32 %v2496, %v2688
  %v2721 = vmul.f32 %v2497, %v2689
  %v2722 = vmul.f32 %v2498, %v2690
  %v2723 = vmul.f32 %v2499, %v2691
  %v2724 = vmul.f32 %v2500, %v2692
  %v2725 = vmul.f32 %v2501, %v2693
  %v2726 = vmul.f32 %v2502, %v2694
  %v2727 = vmul.f32 %v2503, %v2695
  %v2728 = vmul.f32 %v2504, %v2696
  %v2729 = vmul.f32 %v2505, %v2697
  %v2730 = vmul.f32 %v2506, %v2698
  %v2731 = vmul.f32 %v2507, %v2699
  %v2732 = vmul.f32 %v2508, %v2700
  %v2733 = vmul.f32 %v2509, %v2701
  %v2734 = vmul.f32 %v2510, %v2702
  %v2735 = vmul.f32 %v2511, %v2703
  %v2736 = vmul.f32 %v2512, %v2704
  %v2737 = vmul.f32 %v2513, %v2705
  %v2738 = vmul.f32 %v2514, %v2706
  %v2739 = vmul.f32 %v2515, %v2707
  %v2740 = vmul.f32 %v2516, %v2708
  %v2741 = vmul.f32 %v2517, %v2709
  %v2742 = vmul.f32 %v2518, %v2710
  %v2743 = vmul.f32 %v2519, %v2711
  %v2744 = vmul.f32 %v2520, %v2712
  %v2745 = vlaneseq
  %v2746 = vshrl.u32 %v2745, 7
  %v2747 = vsub.s32 7, %v2746
  %v2748 = vrot.slane %v21, %v2747
  %v2749 = vmul.f32 %v2713, %v2748
  %v2750 = vmul.f32 %v2714, %v2748
  %v2751 = vmul.f32 %v2715, %v2748
  %v2752 = vmul.f32 %v2716, %v2748
  %v2753 = vmul.f32 %v2717, %v2748
  %v2754 = vmul.f32 %v2718, %v2748
  %v2755 = vmul.f32 %v2719, %v2748
  %v2756 = vmul.f32 %v2720, %v2748
  %v2757 = vmul.f32 %v2721, %v2748
  %v2758 = vmul.f32 %v2722, %v2748
  %v2759 = vmul.f32 %v2723, %v2748
  %v2760 = vmul.f32 %v2724, %v2748
  %v2761 = vmul.f32 %v2725, %v2748
  %v2762 = vmul.f32 %v2726, %v2748
  %v2763 = vmul.f32 %v2727, %v2748
  %v2764 = vmul.f32 %v2728, %v2748
  %v2765 = vmul.f32 %v2729, %v2748
  %v2766 = vmul.f32 %v2730, %v2748
  %v2767 = vmul.f32 %v2731, %v2748
  %v2768 = vmul.f32 %v2732, %v2748
  %v2769 = vmul.f32 %v2733, %v2748
  %v2770 = vmul.f32 %v2734, %v2748
  %v2771 = vmul.f32 %v2735, %v2748
  %v2772 = vmul.f32 %v2736, %v2748
  %v2773 = vmul.f32 %v2737, %v2748
  %v2774 = vmul.f32 %v2738, %v2748
  %v2775 = vmul.f32 %v2739, %v2748
  %v2776 = vmul.f32 %v2740, %v2748
  %v2777 = vmul.f32 %v2741, %v2748
  %v2778 = vmul.f32 %v2742, %v2748
  %v2779 = vmul.f32 %v2743, %v2748
  %v2780 = vmul.f32 %v2744, %v2748
  %v2781 = vlaneseq
  %v2782 = vshrl.u32 %v2781, 7
  %v2783 = vsub.s32 0, %v2782
  %v2784 = vrot.slane %v22, %v2783
  %v2785 = vadd.f32 %v2749, %v2784
  %v2786 = vadd.f32 %v2750, %v2784
  %v2787 = vadd.f32 %v2751, %v2784
  %v2788 = vadd.f32 %v2752, %v2784
  %v2789 = vadd.f32 %v2753, %v2784
  %v2790 = vadd.f32 %v2754, %v2784
  %v2791 = vadd.f32 %v2755, %v2784
  %v2792 = vadd.f32 %v2756, %v2784
  %v2793 = vadd.f32 %v2757, %v2784
  %v2794 = vadd.f32 %v2758, %v2784
  %v2795 = vadd.f32 %v2759, %v2784
  %v2796 = vadd.f32 %v2760, %v2784
  %v2797 = vadd.f32 %v2761, %v2784
  %v2798 = vadd.f32 %v2762, %v2784
  %v2799 = vadd.f32 %v2763, %v2784
  %v2800 = vadd.f32 %v2764, %v2784
  %v2801 = vadd.f32 %v2765, %v2784
  %v2802 = vadd.f32 %v2766, %v2784
  %v2803 = vadd.f32 %v2767, %v2784
  %v2804 = vadd.f32 %v2768, %v2784
  %v2805 = vadd.f32 %v2769, %v2784
  %v2806 = vadd.f32 %v2770, %v2784
  %v2807 = vadd.f32 %v2771, %v2784
  %v2808 = vadd.f32 %v2772, %v2784
  %v2809 = vadd.f32 %v2773, %v2784
  %v2810 = vadd.f32 %v2774, %v2784
  %v2811 = vadd.f32 %v2775, %v2784
  %v2812 = vadd.f32 %v2776, %v2784
  %v2813 = vadd.f32 %v2777, %v2784
  %v2814 = vadd.f32 %v2778, %v2784
  %v2815 = vadd.f32 %v2779, %v2784
  %v2816 = vadd.f32 %v2780, %v2784
  %v2817 = vmax.f32 %v2785, 0.0
  %v2818 = vmax.f32 %v2786, 0.0
  %v2819 = vmax.f32 %v2787, 0.0
  %v2820 = vmax.f32 %v2788, 0.0
  %v2821 = vmax.f32 %v2789, 0.0
  %v2822 = vmax.f32 %v2790, 0.0
  %v2823 = vmax.f32 %v2791, 0.0
  %v2824 = vmax.f32 %v2792, 0.0
  %v2825 = vmax.f32 %v2793, 0.0
  %v2826 = vmax.f32 %v2794, 0.0
  %v2827 = vmax.f32 %v2795, 0.0
  %v2828 = vmax.f32 %v2796, 0.0
  %v2829 = vmax.f32 %v2797, 0.0
  %v2830 = vmax.f32 %v2798, 0.0
  %v2831 = vmax.f32 %v2799, 0.0
  %v2832 = vmax.f32 %v2800, 0.0
  %v2833 = vmax.f32 %v2801, 0.0
  %v2834 = vmax.f32 %v2802, 0.0
  %v2835 = vmax.f32 %v2803, 0.0
  %v2836 = vmax.f32 %v2804, 0.0
  %v2837 = vmax.f32 %v2805, 0.0
  %v2838 = vmax.f32 %v2806, 0.0
  %v2839 = vmax.f32 %v2807, 0.0
  %v2840 = vmax.f32 %v2808, 0.0
  %v2841 = vmax.f32 %v2809, 0.0
  %v2842 = vmax.f32 %v2810, 0.0
  %v2843 = vmax.f32 %v2811, 0.0
  %v2844 = vmax.f32 %v2812, 0.0
  %v2845 = vmax.f32 %v2813, 0.0
  %v2846 = vmax.f32 %v2814, 0.0
  %v2847 = vmax.f32 %v2815, 0.0
  %v2848 = vmax.f32 %v2816, 0.0
  %v2849 = vpack.c.bf16 %v2818, %v2817
  %v2850 = vpack.c.bf16 %v2820, %v2819
  %v2851 = vpack.c.bf16 %v2822, %v2821
  %v2852 = vpack.c.bf16 %v2824, %v2823
  %v2853 = vpack.c.bf16 %v2826, %v2825
  %v2854 = vpack.c.bf16 %v2828, %v2827
  %v2855 = vpack.c.bf16 %v2830, %v2829
  %v2856 = vpack.c.bf16 %v2832, %v2831
  %v2857 = vpack.c.bf16 %v2834, %v2833
  %v2858 = vpack.c.bf16 %v2836, %v2835
  %v2859 = vpack.c.bf16 %v2838, %v2837
  %v2860 = vpack.c.bf16 %v2840, %v2839
  %v2861 = vpack.c.bf16 %v2842, %v2841
  %v2862 = vpack.c.bf16 %v2844, %v2843
  %v2863 = vpack.c.bf16 %v2846, %v2845
  %v2864 = vpack.c.bf16 %v2848, %v2847
  %s2865 = scalar_lea.vmem %s2, 128
  %v2866 = vld [vmem:[%s2865] sm:$0xf]
  %v2867 = vld [vmem:[%s2865 + $0x4] sm:$0xf]
  %v2868 = vld [vmem:[%s2865 + $0x8] sm:$0xf]
  %v2869 = vld [vmem:[%s2865 + $0xc] sm:$0xf]
  %v2870 = vld [vmem:[%s2865 + $0x10] sm:$0xf]
  %v2871 = vld [vmem:[%s2865 + $0x14] sm:$0xf]
  %v2872 = vld [vmem:[%s2865 + $0x18] sm:$0xf]
  %v2873 = vld [vmem:[%s2865 + $0x1c] sm:$0xf]
  %v2874 = vld [vmem:[%s2865 + $0x20] sm:$0xf]
  %v2875 = vld [vmem:[%s2865 + $0x24] sm:$0xf]
  %v2876 = vld [vmem:[%s2865 + $0x28] sm:$0xf]
  %v2877 = vld [vmem:[%s2865 + $0x2c] sm:$0xf]
  %v2878 = vld [vmem:[%s2865 + $0x30] sm:$0xf]
  %v2879 = vld [vmem:[%s2865 + $0x34] sm:$0xf]
  %v2880 = vld [vmem:[%s2865 + $0x38] sm:$0xf]
  %v2881 = vld [vmem:[%s2865 + $0x3c] sm:$0xf]
  %v2882 = vlaneseq
  %v2883 = vshrl.u32 %v2882, 7
  %v2884 = vsub.s32 1, %v2883
  %v2885 = vrot.slane %v22, %v2884
  %v2902 = vunpack.c.l.b16 %v2866
  %v2903 = vunpack.c.l.b16 %v2867
  %v2904 = vunpack.c.l.b16 %v2868
  %v2905 = vunpack.c.l.b16 %v2869
  %v2906 = vunpack.c.l.b16 %v2870
  %v2907 = vunpack.c.l.b16 %v2871
  %v2908 = vunpack.c.l.b16 %v2872
  %v2909 = vunpack.c.l.b16 %v2873
  %v2910 = vunpack.c.l.b16 %v2874
  %v2911 = vunpack.c.l.b16 %v2875
  %v2912 = vunpack.c.l.b16 %v2876
  %v2913 = vunpack.c.l.b16 %v2877
  %v2914 = vunpack.c.l.b16 %v2878
  %v2915 = vunpack.c.l.b16 %v2879
  %v2916 = vunpack.c.l.b16 %v2880
  %v2917 = vunpack.c.l.b16 %v2881
  %v2918 = vpack.c.b16 %v2903, %v2902
  %v2919 = vpack.c.b16 %v2905, %v2904
  %v2920 = vpack.c.b16 %v2907, %v2906
  %v2921 = vpack.c.b16 %v2909, %v2908
  %v2922 = vpack.c.b16 %v2911, %v2910
  %v2923 = vpack.c.b16 %v2913, %v2912
  %v2924 = vpack.c.b16 %v2915, %v2914
  %v2925 = vpack.c.b16 %v2917, %v2916
  %2934 = vmatprep.subr.bf16.mxu0 0
  %2935 = vmatpush1.bf16.msra.mxu0 %v2918
  %2936 = vmatprep.subr.bf16.mxu0 0
  %2937 = vmatpush1.bf16.msra.mxu0 %v2919
  %2938 = vmatprep.subr.bf16.mxu0 0
  %2939 = vmatpush1.bf16.msra.mxu0 %v2920
  %2940 = vmatprep.subr.bf16.mxu0 0
  %2941 = vmatpush1.bf16.msra.mxu0 %v2921
  %2942 = vmatprep.subr.bf16.mxu0 0
  %2943 = vmatpush1.bf16.msra.mxu0 %v2922
  %2944 = vmatprep.subr.bf16.mxu0 0
  %2945 = vmatpush1.bf16.msra.mxu0 %v2923
  %2946 = vmatprep.subr.bf16.mxu0 0
  %2947 = vmatpush1.bf16.msra.mxu0 %v2924
  %2948 = vmatprep.subr.bf16.mxu0 0
  %2949 = vmatpush1.bf16.msra.mxu0 %v2925
  %2950 = vmatprep.subr.bf16.mxu0 0
  %2951 = vmatpush1.bf16.msra.mxu0 0
  %2952 = vmatprep.subr.bf16.mxu0 0
  %2953 = vmatpush1.bf16.msra.mxu0 0
  %2954 = vmatprep.subr.bf16.mxu0 0
  %2955 = vmatpush1.bf16.msra.mxu0 0
  %2956 = vmatprep.subr.bf16.mxu0 0
  %2957 = vmatpush1.bf16.msra.mxu0 0
  %2958 = vmatprep.subr.bf16.mxu0 0
  %2959 = vmatpush1.bf16.msra.mxu0 0
  %2960 = vmatprep.subr.bf16.mxu0 0
  %2961 = vmatpush1.bf16.msra.mxu0 0
  %2962 = vmatprep.subr.bf16.mxu0 0
  %2963 = vmatpush1.bf16.msra.mxu0 0
  %2964 = vmatprep.subr.bf16.mxu0 0
  %2965 = vmatpush1.bf16.msra.mxu0 0
  %2966 = vmatprep.mubr.bf16.mxu0 0
  %2967 = vmatmul.mubr.bf16.gmra.mrb[0].mxu0 %v2849
  %v2968 = vpop.f32.mrb[0].mxu0
  %v2969 = vadd.f32 %v2885, %v2968
  %v2970 = vpop.f32.mrb[0].mxu0
  %v2971 = vpop.f32.mrb[0].mxu0
  %v2972 = vadd.f32 %v2885, %v2971
  %v2973 = vpop.f32.mrb[0].mxu0
  %2974 = vmatprep.mubr.bf16.mxu0 0
  %2975 = vmatmul.mubr.bf16.gmra.mrb[0].mxu0 %v2850
  %v2976 = vpop.f32.mrb[0].mxu0
  %v2977 = vadd.f32 %v2885, %v2976
  %v2978 = vpop.f32.mrb[0].mxu0
  %v2979 = vpop.f32.mrb[0].mxu0
  %v2980 = vadd.f32 %v2885, %v2979
  %v2981 = vpop.f32.mrb[0].mxu0
  %2982 = vmatprep.mubr.bf16.mxu0 0
  %2983 = vmatmul.mubr.bf16.gmra.mrb[0].mxu0 %v2851
  %v2984 = vpop.f32.mrb[0].mxu0
  %v2985 = vadd.f32 %v2885, %v2984
  %v2986 = vpop.f32.mrb[0].mxu0
  %v2987 = vpop.f32.mrb[0].mxu0
  %v2988 = vadd.f32 %v2885, %v2987
  %v2989 = vpop.f32.mrb[0].mxu0
  %2990 = vmatprep.mubr.bf16.mxu0 0
  %2991 = vmatmul.mubr.bf16.gmra.mrb[0].mxu0 %v2852
  %v2992 = vpop.f32.mrb[0].mxu0
  %v2993 = vadd.f32 %v2885, %v2992
  %v2994 = vpop.f32.mrb[0].mxu0
  %v2995 = vpop.f32.mrb[0].mxu0
  %v2996 = vadd.f32 %v2885, %v2995
  %v2997 = vpop.f32.mrb[0].mxu0
  %2998 = vmatprep.mubr.bf16.mxu0 0
  %2999 = vmatmul.mubr.bf16.gmra.mrb[0].mxu0 %v2853
  %v3000 = vpop.f32.mrb[0].mxu0
  %v3001 = vadd.f32 %v2885, %v3000
  %v3002 = vpop.f32.mrb[0].mxu0
  %v3003 = vpop.f32.mrb[0].mxu0
  %v3004 = vadd.f32 %v2885, %v3003
  %v3005 = vpop.f32.mrb[0].mxu0
  %3006 = vmatprep.mubr.bf16.mxu0 0
  %3007 = vmatmul.mubr.bf16.gmra.mrb[0].mxu0 %v2854
  %v3008 = vpop.f32.mrb[0].mxu0
  %v3009 = vadd.f32 %v2885, %v3008
  %v3010 = vpop.f32.mrb[0].mxu0
  %v3011 = vpop.f32.mrb[0].mxu0
  %v3012 = vadd.f32 %v2885, %v3011
  %v3013 = vpop.f32.mrb[0].mxu0
  %3014 = vmatprep.mubr.bf16.mxu0 0
  %3015 = vmatmul.mubr.bf16.gmra.mrb[0].mxu0 %v2855
  %v3016 = vpop.f32.mrb[0].mxu0
  %v3017 = vadd.f32 %v2885, %v3016
  %v3018 = vpop.f32.mrb[0].mxu0
  %v3019 = vpop.f32.mrb[0].mxu0
  %v3020 = vadd.f32 %v2885, %v3019
  %v3021 = vpop.f32.mrb[0].mxu0
  %3022 = vmatprep.mubr.bf16.mxu0 0
  %3023 = vmatmul.mubr.bf16.gmra.mrb[0].mxu0 %v2856
  %v3024 = vpop.f32.mrb[0].mxu0
  %v3025 = vadd.f32 %v2885, %v3024
  %v3026 = vpop.f32.mrb[0].mxu0
  %v3027 = vpop.f32.mrb[0].mxu0
  %v3028 = vadd.f32 %v2885, %v3027
  %v3029 = vpop.f32.mrb[0].mxu0
  %3030 = vmatprep.mubr.bf16.mxu0 0
  %3031 = vmatmul.mubr.bf16.gmra.mrb[0].mxu0 %v2857
  %v3032 = vpop.f32.mrb[0].mxu0
  %v3033 = vadd.f32 %v2885, %v3032
  %v3034 = vpop.f32.mrb[0].mxu0
  %v3035 = vpop.f32.mrb[0].mxu0
  %v3036 = vadd.f32 %v2885, %v3035
  %v3037 = vpop.f32.mrb[0].mxu0
  %3038 = vmatprep.mubr.bf16.mxu0 0
  %3039 = vmatmul.mubr.bf16.gmra.mrb[0].mxu0 %v2858
  %v3040 = vpop.f32.mrb[0].mxu0
  %v3041 = vadd.f32 %v2885, %v3040
  %v3042 = vpop.f32.mrb[0].mxu0
  %v3043 = vpop.f32.mrb[0].mxu0
  %v3044 = vadd.f32 %v2885, %v3043
  %v3045 = vpop.f32.mrb[0].mxu0
  %3046 = vmatprep.mubr.bf16.mxu0 0
  %3047 = vmatmul.mubr.bf16.gmra.mrb[0].mxu0 %v2859
  %v3048 = vpop.f32.mrb[0].mxu0
  %v3049 = vadd.f32 %v2885, %v3048
  %v3050 = vpop.f32.mrb[0].mxu0
  %v3051 = vpop.f32.mrb[0].mxu0
  %v3052 = vadd.f32 %v2885, %v3051
  %v3053 = vpop.f32.mrb[0].mxu0
  %3054 = vmatprep.mubr.bf16.mxu0 0
  %3055 = vmatmul.mubr.bf16.gmra.mrb[0].mxu0 %v2860
  %v3056 = vpop.f32.mrb[0].mxu0
  %v3057 = vadd.f32 %v2885, %v3056
  %v3058 = vpop.f32.mrb[0].mxu0
  %v3059 = vpop.f32.mrb[0].mxu0
  %v3060 = vadd.f32 %v2885, %v3059
  %v3061 = vpop.f32.mrb[0].mxu0
  %3062 = vmatprep.mubr.bf16.mxu0 0
  %3063 = vmatmul.mubr.bf16.gmra.mrb[0].mxu0 %v2861
  %v3064 = vpop.f32.mrb[0].mxu0
  %v3065 = vadd.f32 %v2885, %v3064
  %v3066 = vpop.f32.mrb[0].mxu0
  %v3067 = vpop.f32.mrb[0].mxu0
  %v3068 = vadd.f32 %v2885, %v3067
  %v3069 = vpop.f32.mrb[0].mxu0
  %3070 = vmatprep.mubr.bf16.mxu0 0
  %3071 = vmatmul.mubr.bf16.gmra.mrb[0].mxu0 %v2862
  %v3072 = vpop.f32.mrb[0].mxu0
  %v3073 = vadd.f32 %v2885, %v3072
  %v3074 = vpop.f32.mrb[0].mxu0
  %v3075 = vpop.f32.mrb[0].mxu0
  %v3076 = vadd.f32 %v2885, %v3075
  %v3077 = vpop.f32.mrb[0].mxu0
  %3078 = vmatprep.mubr.bf16.mxu0 0
  %3079 = vmatmul.mubr.bf16.gmra.mrb[0].mxu0 %v2863
  %v3080 = vpop.f32.mrb[0].mxu0
  %v3081 = vadd.f32 %v2885, %v3080
  %v3082 = vpop.f32.mrb[0].mxu0
  %v3083 = vpop.f32.mrb[0].mxu0
  %v3084 = vadd.f32 %v2885, %v3083
  %v3085 = vpop.f32.mrb[0].mxu0
  %3086 = vmatprep.mubr.bf16.mxu0 0
  %3087 = vmatmul.mubr.bf16.gmra.mrb[0].mxu0 %v2864
  %v3088 = vpop.f32.mrb[0].mxu0
  %v3089 = vadd.f32 %v2885, %v3088
  %v3090 = vpop.f32.mrb[0].mxu0
  %v3091 = vpop.f32.mrb[0].mxu0
  %v3092 = vadd.f32 %v2885, %v3091
  %v3093 = vpop.f32.mrb[0].mxu0
  %3094 = vdwg.mxu0
  %3095 = vadd.xlane.f32.xlu0 %v2969
  %v3096 = vpop.xlane.xlu0 %3095
  %3097 = vadd.xlane.f32.xlu0 %v2972
  %v3098 = vpop.xlane.xlu0 %3097
  %3099 = vadd.xlane.f32.xlu0 %v2977
  %v3100 = vpop.xlane.xlu0 %3099
  %3101 = vadd.xlane.f32.xlu0 %v2980
  %v3102 = vpop.xlane.xlu0 %3101
  %3103 = vadd.xlane.f32.xlu0 %v2985
  %v3104 = vpop.xlane.xlu0 %3103
  %3105 = vadd.xlane.f32.xlu0 %v2988
  %v3106 = vpop.xlane.xlu0 %3105
  %3107 = vadd.xlane.f32.xlu0 %v2993
  %v3108 = vpop.xlane.xlu0 %3107
  %3109 = vadd.xlane.f32.xlu0 %v2996
  %v3110 = vpop.xlane.xlu0 %3109
  %3111 = vadd.xlane.f32.xlu0 %v3001
  %v3112 = vpop.xlane.xlu0 %3111
  %3113 = vadd.xlane.f32.xlu0 %v3004
  %v3114 = vpop.xlane.xlu0 %3113
  %3115 = vadd.xlane.f32.xlu0 %v3009
  %v3116 = vpop.xlane.xlu0 %3115
  %3117 = vadd.xlane.f32.xlu0 %v3012
  %v3118 = vpop.xlane.xlu0 %3117
  %3119 = vadd.xlane.f32.xlu0 %v3017
  %v3120 = vpop.xlane.xlu0 %3119
  %3121 = vadd.xlane.f32.xlu0 %v3020
  %v3122 = vpop.xlane.xlu0 %3121
  %3123 = vadd.xlane.f32.xlu0 %v3025
  %v3124 = vpop.xlane.xlu0 %3123
  %3125 = vadd.xlane.f32.xlu0 %v3028
  %v3126 = vpop.xlane.xlu0 %3125
  %3127 = vadd.xlane.f32.xlu0 %v3033
  %v3128 = vpop.xlane.xlu0 %3127
  %3129 = vadd.xlane.f32.xlu0 %v3036
  %v3130 = vpop.xlane.xlu0 %3129
  %3131 = vadd.xlane.f32.xlu0 %v3041
  %v3132 = vpop.xlane.xlu0 %3131
  %3133 = vadd.xlane.f32.xlu0 %v3044
  %v3134 = vpop.xlane.xlu0 %3133
  %3135 = vadd.xlane.f32.xlu0 %v3049
  %v3136 = vpop.xlane.xlu0 %3135
  %3137 = vadd.xlane.f32.xlu0 %v3052
  %v3138 = vpop.xlane.xlu0 %3137
  %3139 = vadd.xlane.f32.xlu0 %v3057
  %v3140 = vpop.xlane.xlu0 %3139
  %3141 = vadd.xlane.f32.xlu0 %v3060
  %v3142 = vpop.xlane.xlu0 %3141
  %3143 = vadd.xlane.f32.xlu0 %v3065
  %v3144 = vpop.xlane.xlu0 %3143
  %3145 = vadd.xlane.f32.xlu0 %v3068
  %v3146 = vpop.xlane.xlu0 %3145
  %3147 = vadd.xlane.f32.xlu0 %v3073
  %v3148 = vpop.xlane.xlu0 %3147
  %3149 = vadd.xlane.f32.xlu0 %v3076
  %v3150 = vpop.xlane.xlu0 %3149
  %3151 = vadd.xlane.f32.xlu0 %v3081
  %v3152 = vpop.xlane.xlu0 %3151
  %3153 = vadd.xlane.f32.xlu0 %v3084
  %v3154 = vpop.xlane.xlu0 %3153
  %3155 = vadd.xlane.f32.xlu0 %v3089
  %v3156 = vpop.xlane.xlu0 %3155
  %3157 = vadd.xlane.f32.xlu0 %v3092
  %v3158 = vpop.xlane.xlu0 %3157
  %v3159 = vmul.f32 %v3096, %v1053
  %v3160 = vmul.f32 %v3098, %v1053
  %v3161 = vmul.f32 %v3100, %v1053
  %v3162 = vmul.f32 %v3102, %v1053
  %v3163 = vmul.f32 %v3104, %v1053
  %v3164 = vmul.f32 %v3106, %v1053
  %v3165 = vmul.f32 %v3108, %v1053
  %v3166 = vmul.f32 %v3110, %v1053
  %v3167 = vmul.f32 %v3112, %v1053
  %v3168 = vmul.f32 %v3114, %v1053
  %v3169 = vmul.f32 %v3116, %v1053
  %v3170 = vmul.f32 %v3118, %v1053
  %v3171 = vmul.f32 %v3120, %v1053
  %v3172 = vmul.f32 %v3122, %v1053
  %v3173 = vmul.f32 %v3124, %v1053
  %v3174 = vmul.f32 %v3126, %v1053
  %v3175 = vmul.f32 %v3128, %v1053
  %v3176 = vmul.f32 %v3130, %v1053
  %v3177 = vmul.f32 %v3132, %v1053
  %v3178 = vmul.f32 %v3134, %v1053
  %v3179 = vmul.f32 %v3136, %v1053
  %v3180 = vmul.f32 %v3138, %v1053
  %v3181 = vmul.f32 %v3140, %v1053
  %v3182 = vmul.f32 %v3142, %v1053
  %v3183 = vmul.f32 %v3144, %v1053
  %v3184 = vmul.f32 %v3146, %v1053
  %v3185 = vmul.f32 %v3148, %v1053
  %v3186 = vmul.f32 %v3150, %v1053
  %v3187 = vmul.f32 %v3152, %v1053
  %v3188 = vmul.f32 %v3154, %v1053
  %v3189 = vmul.f32 %v3156, %v1053
  %v3190 = vmul.f32 %v3158, %v1053
  %v3191 = vsub.f32 %v2969, %v3159
  %v3192 = vsub.f32 %v2972, %v3160
  %v3193 = vsub.f32 %v2977, %v3161
  %v3194 = vsub.f32 %v2980, %v3162
  %v3195 = vsub.f32 %v2985, %v3163
  %v3196 = vsub.f32 %v2988, %v3164
  %v3197 = vsub.f32 %v2993, %v3165
  %v3198 = vsub.f32 %v2996, %v3166
  %v3199 = vsub.f32 %v3001, %v3167
  %v3200 = vsub.f32 %v3004, %v3168
  %v3201 = vsub.f32 %v3009, %v3169
  %v3202 = vsub.f32 %v3012, %v3170
  %v3203 = vsub.f32 %v3017, %v3171
  %v3204 = vsub.f32 %v3020, %v3172
  %v3205 = vsub.f32 %v3025, %v3173
  %v3206 = vsub.f32 %v3028, %v3174
  %v3207 = vsub.f32 %v3033, %v3175
  %v3208 = vsub.f32 %v3036, %v3176
  %v3209 = vsub.f32 %v3041, %v3177
  %v3210 = vsub.f32 %v3044, %v3178
  %v3211 = vsub.f32 %v3049, %v3179
  %v3212 = vsub.f32 %v3052, %v3180
  %v3213 = vsub.f32 %v3057, %v3181
  %v3214 = vsub.f32 %v3060, %v3182
  %v3215 = vsub.f32 %v3065, %v3183
  %v3216 = vsub.f32 %v3068, %v3184
  %v3217 = vsub.f32 %v3073, %v3185
  %v3218 = vsub.f32 %v3076, %v3186
  %v3219 = vsub.f32 %v3081, %v3187
  %v3220 = vsub.f32 %v3084, %v3188
  %v3221 = vsub.f32 %v3089, %v3189
  %v3222 = vsub.f32 %v3092, %v3190
  %v3223 = vmul.f32 %v3191, %v3191
  %v3224 = vmul.f32 %v3192, %v3192
  %v3225 = vmul.f32 %v3193, %v3193
  %v3226 = vmul.f32 %v3194, %v3194
  %v3227 = vmul.f32 %v3195, %v3195
  %v3228 = vmul.f32 %v3196, %v3196
  %v3229 = vmul.f32 %v3197, %v3197
  %v3230 = vmul.f32 %v3198, %v3198
  %v3231 = vmul.f32 %v3199, %v3199
  %v3232 = vmul.f32 %v3200, %v3200
  %v3233 = vmul.f32 %v3201, %v3201
  %v3234 = vmul.f32 %v3202, %v3202
  %v3235 = vmul.f32 %v3203, %v3203
  %v3236 = vmul.f32 %v3204, %v3204
  %v3237 = vmul.f32 %v3205, %v3205
  %v3238 = vmul.f32 %v3206, %v3206
  %v3239 = vmul.f32 %v3207, %v3207
  %v3240 = vmul.f32 %v3208, %v3208
  %v3241 = vmul.f32 %v3209, %v3209
  %v3242 = vmul.f32 %v3210, %v3210
  %v3243 = vmul.f32 %v3211, %v3211
  %v3244 = vmul.f32 %v3212, %v3212
  %v3245 = vmul.f32 %v3213, %v3213
  %v3246 = vmul.f32 %v3214, %v3214
  %v3247 = vmul.f32 %v3215, %v3215
  %v3248 = vmul.f32 %v3216, %v3216
  %v3249 = vmul.f32 %v3217, %v3217
  %v3250 = vmul.f32 %v3218, %v3218
  %v3251 = vmul.f32 %v3219, %v3219
  %v3252 = vmul.f32 %v3220, %v3220
  %v3253 = vmul.f32 %v3221, %v3221
  %v3254 = vmul.f32 %v3222, %v3222
  %3255 = vadd.xlane.f32.xlu0 %v3223
  %v3256 = vpop.xlane.xlu0 %3255
  %3257 = vadd.xlane.f32.xlu0 %v3224
  %v3258 = vpop.xlane.xlu0 %3257
  %3259 = vadd.xlane.f32.xlu0 %v3225
  %v3260 = vpop.xlane.xlu0 %3259
  %3261 = vadd.xlane.f32.xlu0 %v3226
  %v3262 = vpop.xlane.xlu0 %3261
  %3263 = vadd.xlane.f32.xlu0 %v3227
  %v3264 = vpop.xlane.xlu0 %3263
  %3265 = vadd.xlane.f32.xlu0 %v3228
  %v3266 = vpop.xlane.xlu0 %3265
  %3267 = vadd.xlane.f32.xlu0 %v3229
  %v3268 = vpop.xlane.xlu0 %3267
  %3269 = vadd.xlane.f32.xlu0 %v3230
  %v3270 = vpop.xlane.xlu0 %3269
  %3271 = vadd.xlane.f32.xlu0 %v3231
  %v3272 = vpop.xlane.xlu0 %3271
  %3273 = vadd.xlane.f32.xlu0 %v3232
  %v3274 = vpop.xlane.xlu0 %3273
  %3275 = vadd.xlane.f32.xlu0 %v3233
  %v3276 = vpop.xlane.xlu0 %3275
  %3277 = vadd.xlane.f32.xlu0 %v3234
  %v3278 = vpop.xlane.xlu0 %3277
  %3279 = vadd.xlane.f32.xlu0 %v3235
  %v3280 = vpop.xlane.xlu0 %3279
  %3281 = vadd.xlane.f32.xlu0 %v3236
  %v3282 = vpop.xlane.xlu0 %3281
  %3283 = vadd.xlane.f32.xlu0 %v3237
  %v3284 = vpop.xlane.xlu0 %3283
  %3285 = vadd.xlane.f32.xlu0 %v3238
  %v3286 = vpop.xlane.xlu0 %3285
  %3287 = vadd.xlane.f32.xlu0 %v3239
  %v3288 = vpop.xlane.xlu0 %3287
  %3289 = vadd.xlane.f32.xlu0 %v3240
  %v3290 = vpop.xlane.xlu0 %3289
  %3291 = vadd.xlane.f32.xlu0 %v3241
  %v3292 = vpop.xlane.xlu0 %3291
  %3293 = vadd.xlane.f32.xlu0 %v3242
  %v3294 = vpop.xlane.xlu0 %3293
  %3295 = vadd.xlane.f32.xlu0 %v3243
  %v3296 = vpop.xlane.xlu0 %3295
  %3297 = vadd.xlane.f32.xlu0 %v3244
  %v3298 = vpop.xlane.xlu0 %3297
  %3299 = vadd.xlane.f32.xlu0 %v3245
  %v3300 = vpop.xlane.xlu0 %3299
  %3301 = vadd.xlane.f32.xlu0 %v3246
  %v3302 = vpop.xlane.xlu0 %3301
  %3303 = vadd.xlane.f32.xlu0 %v3247
  %v3304 = vpop.xlane.xlu0 %3303
  %3305 = vadd.xlane.f32.xlu0 %v3248
  %v3306 = vpop.xlane.xlu0 %3305
  %3307 = vadd.xlane.f32.xlu0 %v3249
  %v3308 = vpop.xlane.xlu0 %3307
  %3309 = vadd.xlane.f32.xlu0 %v3250
  %v3310 = vpop.xlane.xlu0 %3309
  %3311 = vadd.xlane.f32.xlu0 %v3251
  %v3312 = vpop.xlane.xlu0 %3311
  %3313 = vadd.xlane.f32.xlu0 %v3252
  %v3314 = vpop.xlane.xlu0 %3313
  %3315 = vadd.xlane.f32.xlu0 %v3253
  %v3316 = vpop.xlane.xlu0 %3315
  %3317 = vadd.xlane.f32.xlu0 %v3254
  %v3318 = vpop.xlane.xlu0 %3317
  %v3319 = vmul.f32 %v3256, %v1053
  %v3320 = vmul.f32 %v3258, %v1053
  %v3321 = vmul.f32 %v3260, %v1053
  %v3322 = vmul.f32 %v3262, %v1053
  %v3323 = vmul.f32 %v3264, %v1053
  %v3324 = vmul.f32 %v3266, %v1053
  %v3325 = vmul.f32 %v3268, %v1053
  %v3326 = vmul.f32 %v3270, %v1053
  %v3327 = vmul.f32 %v3272, %v1053
  %v3328 = vmul.f32 %v3274, %v1053
  %v3329 = vmul.f32 %v3276, %v1053
  %v3330 = vmul.f32 %v3278, %v1053
  %v3331 = vmul.f32 %v3280, %v1053
  %v3332 = vmul.f32 %v3282, %v1053
  %v3333 = vmul.f32 %v3284, %v1053
  %v3334 = vmul.f32 %v3286, %v1053
  %v3335 = vmul.f32 %v3288, %v1053
  %v3336 = vmul.f32 %v3290, %v1053
  %v3337 = vmul.f32 %v3292, %v1053
  %v3338 = vmul.f32 %v3294, %v1053
  %v3339 = vmul.f32 %v3296, %v1053
  %v3340 = vmul.f32 %v3298, %v1053
  %v3341 = vmul.f32 %v3300, %v1053
  %v3342 = vmul.f32 %v3302, %v1053
  %v3343 = vmul.f32 %v3304, %v1053
  %v3344 = vmul.f32 %v3306, %v1053
  %v3345 = vmul.f32 %v3308, %v1053
  %v3346 = vmul.f32 %v3310, %v1053
  %v3347 = vmul.f32 %v3312, %v1053
  %v3348 = vmul.f32 %v3314, %v1053
  %v3349 = vmul.f32 %v3316, %v1053
  %v3350 = vmul.f32 %v3318, %v1053
  %v3351 = vadd.f32 %v3319, 1e-05
  %v3352 = vadd.f32 %v3320, 1e-05
  %v3353 = vadd.f32 %v3321, 1e-05
  %v3354 = vadd.f32 %v3322, 1e-05
  %v3355 = vadd.f32 %v3323, 1e-05
  %v3356 = vadd.f32 %v3324, 1e-05
  %v3357 = vadd.f32 %v3325, 1e-05
  %v3358 = vadd.f32 %v3326, 1e-05
  %v3359 = vadd.f32 %v3327, 1e-05
  %v3360 = vadd.f32 %v3328, 1e-05
  %v3361 = vadd.f32 %v3329, 1e-05
  %v3362 = vadd.f32 %v3330, 1e-05
  %v3363 = vadd.f32 %v3331, 1e-05
  %v3364 = vadd.f32 %v3332, 1e-05
  %v3365 = vadd.f32 %v3333, 1e-05
  %v3366 = vadd.f32 %v3334, 1e-05
  %v3367 = vadd.f32 %v3335, 1e-05
  %v3368 = vadd.f32 %v3336, 1e-05
  %v3369 = vadd.f32 %v3337, 1e-05
  %v3370 = vadd.f32 %v3338, 1e-05
  %v3371 = vadd.f32 %v3339, 1e-05
  %v3372 = vadd.f32 %v3340, 1e-05
  %v3373 = vadd.f32 %v3341, 1e-05
  %v3374 = vadd.f32 %v3342, 1e-05
  %v3375 = vadd.f32 %v3343, 1e-05
  %v3376 = vadd.f32 %v3344, 1e-05
  %v3377 = vadd.f32 %v3345, 1e-05
  %v3378 = vadd.f32 %v3346, 1e-05
  %v3379 = vadd.f32 %v3347, 1e-05
  %v3380 = vadd.f32 %v3348, 1e-05
  %v3381 = vadd.f32 %v3349, 1e-05
  %v3382 = vadd.f32 %v3350, 1e-05
  %v3383 = vrsqrt.pop %v3351
  %v3384 = vrsqrt.pop %v3352
  %v3385 = vrsqrt.pop %v3353
  %v3386 = vrsqrt.pop %v3354
  %v3387 = vrsqrt.pop %v3355
  %v3388 = vrsqrt.pop %v3356
  %v3389 = vrsqrt.pop %v3357
  %v3390 = vrsqrt.pop %v3358
  %v3391 = vrsqrt.pop %v3359
  %v3392 = vrsqrt.pop %v3360
  %v3393 = vrsqrt.pop %v3361
  %v3394 = vrsqrt.pop %v3362
  %v3395 = vrsqrt.pop %v3363
  %v3396 = vrsqrt.pop %v3364
  %v3397 = vrsqrt.pop %v3365
  %v3398 = vrsqrt.pop %v3366
  %v3399 = vrsqrt.pop %v3367
  %v3400 = vrsqrt.pop %v3368
  %v3401 = vrsqrt.pop %v3369
  %v3402 = vrsqrt.pop %v3370
  %v3403 = vrsqrt.pop %v3371
  %v3404 = vrsqrt.pop %v3372
  %v3405 = vrsqrt.pop %v3373
  %v3406 = vrsqrt.pop %v3374
  %v3407 = vrsqrt.pop %v3375
  %v3408 = vrsqrt.pop %v3376
  %v3409 = vrsqrt.pop %v3377
  %v3410 = vrsqrt.pop %v3378
  %v3411 = vrsqrt.pop %v3379
  %v3412 = vrsqrt.pop %v3380
  %v3413 = vrsqrt.pop %v3381
  %v3414 = vrsqrt.pop %v3382
  %v3415 = vmul.f32 %v3191, %v3383
  %v3416 = vmul.f32 %v3192, %v3384
  %v3417 = vmul.f32 %v3193, %v3385
  %v3418 = vmul.f32 %v3194, %v3386
  %v3419 = vmul.f32 %v3195, %v3387
  %v3420 = vmul.f32 %v3196, %v3388
  %v3421 = vmul.f32 %v3197, %v3389
  %v3422 = vmul.f32 %v3198, %v3390
  %v3423 = vmul.f32 %v3199, %v3391
  %v3424 = vmul.f32 %v3200, %v3392
  %v3425 = vmul.f32 %v3201, %v3393
  %v3426 = vmul.f32 %v3202, %v3394
  %v3427 = vmul.f32 %v3203, %v3395
  %v3428 = vmul.f32 %v3204, %v3396
  %v3429 = vmul.f32 %v3205, %v3397
  %v3430 = vmul.f32 %v3206, %v3398
  %v3431 = vmul.f32 %v3207, %v3399
  %v3432 = vmul.f32 %v3208, %v3400
  %v3433 = vmul.f32 %v3209, %v3401
  %v3434 = vmul.f32 %v3210, %v3402
  %v3435 = vmul.f32 %v3211, %v3403
  %v3436 = vmul.f32 %v3212, %v3404
  %v3437 = vmul.f32 %v3213, %v3405
  %v3438 = vmul.f32 %v3214, %v3406
  %v3439 = vmul.f32 %v3215, %v3407
  %v3440 = vmul.f32 %v3216, %v3408
  %v3441 = vmul.f32 %v3217, %v3409
  %v3442 = vmul.f32 %v3218, %v3410
  %v3443 = vmul.f32 %v3219, %v3411
  %v3444 = vmul.f32 %v3220, %v3412
  %v3445 = vmul.f32 %v3221, %v3413
  %v3446 = vmul.f32 %v3222, %v3414
  %v3447 = vlaneseq
  %v3448 = vshrl.u32 %v3447, 7
  %v3449 = vsub.s32 2, %v3448
  %v3450 = vrot.slane %v22, %v3449
  %v3451 = vmul.f32 %v3415, %v3450
  %v3452 = vmul.f32 %v3416, %v3450
  %v3453 = vmul.f32 %v3417, %v3450
  %v3454 = vmul.f32 %v3418, %v3450
  %v3455 = vmul.f32 %v3419, %v3450
  %v3456 = vmul.f32 %v3420, %v3450
  %v3457 = vmul.f32 %v3421, %v3450
  %v3458 = vmul.f32 %v3422, %v3450
  %v3459 = vmul.f32 %v3423, %v3450
  %v3460 = vmul.f32 %v3424, %v3450
  %v3461 = vmul.f32 %v3425, %v3450
  %v3462 = vmul.f32 %v3426, %v3450
  %v3463 = vmul.f32 %v3427, %v3450
  %v3464 = vmul.f32 %v3428, %v3450
  %v3465 = vmul.f32 %v3429, %v3450
  %v3466 = vmul.f32 %v3430, %v3450
  %v3467 = vmul.f32 %v3431, %v3450
  %v3468 = vmul.f32 %v3432, %v3450
  %v3469 = vmul.f32 %v3433, %v3450
  %v3470 = vmul.f32 %v3434, %v3450
  %v3471 = vmul.f32 %v3435, %v3450
  %v3472 = vmul.f32 %v3436, %v3450
  %v3473 = vmul.f32 %v3437, %v3450
  %v3474 = vmul.f32 %v3438, %v3450
  %v3475 = vmul.f32 %v3439, %v3450
  %v3476 = vmul.f32 %v3440, %v3450
  %v3477 = vmul.f32 %v3441, %v3450
  %v3478 = vmul.f32 %v3442, %v3450
  %v3479 = vmul.f32 %v3443, %v3450
  %v3480 = vmul.f32 %v3444, %v3450
  %v3481 = vmul.f32 %v3445, %v3450
  %v3482 = vmul.f32 %v3446, %v3450
  %v3483 = vlaneseq
  %v3484 = vshrl.u32 %v3483, 7
  %v3485 = vsub.s32 3, %v3484
  %v3486 = vrot.slane %v22, %v3485
  %v3487 = vadd.f32 %v3451, %v3486
  %v3488 = vadd.f32 %v3452, %v3486
  %v3489 = vadd.f32 %v3453, %v3486
  %v3490 = vadd.f32 %v3454, %v3486
  %v3491 = vadd.f32 %v3455, %v3486
  %v3492 = vadd.f32 %v3456, %v3486
  %v3493 = vadd.f32 %v3457, %v3486
  %v3494 = vadd.f32 %v3458, %v3486
  %v3495 = vadd.f32 %v3459, %v3486
  %v3496 = vadd.f32 %v3460, %v3486
  %v3497 = vadd.f32 %v3461, %v3486
  %v3498 = vadd.f32 %v3462, %v3486
  %v3499 = vadd.f32 %v3463, %v3486
  %v3500 = vadd.f32 %v3464, %v3486
  %v3501 = vadd.f32 %v3465, %v3486
  %v3502 = vadd.f32 %v3466, %v3486
  %v3503 = vadd.f32 %v3467, %v3486
  %v3504 = vadd.f32 %v3468, %v3486
  %v3505 = vadd.f32 %v3469, %v3486
  %v3506 = vadd.f32 %v3470, %v3486
  %v3507 = vadd.f32 %v3471, %v3486
  %v3508 = vadd.f32 %v3472, %v3486
  %v3509 = vadd.f32 %v3473, %v3486
  %v3510 = vadd.f32 %v3474, %v3486
  %v3511 = vadd.f32 %v3475, %v3486
  %v3512 = vadd.f32 %v3476, %v3486
  %v3513 = vadd.f32 %v3477, %v3486
  %v3514 = vadd.f32 %v3478, %v3486
  %v3515 = vadd.f32 %v3479, %v3486
  %v3516 = vadd.f32 %v3480, %v3486
  %v3517 = vadd.f32 %v3481, %v3486
  %v3518 = vadd.f32 %v3482, %v3486
  %v3519 = vmax.f32 %v3487, 0.0
  %v3520 = vmax.f32 %v3488, 0.0
  %v3521 = vmax.f32 %v3489, 0.0
  %v3522 = vmax.f32 %v3490, 0.0
  %v3523 = vmax.f32 %v3491, 0.0
  %v3524 = vmax.f32 %v3492, 0.0
  %v3525 = vmax.f32 %v3493, 0.0
  %v3526 = vmax.f32 %v3494, 0.0
  %v3527 = vmax.f32 %v3495, 0.0
  %v3528 = vmax.f32 %v3496, 0.0
  %v3529 = vmax.f32 %v3497, 0.0
  %v3530 = vmax.f32 %v3498, 0.0
  %v3531 = vmax.f32 %v3499, 0.0
  %v3532 = vmax.f32 %v3500, 0.0
  %v3533 = vmax.f32 %v3501, 0.0
  %v3534 = vmax.f32 %v3502, 0.0
  %v3535 = vmax.f32 %v3503, 0.0
  %v3536 = vmax.f32 %v3504, 0.0
  %v3537 = vmax.f32 %v3505, 0.0
  %v3538 = vmax.f32 %v3506, 0.0
  %v3539 = vmax.f32 %v3507, 0.0
  %v3540 = vmax.f32 %v3508, 0.0
  %v3541 = vmax.f32 %v3509, 0.0
  %v3542 = vmax.f32 %v3510, 0.0
  %v3543 = vmax.f32 %v3511, 0.0
  %v3544 = vmax.f32 %v3512, 0.0
  %v3545 = vmax.f32 %v3513, 0.0
  %v3546 = vmax.f32 %v3514, 0.0
  %v3547 = vmax.f32 %v3515, 0.0
  %v3548 = vmax.f32 %v3516, 0.0
  %v3549 = vmax.f32 %v3517, 0.0
  %v3550 = vmax.f32 %v3518, 0.0
  %v3551 = vpack.c.bf16 %v3520, %v3519
  %v3552 = vpack.c.bf16 %v3522, %v3521
  %v3553 = vpack.c.bf16 %v3524, %v3523
  %v3554 = vpack.c.bf16 %v3526, %v3525
  %v3555 = vpack.c.bf16 %v3528, %v3527
  %v3556 = vpack.c.bf16 %v3530, %v3529
  %v3557 = vpack.c.bf16 %v3532, %v3531
  %v3558 = vpack.c.bf16 %v3534, %v3533
  %v3559 = vpack.c.bf16 %v3536, %v3535
  %v3560 = vpack.c.bf16 %v3538, %v3537
  %v3561 = vpack.c.bf16 %v3540, %v3539
  %v3562 = vpack.c.bf16 %v3542, %v3541
  %v3563 = vpack.c.bf16 %v3544, %v3543
  %v3564 = vpack.c.bf16 %v3546, %v3545
  %v3565 = vpack.c.bf16 %v3548, %v3547
  %v3566 = vpack.c.bf16 %v3550, %v3549
  %v3567 = vld [vmem:[%s3] sm:$0xf]
  %v3568 = vld [vmem:[%s3 + $0x4] sm:$0xf]
  %v3569 = vld [vmem:[%s3 + $0x8] sm:$0xf]
  %v3570 = vld [vmem:[%s3 + $0xc] sm:$0xf]
  %v3571 = vld [vmem:[%s3 + $0x10] sm:$0xf]
  %v3572 = vld [vmem:[%s3 + $0x14] sm:$0xf]
  %v3573 = vld [vmem:[%s3 + $0x18] sm:$0xf]
  %v3574 = vld [vmem:[%s3 + $0x1c] sm:$0xf]
  %v3575 = vld [vmem:[%s3 + $0x20] sm:$0xf]
  %v3576 = vld [vmem:[%s3 + $0x24] sm:$0xf]
  %v3577 = vld [vmem:[%s3 + $0x28] sm:$0xf]
  %v3578 = vld [vmem:[%s3 + $0x2c] sm:$0xf]
  %v3579 = vld [vmem:[%s3 + $0x30] sm:$0xf]
  %v3580 = vld [vmem:[%s3 + $0x34] sm:$0xf]
  %v3581 = vld [vmem:[%s3 + $0x38] sm:$0xf]
  %v3582 = vld [vmem:[%s3 + $0x3c] sm:$0xf]
  %v3583 = vlaneseq
  %v3584 = vshrl.u32 %v3583, 7
  %v3585 = vsub.s32 4, %v3584
  %v3586 = vrot.slane %v22, %v3585
  %v3603 = vunpack.c.l.b16 %v3567
  %v3604 = vunpack.c.l.b16 %v3568
  %v3605 = vunpack.c.l.b16 %v3569
  %v3606 = vunpack.c.l.b16 %v3570
  %v3607 = vunpack.c.l.b16 %v3571
  %v3608 = vunpack.c.l.b16 %v3572
  %v3609 = vunpack.c.l.b16 %v3573
  %v3610 = vunpack.c.l.b16 %v3574
  %v3611 = vunpack.c.l.b16 %v3575
  %v3612 = vunpack.c.l.b16 %v3576
  %v3613 = vunpack.c.l.b16 %v3577
  %v3614 = vunpack.c.l.b16 %v3578
  %v3615 = vunpack.c.l.b16 %v3579
  %v3616 = vunpack.c.l.b16 %v3580
  %v3617 = vunpack.c.l.b16 %v3581
  %v3618 = vunpack.c.l.b16 %v3582
  %v3619 = vpack.c.b16 %v3604, %v3603
  %v3620 = vpack.c.b16 %v3606, %v3605
  %v3621 = vpack.c.b16 %v3608, %v3607
  %v3622 = vpack.c.b16 %v3610, %v3609
  %v3623 = vpack.c.b16 %v3612, %v3611
  %v3624 = vpack.c.b16 %v3614, %v3613
  %v3625 = vpack.c.b16 %v3616, %v3615
  %v3626 = vpack.c.b16 %v3618, %v3617
  %3635 = vmatprep.subr.bf16.mxu0 0
  %3636 = vmatpush1.bf16.msra.mxu0 %v3619
  %3637 = vmatprep.subr.bf16.mxu0 0
  %3638 = vmatpush1.bf16.msra.mxu0 %v3620
  %3639 = vmatprep.subr.bf16.mxu0 0
  %3640 = vmatpush1.bf16.msra.mxu0 %v3621
  %3641 = vmatprep.subr.bf16.mxu0 0
  %3642 = vmatpush1.bf16.msra.mxu0 %v3622
  %3643 = vmatprep.subr.bf16.mxu0 0
  %3644 = vmatpush1.bf16.msra.mxu0 %v3623
  %3645 = vmatprep.subr.bf16.mxu0 0
  %3646 = vmatpush1.bf16.msra.mxu0 %v3624
  %3647 = vmatprep.subr.bf16.mxu0 0
  %3648 = vmatpush1.bf16.msra.mxu0 %v3625
  %3649 = vmatprep.subr.bf16.mxu0 0
  %3650 = vmatpush1.bf16.msra.mxu0 %v3626
  %3651 = vmatprep.subr.bf16.mxu0 0
  %3652 = vmatpush1.bf16.msra.mxu0 0
  %3653 = vmatprep.subr.bf16.mxu0 0
  %3654 = vmatpush1.bf16.msra.mxu0 0
  %3655 = vmatprep.subr.bf16.mxu0 0
  %3656 = vmatpush1.bf16.msra.mxu0 0
  %3657 = vmatprep.subr.bf16.mxu0 0
  %3658 = vmatpush1.bf16.msra.mxu0 0
  %3659 = vmatprep.subr.bf16.mxu0 0
  %3660 = vmatpush1.bf16.msra.mxu0 0
  %3661 = vmatprep.subr.bf16.mxu0 0
  %3662 = vmatpush1.bf16.msra.mxu0 0
  %3663 = vmatprep.subr.bf16.mxu0 0
  %3664 = vmatpush1.bf16.msra.mxu0 0
  %3665 = vmatprep.subr.bf16.mxu0 0
  %3666 = vmatpush1.bf16.msra.mxu0 0
  %3667 = vmatprep.mubr.bf16.mxu0 0
  %3668 = vmatmul.mubr.bf16.gmra.mrb[0].mxu0 %v3551
  %v3669 = vpop.f32.mrb[0].mxu0
  %v3670 = vadd.f32 %v3586, %v3669
  %v3671 = vpop.f32.mrb[0].mxu0
  %v3672 = vpop.f32.mrb[0].mxu0
  %v3673 = vadd.f32 %v3586, %v3672
  %v3674 = vpop.f32.mrb[0].mxu0
  %3675 = vmatprep.mubr.bf16.mxu0 0
  %3676 = vmatmul.mubr.bf16.gmra.mrb[0].mxu0 %v3552
  %v3677 = vpop.f32.mrb[0].mxu0
  %v3678 = vadd.f32 %v3586, %v3677
  %v3679 = vpop.f32.mrb[0].mxu0
  %v3680 = vpop.f32.mrb[0].mxu0
  %v3681 = vadd.f32 %v3586, %v3680
  %v3682 = vpop.f32.mrb[0].mxu0
  %3683 = vmatprep.mubr.bf16.mxu0 0
  %3684 = vmatmul.mubr.bf16.gmra.mrb[0].mxu0 %v3553
  %v3685 = vpop.f32.mrb[0].mxu0
  %v3686 = vadd.f32 %v3586, %v3685
  %v3687 = vpop.f32.mrb[0].mxu0
  %v3688 = vpop.f32.mrb[0].mxu0
  %v3689 = vadd.f32 %v3586, %v3688
  %v3690 = vpop.f32.mrb[0].mxu0
  %3691 = vmatprep.mubr.bf16.mxu0 0
  %3692 = vmatmul.mubr.bf16.gmra.mrb[0].mxu0 %v3554
  %v3693 = vpop.f32.mrb[0].mxu0
  %v3694 = vadd.f32 %v3586, %v3693
  %v3695 = vpop.f32.mrb[0].mxu0
  %v3696 = vpop.f32.mrb[0].mxu0
  %v3697 = vadd.f32 %v3586, %v3696
  %v3698 = vpop.f32.mrb[0].mxu0
  %3699 = vmatprep.mubr.bf16.mxu0 0
  %3700 = vmatmul.mubr.bf16.gmra.mrb[0].mxu0 %v3555
  %v3701 = vpop.f32.mrb[0].mxu0
  %v3702 = vadd.f32 %v3586, %v3701
  %v3703 = vpop.f32.mrb[0].mxu0
  %v3704 = vpop.f32.mrb[0].mxu0
  %v3705 = vadd.f32 %v3586, %v3704
  %v3706 = vpop.f32.mrb[0].mxu0
  %3707 = vmatprep.mubr.bf16.mxu0 0
  %3708 = vmatmul.mubr.bf16.gmra.mrb[0].mxu0 %v3556
  %v3709 = vpop.f32.mrb[0].mxu0
  %v3710 = vadd.f32 %v3586, %v3709
  %v3711 = vpop.f32.mrb[0].mxu0
  %v3712 = vpop.f32.mrb[0].mxu0
  %v3713 = vadd.f32 %v3586, %v3712
  %v3714 = vpop.f32.mrb[0].mxu0
  %3715 = vmatprep.mubr.bf16.mxu0 0
  %3716 = vmatmul.mubr.bf16.gmra.mrb[0].mxu0 %v3557
  %v3717 = vpop.f32.mrb[0].mxu0
  %v3718 = vadd.f32 %v3586, %v3717
  %v3719 = vpop.f32.mrb[0].mxu0
  %v3720 = vpop.f32.mrb[0].mxu0
  %v3721 = vadd.f32 %v3586, %v3720
  %v3722 = vpop.f32.mrb[0].mxu0
  %3723 = vmatprep.mubr.bf16.mxu0 0
  %3724 = vmatmul.mubr.bf16.gmra.mrb[0].mxu0 %v3558
  %v3725 = vpop.f32.mrb[0].mxu0
  %v3726 = vadd.f32 %v3586, %v3725
  %v3727 = vpop.f32.mrb[0].mxu0
  %v3728 = vpop.f32.mrb[0].mxu0
  %v3729 = vadd.f32 %v3586, %v3728
  %v3730 = vpop.f32.mrb[0].mxu0
  %3731 = vmatprep.mubr.bf16.mxu0 0
  %3732 = vmatmul.mubr.bf16.gmra.mrb[0].mxu0 %v3559
  %v3733 = vpop.f32.mrb[0].mxu0
  %v3734 = vadd.f32 %v3586, %v3733
  %v3735 = vpop.f32.mrb[0].mxu0
  %v3736 = vpop.f32.mrb[0].mxu0
  %v3737 = vadd.f32 %v3586, %v3736
  %v3738 = vpop.f32.mrb[0].mxu0
  %3739 = vmatprep.mubr.bf16.mxu0 0
  %3740 = vmatmul.mubr.bf16.gmra.mrb[0].mxu0 %v3560
  %v3741 = vpop.f32.mrb[0].mxu0
  %v3742 = vadd.f32 %v3586, %v3741
  %v3743 = vpop.f32.mrb[0].mxu0
  %v3744 = vpop.f32.mrb[0].mxu0
  %v3745 = vadd.f32 %v3586, %v3744
  %v3746 = vpop.f32.mrb[0].mxu0
  %3747 = vmatprep.mubr.bf16.mxu0 0
  %3748 = vmatmul.mubr.bf16.gmra.mrb[0].mxu0 %v3561
  %v3749 = vpop.f32.mrb[0].mxu0
  %v3750 = vadd.f32 %v3586, %v3749
  %v3751 = vpop.f32.mrb[0].mxu0
  %v3752 = vpop.f32.mrb[0].mxu0
  %v3753 = vadd.f32 %v3586, %v3752
  %v3754 = vpop.f32.mrb[0].mxu0
  %3755 = vmatprep.mubr.bf16.mxu0 0
  %3756 = vmatmul.mubr.bf16.gmra.mrb[0].mxu0 %v3562
  %v3757 = vpop.f32.mrb[0].mxu0
  %v3758 = vadd.f32 %v3586, %v3757
  %v3759 = vpop.f32.mrb[0].mxu0
  %v3760 = vpop.f32.mrb[0].mxu0
  %v3761 = vadd.f32 %v3586, %v3760
  %v3762 = vpop.f32.mrb[0].mxu0
  %3763 = vmatprep.mubr.bf16.mxu0 0
  %3764 = vmatmul.mubr.bf16.gmra.mrb[0].mxu0 %v3563
  %v3765 = vpop.f32.mrb[0].mxu0
  %v3766 = vadd.f32 %v3586, %v3765
  %v3767 = vpop.f32.mrb[0].mxu0
  %v3768 = vpop.f32.mrb[0].mxu0
  %v3769 = vadd.f32 %v3586, %v3768
  %v3770 = vpop.f32.mrb[0].mxu0
  %3771 = vmatprep.mubr.bf16.mxu0 0
  %3772 = vmatmul.mubr.bf16.gmra.mrb[0].mxu0 %v3564
  %v3773 = vpop.f32.mrb[0].mxu0
  %v3774 = vadd.f32 %v3586, %v3773
  %v3775 = vpop.f32.mrb[0].mxu0
  %v3776 = vpop.f32.mrb[0].mxu0
  %v3777 = vadd.f32 %v3586, %v3776
  %v3778 = vpop.f32.mrb[0].mxu0
  %3779 = vmatprep.mubr.bf16.mxu0 0
  %3780 = vmatmul.mubr.bf16.gmra.mrb[0].mxu0 %v3565
  %v3781 = vpop.f32.mrb[0].mxu0
  %v3782 = vadd.f32 %v3586, %v3781
  %v3783 = vpop.f32.mrb[0].mxu0
  %v3784 = vpop.f32.mrb[0].mxu0
  %v3785 = vadd.f32 %v3586, %v3784
  %v3786 = vpop.f32.mrb[0].mxu0
  %3787 = vmatprep.mubr.bf16.mxu0 0
  %3788 = vmatmul.mubr.bf16.gmra.mrb[0].mxu0 %v3566
  %v3789 = vpop.f32.mrb[0].mxu0
  %v3790 = vadd.f32 %v3586, %v3789
  %v3791 = vpop.f32.mrb[0].mxu0
  %v3792 = vpop.f32.mrb[0].mxu0
  %v3793 = vadd.f32 %v3586, %v3792
  %v3794 = vpop.f32.mrb[0].mxu0
  %3795 = vdwg.mxu0
  %3796 = vst [vmem:[%s5] sm:$0xff] %v3670
  %3797 = vst [vmem:[%s5 + $0x8] sm:$0xff] %v3673
  %3798 = vst [vmem:[%s5 + $0x10] sm:$0xff] %v3678
  %3799 = vst [vmem:[%s5 + $0x18] sm:$0xff] %v3681
  %3800 = vst [vmem:[%s5 + $0x20] sm:$0xff] %v3686
  %3801 = vst [vmem:[%s5 + $0x28] sm:$0xff] %v3689
  %3802 = vst [vmem:[%s5 + $0x30] sm:$0xff] %v3694
  %3803 = vst [vmem:[%s5 + $0x38] sm:$0xff] %v3697
  %3804 = vst [vmem:[%s5 + $0x40] sm:$0xff] %v3702
  %3805 = vst [vmem:[%s5 + $0x48] sm:$0xff] %v3705
  %3806 = vst [vmem:[%s5 + $0x50] sm:$0xff] %v3710
  %3807 = vst [vmem:[%s5 + $0x58] sm:$0xff] %v3713
  %3808 = vst [vmem:[%s5 + $0x60] sm:$0xff] %v3718
  %3809 = vst [vmem:[%s5 + $0x68] sm:$0xff] %v3721
  %3810 = vst [vmem:[%s5 + $0x70] sm:$0xff] %v3726
  %3811 = vst [vmem:[%s5 + $0x78] sm:$0xff] %v3729
  %3812 = vst [vmem:[%s5 + $0x80] sm:$0xff] %v3734
  %3813 = vst [vmem:[%s5 + $0x88] sm:$0xff] %v3737
  %3814 = vst [vmem:[%s5 + $0x90] sm:$0xff] %v3742
  %3815 = vst [vmem:[%s5 + $0x98] sm:$0xff] %v3745
  %3816 = vst [vmem:[%s5 + $0xa0] sm:$0xff] %v3750
  %3817 = vst [vmem:[%s5 + $0xa8] sm:$0xff] %v3753
  %3818 = vst [vmem:[%s5 + $0xb0] sm:$0xff] %v3758
  %3819 = vst [vmem:[%s5 + $0xb8] sm:$0xff] %v3761
  %3820 = vst [vmem:[%s5 + $0xc0] sm:$0xff] %v3766
  %3821 = vst [vmem:[%s5 + $0xc8] sm:$0xff] %v3769
  %3822 = vst [vmem:[%s5 + $0xd0] sm:$0xff] %v3774
  %3823 = vst [vmem:[%s5 + $0xd8] sm:$0xff] %v3777
  %3824 = vst [vmem:[%s5 + $0xe0] sm:$0xff] %v3782
  %3825 = vst [vmem:[%s5 + $0xe8] sm:$0xff] %v3785
  %3826 = vst [vmem:[%s5 + $0xf0] sm:$0xff] %v3790
  %3827 = vst [vmem:[%s5 + $0xf8] sm:$0xff] %v3793
  // Predicated region
  $region22: #{layernormnet_forward.1} parent=0 // pred_check
    _
  $region23: #{layernormnet_forward.1} parent=0 // pred_check_branch
    %3829 = sbr.rel (0) target = $region25
  $region24: #{layernormnet_forward.1} parent=0 // pred_region
    _
  $region25: #{layernormnet_forward.1} parent=0 // pred_fallthru
    _
  // Predicated region
  $region26: #{layernormnet_forward.1} parent=0 // pred_check
    _
  $region27: #{layernormnet_forward.1} parent=0 // pred_check_branch
    %3831 = sbr.rel (0) target = $region29
  $region28: #{layernormnet_forward.1} parent=0 // pred_region
    _
  $region29: #{layernormnet_forward.1} parent=0 // pred_fallthru
    _

</llo_original>
